<compile_context>
chip_gen: v5e
topology: v5e:2x2
jax: 0.10.0
libtpu: 0.0.40
codegen_flags: <defaults>
</compile_context>

<pallas_src>
import functools

import jax
import jax.numpy as jnp
import numpy as np
from jax.experimental import pallas as pl
from jax.experimental.pallas import tpu as pltpu

BN_EPS = 1e-5


def _vmem_limit_bytes():
    """Generation-aware scoped-VMEM budget (~3/4 of capacity, capped at 100 MiB)."""
    try:
        cap = pltpu.get_tpu_info().vmem_capacity_bytes
    except Exception:
        cap = 64 * 1024 * 1024          # conservative fallback (v7x per-core size)
    return int(min(cap * 3 // 4, 100 * 1024 * 1024))


_VMEM_LIMIT = _vmem_limit_bytes()


def _compiler_params():
    return pltpu.CompilerParams(dimension_semantics=("parallel",),
                                vmem_limit_bytes=_VMEM_LIMIT)


# --------------------------------------------------------------------------- kernels
def _make_conv3x3_stats_kernel(stride, has_shortcut):
    """3x3 conv (stride 1 or 2) as 9 in-kernel tap matmuls (bf16 MXU, f32 acc), plus
    per-channel sum / sum-of-squares rows for training-mode BatchNorm statistics.
    Optionally also the fused 1x1 projection shortcut (reuses the centre tap)."""
    npar = stride * stride

    def kernel(*refs):
        p_refs = refs[:npar]
        w_ref = refs[npar]
        i = npar + 1
        if has_shortcut:
            wsc_ref = refs[i]
            i += 1
        y_ref = refs[i]
        i += 1
        if has_shortcut:
            ysc_ref = refs[i]
            i += 1
        st_ref = refs[i]

        hpar, wpar, cin = p_refs[0].shape
        off = 2 // stride
        ho, wo = hpar - off, wpar - off
        cout = y_ref.shape[-1]

        acc = jnp.zeros((ho * wo, cout), jnp.float32)
        center = None
        for ky in range(3):
            for kx in range(3):
                p = p_refs[(ky % stride) * stride + (kx % stride)]
                oy, ox = ky // stride, kx // stride
                tap = p[oy:oy + ho, ox:ox + wo, :].reshape(ho * wo, cin)
                if ky == 1 and kx == 1:
                    center = tap            # == the 1x1 shortcut's input sampling
                acc = acc + jnp.dot(tap, w_ref[ky * 3 + kx],
                                    preferred_element_type=jnp.float32)

        y_ref[...] = acc.astype(y_ref.dtype)                  # bf16 writeback
        st_ref[0:1, :] = jnp.sum(acc, axis=0, keepdims=True)  # f32 stats from f32 acc
        st_ref[1:2, :] = jnp.sum(acc * acc, axis=0, keepdims=True)

        if has_shortcut:
            ysc = jnp.dot(center, wsc_ref[...], preferred_element_type=jnp.float32)
            ysc_ref[...] = ysc.astype(ysc_ref.dtype)
            st_ref[2:3, :] = jnp.sum(ysc, axis=0, keepdims=True)
            st_ref[3:4, :] = jnp.sum(ysc * ysc, axis=0, keepdims=True)

    return kernel


def _make_affine_kernel(res_mode, apply_relu):
    """out = y*scale + shift  [+ residual (raw bf16, or with its own scale/shift)]
    [+ ReLU].  All element-wise math in f32."""

    def kernel(*refs):
        if res_mode == "affine":
            y_ref, s_ref, t_ref, r_ref, rs_ref, rt_ref, o_ref = refs
        elif res_mode == "raw":
            y_ref, s_ref, t_ref, r_ref, o_ref = refs
        else:
            y_ref, s_ref, t_ref, o_ref = refs

        out = y_ref[...].astype(jnp.float32) * s_ref[...] + t_ref[...]
        if res_mode == "affine":
            out = out + (r_ref[...].astype(jnp.float32) * rs_ref[...] + rt_ref[...])
        elif res_mode == "raw":
            out = out + r_ref[...].astype(jnp.float32)
        if apply_relu:
            out = jnp.maximum(out, 0.0)
        o_ref[...] = out.astype(o_ref.dtype)

    return kernel


# ---------------------------------------------------------------------- pallas wrappers
def conv3x3_bn_stats(parts, w_taps, stride, wsc=None):
    """parts: stride*stride parity images [N, Ho + 2//s, Wo + 2//s, Cin] (bf16).
    w_taps: [9, Cin, Cout] bf16 (pinned / weight-stationary).
    Optional fused 1x1 projection shortcut weight wsc: [Cin, Cout] bf16.
    Returns y [N, Ho*Wo, Cout] bf16 (, ysc bf16) and stats [N, 2|4, Cout] f32."""
    N, hpar, wpar, cin = parts[0].shape
    off = 2 // stride
    ho, wo = hpar - off, wpar - off
    m = ho * wo
    cout = w_taps.shape[-1]
    has_sc = wsc is not None
    ns = 4 if has_sc else 2

    img = lambda n: (n, 0, 0, 0)
    row = lambda n: (n, 0, 0)
    pin3 = lambda n: (0, 0, 0)
    pin2 = lambda n: (0, 0)

    in_specs = [pl.BlockSpec((None, hpar, wpar, cin), img) for _ in parts]
    in_specs.append(pl.BlockSpec((9, cin, cout), pin3))        # pinned weights
    args = list(parts) + [w_taps]
    if has_sc:
        in_specs.append(pl.BlockSpec((cin, cout), pin2))       # pinned shortcut weight
        args.append(wsc)

    out_shape = [jax.ShapeDtypeStruct((N, m, cout), jnp.bfloat16)]
    out_specs = [pl.BlockSpec((None, m, cout), row)]
    if has_sc:
        out_shape.append(jax.ShapeDtypeStruct((N, m, cout), jnp.bfloat16))
        out_specs.append(pl.BlockSpec((None, m, cout), row))
    out_shape.append(jax.ShapeDtypeStruct((N, ns, cout), jnp.float32))
    out_specs.append(pl.BlockSpec((None, ns, cout), row))

    return pl.pallas_call(
        _make_conv3x3_stats_kernel(stride, has_sc),
        out_shape=tuple(out_shape),
        grid=(N,),
        in_specs=in_specs,
        out_specs=tuple(out_specs),
        compiler_params=_compiler_params(),
    )(*args)


def affine_act(y, scale, shift, *, residual=None, res_scale=None, res_shift=None,
               apply_relu=True, out_dtype=jnp.float32):
    """Per-image: y*scale + shift (+ residual [* res_scale + res_shift]) (+ ReLU)."""
    N, m, c = y.shape
    row = lambda n: (n, 0, 0)
    pin = lambda n: (0, 0)

    in_specs = [pl.BlockSpec((None, m, c), row),
                pl.BlockSpec((1, c), pin),
                pl.BlockSpec((1, c), pin)]
    args = [y, scale.reshape(1, c), shift.reshape(1, c)]
    if residual is not None and res_scale is not None:
        mode = "affine"
        in_specs += [pl.BlockSpec((None, m, c), row),
                     pl.BlockSpec((1, c), pin),
                     pl.BlockSpec((1, c), pin)]
        args += [residual, res_scale.reshape(1, c), res_shift.reshape(1, c)]
    elif residual is not None:
        mode = "raw"
        in_specs.append(pl.BlockSpec((None, m, c), row))
        args.append(residual)
    else:
        mode = "none"

    return pl.pallas_call(
        _make_affine_kernel(mode, apply_relu),
        out_shape=jax.ShapeDtypeStruct((N, m, c), out_dtype),
        grid=(N,),
        in_specs=in_specs,
        out_specs=pl.BlockSpec((None, m, c), row),
        compiler_params=_compiler_params(),
    )(*args)


# ------------------------------------------------------------------------------ glue
def _conv_w_to_taps(w):
    """PyTorch conv weight [Cout, Cin, 3, 3] -> tap-major matmul weights [9, Cin, Cout]."""
    cout, cin = w.shape[0], w.shape[1]
    return jnp.transpose(w, (2, 3, 1, 0)).reshape(9, cin, cout).astype(jnp.bfloat16)


def _parity_images(x_nhwc, stride, ho, wo):
    """Zero-pad (conv padding=1) and, for stride 2, parity-decompose so that every
    3x3 tap becomes a static stride-1 slice inside the kernel.  Total bytes ~= input."""
    if stride == 1:
        return [jnp.pad(x_nhwc, ((0, 0), (1, 1), (1, 1), (0, 0)))]
    assert stride == 2
    N, H, W, _ = x_nhwc.shape
    xp = jnp.pad(x_nhwc, ((0, 0), (1, 2 * ho + 1 - H), (1, 2 * wo + 1 - W), (0, 0)))
    return [xp[:, py::2, px::2, :] for py in range(2) for px in range(2)]


def _bn_scale_shift(s, ss, gamma, beta, count):
    """Fold training-mode BatchNorm (batch mean / biased var) into scale/shift."""
    mean = s / count
    var = jnp.maximum(ss / count - mean * mean, 0.0)
    scale = gamma * jax.lax.rsqrt(var + BN_EPS)
    return scale, beta - mean * scale


def init_basic_block_params(key, in_channels, out_channels, stride):
    """Deterministic synthetic init (He-style normal for convs, BN gamma=1 beta=0)."""
    k1, k2, k3 = jax.random.split(key, 3)

    def he(k, shape):
        fan_in = shape[1] * shape[2] * shape[3]
        return (jax.random.normal(k, shape, jnp.float32)
                * jnp.sqrt(2.0 / fan_in)).astype(jnp.float32)

    params = {
        "w1": he(k1, (out_channels, in_channels, 3, 3)),
        "g1": jnp.ones((out_channels,), jnp.float32),
        "b1": jnp.zeros((out_channels,), jnp.float32),
        "w2": he(k2, (out_channels, out_channels, 3, 3)),
        "g2": jnp.ones((out_channels,), jnp.float32),
        "b2": jnp.zeros((out_channels,), jnp.float32),
    }
    if stride != 1 or in_channels != out_channels:
        params["w_sc"] = he(k3, (out_channels, in_channels, 1, 1))
        params["g_sc"] = jnp.ones((out_channels,), jnp.float32)
        params["b_sc"] = jnp.zeros((out_channels,), jnp.float32)
    return params


def basic_block_forward_nhwc(x, params, stride, out_dtype=jnp.float32):
    """Core NHWC forward: x [N, H, W, Cin] f32 -> [N, Ho, Wo, Cout]."""
    N, H, W, Cin = x.shape
    Cout = params["w1"].shape[0]
    Ho = (H + 2 - 3) // stride + 1
    Wo = (W + 2 - 3) // stride + 1
    M = N * Ho * Wo                                  # BN statistics count

    xb = x.astype(jnp.bfloat16)

    # ---- conv1 (3x3, stride) [+ fused 1x1 projection shortcut] + bn1 + relu ---------
    parts1 = _parity_images(xb, stride, Ho, Wo)
    w1 = _conv_w_to_taps(params["w1"])

    if "w_sc" in params:
        wsc = params["w_sc"].reshape(Cout, Cin).T.astype(jnp.bfloat16)
        y1, ysc, st1 = conv3x3_bn_stats(parts1, w1, stride, wsc=wsc)
        st1 = st1.sum(axis=0)                        # [4, Cout] global sums
        s1, t1 = _bn_scale_shift(st1[0], st1[1], params["g1"], params["b1"], M)
        ssc, tsc = _bn_scale_shift(st1[2], st1[3], params["g_sc"], params["b_sc"], M)
    else:
        assert stride == 1 and Cin == Cout, "identity shortcut needs stride=1, Cin==Cout"
        y1, st1 = conv3x3_bn_stats(parts1, w1, stride)
        st1 = st1.sum(axis=0)                        # [2, Cout]
        s1, t1 = _bn_scale_shift(st1[0], st1[1], params["g1"], params["b1"], M)

    out1 = affine_act(y1, s1, t1, apply_relu=True, out_dtype=jnp.bfloat16)

    # ---- conv2 (3x3, stride 1) + bn2 + residual add + relu --------------------------
    parts2 = _parity_images(out1.reshape(N, Ho, Wo, Cout), 1, Ho, Wo)
    w2 = _conv_w_to_taps(params["w2"])
    y2, st2 = conv3x3_bn_stats(parts2, w2, 1)
    st2 = st2.sum(axis=0)
    s2, t2 = _bn_scale_shift(st2[0], st2[1], params["g2"], params["b2"], M)

    if "w_sc" in params:
        out = affine_act(y2, s2, t2, residual=ysc, res_scale=ssc, res_shift=tsc,
                         apply_relu=True, out_dtype=out_dtype)
    else:
        res = xb.reshape(N, H * W, Cin)              # bf16 identity residual
        out = affine_act(y2, s2, t2, residual=res, apply_relu=True,
                         out_dtype=out_dtype)

    return out.reshape(N, Ho, Wo, Cout)


@functools.partial(jax.jit, static_argnames=("stride",))
def basic_block_forward(x_nchw, params, stride):
    """Public wrapper: NCHW in/out to match PyTorch.  Layout conversion happens only
    here; chain blocks via basic_block_forward_nhwc to avoid per-block transposes."""
    x = jnp.transpose(x_nchw, (0, 2, 3, 1)).astype(jnp.float32)
    out = basic_block_forward_nhwc(x, params, stride)
    return jnp.transpose(out, (0, 3, 1, 2))


# ------------------------------------------------------------------------- reference
def _ref_basic_block(x, params, stride):
    """Pure-JAX (XLA) reference with training-mode BatchNorm, NCHW like PyTorch."""
    dn = ("NCHW", "OIHW", "NCHW")

    def bn(y, g, b):
        mean = y.mean(axis=(0, 2, 3), keepdims=True)
        var = y.var(axis=(0, 2, 3), keepdims=True)     # biased, as BN normalization
        return ((y - mean) * jax.lax.rsqrt(var + BN_EPS)
                * g.reshape(1, -1, 1, 1) + b.reshape(1, -1, 1, 1))

    out = jax.lax.conv_general_dilated(x, params["w1"], (stride, stride),
                                       ((1, 1), (1, 1)), dimension_numbers=dn)
    out = jax.nn.relu(bn(out, params["g1"], params["b1"]))
    out = jax.lax.conv_general_dilated(out, params["w2"], (1, 1),
                                       ((1, 1), (1, 1)), dimension_numbers=dn)
    out = bn(out, params["g2"], params["b2"])
    if "w_sc" in params:
        sc = jax.lax.conv_general_dilated(x, params["w_sc"], (stride, stride),
                                          ((0, 0), (0, 0)), dimension_numbers=dn)
        sc = bn(sc, params["g_sc"], params["b_sc"])
    else:
        sc = x
    return jax.nn.relu(out + sc)


if __name__ == "__main__":
    key = jax.random.PRNGKey(0)
    kx, kp1, kp2 = jax.random.split(key, 3)

    x = jax.random.normal(kx, (2, 4, 16, 16), jnp.float32)     # NCHW

    # Case 1: projection shortcut (stride=2, channel expansion) -- stage boundary.
    params_proj = init_basic_block_params(kp1, in_channels=4, out_channels=8, stride=2)
    y_proj = basic_block_forward(x, params_proj, stride=2)
    jax.block_until_ready(y_proj)
    assert y_proj.shape == (2, 8, 8, 8), y_proj.shape
    np.testing.assert_allclose(np.asarray(y_proj),
                               np.asarray(_ref_basic_block(x, params_proj, 2)),
                               rtol=1e-1, atol=1e-1)           # bf16 matmul tolerance

    # Case 2: identity shortcut (stride=1, same channels).
    params_id = init_basic_block_params(kp2, in_channels=4, out_channels=4, stride=1)
    y_id = basic_block_forward(x, params_id, stride=1)
    jax.block_until_ready(y_id)
    assert y_id.shape == (2, 4, 16, 16), y_id.shape
    np.testing.assert_allclose(np.asarray(y_id),
                               np.asarray(_ref_basic_block(x, params_id, 1)),
                               rtol=1e-1, atol=1e-1)

    print("KERNEL_OK")
</pallas_src>

<mosaic_0001>
module attributes {stable_mosaic.version = 11 : i64} {
  func.func @kernel(%arg0: i32, %arg1: memref<1x9x9x4xbf16, #tpu.memory_space<vmem>>, %arg2: memref<1x9x9x4xbf16, #tpu.memory_space<vmem>>, %arg3: memref<1x9x9x4xbf16, #tpu.memory_space<vmem>>, %arg4: memref<1x9x9x4xbf16, #tpu.memory_space<vmem>>, %arg5: memref<9x4x8xbf16, #tpu.memory_space<vmem>>, %arg6: memref<4x8xbf16, #tpu.memory_space<vmem>>, %arg7: memref<1x64x8xbf16, #tpu.memory_space<vmem>>, %arg8: memref<1x64x8xbf16, #tpu.memory_space<vmem>>, %arg9: memref<1x4x8xf32, #tpu.memory_space<vmem>>) attributes {dimension_semantics = [#tpu.dimension_semantics<parallel>], iteration_bounds = array<i64: 2>, scalar_prefetch = 0 : i64, scratch_operands = 0 : i64, tpu.core_type = #tpu.core_type<tc>, window_params = [{transform_indices = @transform_0, window_bounds = array<i64: 1, 9, 9, 4>}, {transform_indices = @transform_1, window_bounds = array<i64: 1, 9, 9, 4>}, {transform_indices = @transform_2, window_bounds = array<i64: 1, 9, 9, 4>}, {transform_indices = @transform_3, window_bounds = array<i64: 1, 9, 9, 4>}, {pipeline_mode = #tpu.pipeline_mode<synchronous>, transform_indices = @transform_4, window_bounds = array<i64: 9, 4, 8>}, {pipeline_mode = #tpu.pipeline_mode<synchronous>, transform_indices = @transform_5, window_bounds = array<i64: 4, 8>}, {transform_indices = @transform_6, window_bounds = array<i64: 1, 64, 8>}, {transform_indices = @transform_7, window_bounds = array<i64: 1, 64, 8>}, {transform_indices = @transform_8, window_bounds = array<i64: 1, 4, 8>}]} {
    %cst = arith.constant 0.000000e+00 : f32
    %0 = vector.broadcast %cst : f32 to vector<64x8xf32>
    %c0 = arith.constant 0 : index
    %c0_0 = arith.constant 0 : index
    %c0_1 = arith.constant 0 : index
    %c0_2 = arith.constant 0 : index
    %1 = vector.load %arg1[%c0, %c0_0, %c0_1, %c0_2] : memref<1x9x9x4xbf16, #tpu.memory_space<vmem>>, vector<1x8x8x4xbf16>
    %2 = vector.shape_cast %1 : vector<1x8x8x4xbf16> to vector<8x8x4xbf16>
    %3 = vector.shape_cast %2 : vector<8x8x4xbf16> to vector<64x4xbf16>
    %c0_3 = arith.constant 0 : index
    %c0_4 = arith.constant 0 : index
    %c0_5 = arith.constant 0 : index
    %4 = vector.load %arg5[%c0_3, %c0_4, %c0_5] : memref<9x4x8xbf16, #tpu.memory_space<vmem>>, vector<1x4x8xbf16>
    %5 = vector.shape_cast %4 : vector<1x4x8xbf16> to vector<4x8xbf16>
    %cst_6 = arith.constant dense<0.000000e+00> : vector<64x8xf32>
    %6 = tpu.matmul %3, %5, %cst_6 {dimension_numbers = #tpu.dot_dimension_numbers<[1], [0], [0], [1], [0, 0, 1, 1], [], []>} : vector<64x4xbf16>, vector<4x8xbf16>, vector<64x8xf32> -> vector<64x8xf32>
    %7 = arith.addf %0, %6 : vector<64x8xf32>
    %c0_7 = arith.constant 0 : index
    %c0_8 = arith.constant 0 : index
    %c0_9 = arith.constant 0 : index
    %c0_10 = arith.constant 0 : index
    %8 = vector.load %arg2[%c0_7, %c0_8, %c0_9, %c0_10] : memref<1x9x9x4xbf16, #tpu.memory_space<vmem>>, vector<1x8x8x4xbf16>
    %9 = vector.shape_cast %8 : vector<1x8x8x4xbf16> to vector<8x8x4xbf16>
    %10 = vector.shape_cast %9 : vector<8x8x4xbf16> to vector<64x4xbf16>
    %c1 = arith.constant 1 : index
    %c0_11 = arith.constant 0 : index
    %c0_12 = arith.constant 0 : index
    %11 = vector.load %arg5[%c1, %c0_11, %c0_12] : memref<9x4x8xbf16, #tpu.memory_space<vmem>>, vector<1x4x8xbf16>
    %12 = vector.shape_cast %11 : vector<1x4x8xbf16> to vector<4x8xbf16>
    %cst_13 = arith.constant dense<0.000000e+00> : vector<64x8xf32>
    %13 = tpu.matmul %10, %12, %cst_13 {dimension_numbers = #tpu.dot_dimension_numbers<[1], [0], [0], [1], [0, 0, 1, 1], [], []>} : vector<64x4xbf16>, vector<4x8xbf16>, vector<64x8xf32> -> vector<64x8xf32>
    %14 = arith.addf %7, %13 : vector<64x8xf32>
    %c0_14 = arith.constant 0 : index
    %c0_15 = arith.constant 0 : index
    %c1_16 = arith.constant 1 : index
    %c0_17 = arith.constant 0 : index
    %15 = vector.load %arg1[%c0_14, %c0_15, %c1_16, %c0_17] : memref<1x9x9x4xbf16, #tpu.memory_space<vmem>>, vector<1x8x8x4xbf16>
    %16 = vector.shape_cast %15 : vector<1x8x8x4xbf16> to vector<8x8x4xbf16>
    %17 = vector.shape_cast %16 : vector<8x8x4xbf16> to vector<64x4xbf16>
    %c2 = arith.constant 2 : index
    %c0_18 = arith.constant 0 : index
    %c0_19 = arith.constant 0 : index
    %18 = vector.load %arg5[%c2, %c0_18, %c0_19] : memref<9x4x8xbf16, #tpu.memory_space<vmem>>, vector<1x4x8xbf16>
    %19 = vector.shape_cast %18 : vector<1x4x8xbf16> to vector<4x8xbf16>
    %cst_20 = arith.constant dense<0.000000e+00> : vector<64x8xf32>
    %20 = tpu.matmul %17, %19, %cst_20 {dimension_numbers = #tpu.dot_dimension_numbers<[1], [0], [0], [1], [0, 0, 1, 1], [], []>} : vector<64x4xbf16>, vector<4x8xbf16>, vector<64x8xf32> -> vector<64x8xf32>
    %21 = arith.addf %14, %20 : vector<64x8xf32>
    %c0_21 = arith.constant 0 : index
    %c0_22 = arith.constant 0 : index
    %c0_23 = arith.constant 0 : index
    %c0_24 = arith.constant 0 : index
    %22 = vector.load %arg3[%c0_21, %c0_22, %c0_23, %c0_24] : memref<1x9x9x4xbf16, #tpu.memory_space<vmem>>, vector<1x8x8x4xbf16>
    %23 = vector.shape_cast %22 : vector<1x8x8x4xbf16> to vector<8x8x4xbf16>
    %24 = vector.shape_cast %23 : vector<8x8x4xbf16> to vector<64x4xbf16>
    %c3 = arith.constant 3 : index
    %c0_25 = arith.constant 0 : index
    %c0_26 = arith.constant 0 : index
    %25 = vector.load %arg5[%c3, %c0_25, %c0_26] : memref<9x4x8xbf16, #tpu.memory_space<vmem>>, vector<1x4x8xbf16>
    %26 = vector.shape_cast %25 : vector<1x4x8xbf16> to vector<4x8xbf16>
    %cst_27 = arith.constant dense<0.000000e+00> : vector<64x8xf32>
    %27 = tpu.matmul %24, %26, %cst_27 {dimension_numbers = #tpu.dot_dimension_numbers<[1], [0], [0], [1], [0, 0, 1, 1], [], []>} : vector<64x4xbf16>, vector<4x8xbf16>, vector<64x8xf32> -> vector<64x8xf32>
    %28 = arith.addf %21, %27 : vector<64x8xf32>
    %c0_28 = arith.constant 0 : index
    %c0_29 = arith.constant 0 : index
    %c0_30 = arith.constant 0 : index
    %c0_31 = arith.constant 0 : index
    %29 = vector.load %arg4[%c0_28, %c0_29, %c0_30, %c0_31] : memref<1x9x9x4xbf16, #tpu.memory_space<vmem>>, vector<1x8x8x4xbf16>
    %30 = vector.shape_cast %29 : vector<1x8x8x4xbf16> to vector<8x8x4xbf16>
    %31 = vector.shape_cast %30 : vector<8x8x4xbf16> to vector<64x4xbf16>
    %c4 = arith.constant 4 : index
    %c0_32 = arith.constant 0 : index
    %c0_33 = arith.constant 0 : index
    %32 = vector.load %arg5[%c4, %c0_32, %c0_33] : memref<9x4x8xbf16, #tpu.memory_space<vmem>>, vector<1x4x8xbf16>
    %33 = vector.shape_cast %32 : vector<1x4x8xbf16> to vector<4x8xbf16>
    %cst_34 = arith.constant dense<0.000000e+00> : vector<64x8xf32>
    %34 = tpu.matmul %31, %33, %cst_34 {dimension_numbers = #tpu.dot_dimension_numbers<[1], [0], [0], [1], [0, 0, 1, 1], [], []>} : vector<64x4xbf16>, vector<4x8xbf16>, vector<64x8xf32> -> vector<64x8xf32>
    %35 = arith.addf %28, %34 : vector<64x8xf32>
    %c0_35 = arith.constant 0 : index
    %c0_36 = arith.constant 0 : index
    %c1_37 = arith.constant 1 : index
    %c0_38 = arith.constant 0 : index
    %36 = vector.load %arg3[%c0_35, %c0_36, %c1_37, %c0_38] : memref<1x9x9x4xbf16, #tpu.memory_space<vmem>>, vector<1x8x8x4xbf16>
    %37 = vector.shape_cast %36 : vector<1x8x8x4xbf16> to vector<8x8x4xbf16>
    %38 = vector.shape_cast %37 : vector<8x8x4xbf16> to vector<64x4xbf16>
    %c5 = arith.constant 5 : index
    %c0_39 = arith.constant 0 : index
    %c0_40 = arith.constant 0 : index
    %39 = vector.load %arg5[%c5, %c0_39, %c0_40] : memref<9x4x8xbf16, #tpu.memory_space<vmem>>, vector<1x4x8xbf16>
    %40 = vector.shape_cast %39 : vector<1x4x8xbf16> to vector<4x8xbf16>
    %cst_41 = arith.constant dense<0.000000e+00> : vector<64x8xf32>
    %41 = tpu.matmul %38, %40, %cst_41 {dimension_numbers = #tpu.dot_dimension_numbers<[1], [0], [0], [1], [0, 0, 1, 1], [], []>} : vector<64x4xbf16>, vector<4x8xbf16>, vector<64x8xf32> -> vector<64x8xf32>
    %42 = arith.addf %35, %41 : vector<64x8xf32>
    %c0_42 = arith.constant 0 : index
    %c1_43 = arith.constant 1 : index
    %c0_44 = arith.constant 0 : index
    %c0_45 = arith.constant 0 : index
    %43 = vector.load %arg1[%c0_42, %c1_43, %c0_44, %c0_45] : memref<1x9x9x4xbf16, #tpu.memory_space<vmem>>, vector<1x8x8x4xbf16>
    %44 = vector.shape_cast %43 : vector<1x8x8x4xbf16> to vector<8x8x4xbf16>
    %45 = vector.shape_cast %44 : vector<8x8x4xbf16> to vector<64x4xbf16>
    %c6 = arith.constant 6 : index
    %c0_46 = arith.constant 0 : index
    %c0_47 = arith.constant 0 : index
    %46 = vector.load %arg5[%c6, %c0_46, %c0_47] : memref<9x4x8xbf16, #tpu.memory_space<vmem>>, vector<1x4x8xbf16>
    %47 = vector.shape_cast %46 : vector<1x4x8xbf16> to vector<4x8xbf16>
    %cst_48 = arith.constant dense<0.000000e+00> : vector<64x8xf32>
    %48 = tpu.matmul %45, %47, %cst_48 {dimension_numbers = #tpu.dot_dimension_numbers<[1], [0], [0], [1], [0, 0, 1, 1], [], []>} : vector<64x4xbf16>, vector<4x8xbf16>, vector<64x8xf32> -> vector<64x8xf32>
    %49 = arith.addf %42, %48 : vector<64x8xf32>
    %c0_49 = arith.constant 0 : index
    %c1_50 = arith.constant 1 : index
    %c0_51 = arith.constant 0 : index
    %c0_52 = arith.constant 0 : index
    %50 = vector.load %arg2[%c0_49, %c1_50, %c0_51, %c0_52] : memref<1x9x9x4xbf16, #tpu.memory_space<vmem>>, vector<1x8x8x4xbf16>
    %51 = vector.shape_cast %50 : vector<1x8x8x4xbf16> to vector<8x8x4xbf16>
    %52 = vector.shape_cast %51 : vector<8x8x4xbf16> to vector<64x4xbf16>
    %c7 = arith.constant 7 : index
    %c0_53 = arith.constant 0 : index
    %c0_54 = arith.constant 0 : index
    %53 = vector.load %arg5[%c7, %c0_53, %c0_54] : memref<9x4x8xbf16, #tpu.memory_space<vmem>>, vector<1x4x8xbf16>
    %54 = vector.shape_cast %53 : vector<1x4x8xbf16> to vector<4x8xbf16>
    %cst_55 = arith.constant dense<0.000000e+00> : vector<64x8xf32>
    %55 = tpu.matmul %52, %54, %cst_55 {dimension_numbers = #tpu.dot_dimension_numbers<[1], [0], [0], [1], [0, 0, 1, 1], [], []>} : vector<64x4xbf16>, vector<4x8xbf16>, vector<64x8xf32> -> vector<64x8xf32>
    %56 = arith.addf %49, %55 : vector<64x8xf32>
    %c0_56 = arith.constant 0 : index
    %c1_57 = arith.constant 1 : index
    %c1_58 = arith.constant 1 : index
    %c0_59 = arith.constant 0 : index
    %57 = vector.load %arg1[%c0_56, %c1_57, %c1_58, %c0_59] : memref<1x9x9x4xbf16, #tpu.memory_space<vmem>>, vector<1x8x8x4xbf16>
    %58 = vector.shape_cast %57 : vector<1x8x8x4xbf16> to vector<8x8x4xbf16>
    %59 = vector.shape_cast %58 : vector<8x8x4xbf16> to vector<64x4xbf16>
    %c8 = arith.constant 8 : index
    %c0_60 = arith.constant 0 : index
    %c0_61 = arith.constant 0 : index
    %60 = vector.load %arg5[%c8, %c0_60, %c0_61] : memref<9x4x8xbf16, #tpu.memory_space<vmem>>, vector<1x4x8xbf16>
    %61 = vector.shape_cast %60 : vector<1x4x8xbf16> to vector<4x8xbf16>
    %cst_62 = arith.constant dense<0.000000e+00> : vector<64x8xf32>
    %62 = tpu.matmul %59, %61, %cst_62 {dimension_numbers = #tpu.dot_dimension_numbers<[1], [0], [0], [1], [0, 0, 1, 1], [], []>} : vector<64x4xbf16>, vector<4x8xbf16>, vector<64x8xf32> -> vector<64x8xf32>
    %63 = arith.addf %56, %62 : vector<64x8xf32>
    %64 = arith.truncf %63 : vector<64x8xf32> to vector<64x8xbf16>
    %c0_63 = arith.constant 0 : index
    %c0_64 = arith.constant 0 : index
    %c0_65 = arith.constant 0 : index
    %65 = vector.load %arg7[%c0_63, %c0_64, %c0_65] : memref<1x64x8xbf16, #tpu.memory_space<vmem>>, vector<1x64x8xbf16>
    %66 = vector.shape_cast %65 : vector<1x64x8xbf16> to vector<64x8xbf16>
    %67 = vector.shape_cast %64 : vector<64x8xbf16> to vector<1x64x8xbf16>
    tpu.vector_store %arg7[%c0_63, %c0_64, %c0_65], %67 {strides = array<i32>} : memref<1x64x8xbf16, #tpu.memory_space<vmem>>, vector<1x64x8xbf16>,
    %cst_66 = arith.constant dense<0.000000e+00> : vector<8xf32>
    %68 = vector.multi_reduction <add>, %63, %cst_66 [0] : vector<64x8xf32> to vector<8xf32>
    %69 = vector.shape_cast %68 : vector<8xf32> to vector<1x8xf32>
    %c0_67 = arith.constant 0 : index
    %c0_68 = arith.constant 0 : index
    %c0_69 = arith.constant 0 : index
    %70 = vector.load %arg9[%c0_67, %c0_68, %c0_69] : memref<1x4x8xf32, #tpu.memory_space<vmem>>, vector<1x1x8xf32>
    %71 = vector.shape_cast %70 : vector<1x1x8xf32> to vector<1x8xf32>
    %72 = vector.shape_cast %69 : vector<1x8xf32> to vector<1x1x8xf32>
    tpu.vector_store %arg9[%c0_67, %c0_68, %c0_69], %72 {strides = array<i32>} : memref<1x4x8xf32, #tpu.memory_space<vmem>>, vector<1x1x8xf32>,
    %73 = arith.mulf %63, %63 : vector<64x8xf32>
    %cst_70 = arith.constant dense<0.000000e+00> : vector<8xf32>
    %74 = vector.multi_reduction <add>, %73, %cst_70 [0] : vector<64x8xf32> to vector<8xf32>
    %75 = vector.shape_cast %74 : vector<8xf32> to vector<1x8xf32>
    %c0_71 = arith.constant 0 : index
    %c1_72 = arith.constant 1 : index
    %c0_73 = arith.constant 0 : index
    %76 = vector.load %arg9[%c0_71, %c1_72, %c0_73] : memref<1x4x8xf32, #tpu.memory_space<vmem>>, vector<1x1x8xf32>
    %77 = vector.shape_cast %76 : vector<1x1x8xf32> to vector<1x8xf32>
    %78 = vector.shape_cast %75 : vector<1x8xf32> to vector<1x1x8xf32>
    tpu.vector_store %arg9[%c0_71, %c1_72, %c0_73], %78 {strides = array<i32>} : memref<1x4x8xf32, #tpu.memory_space<vmem>>, vector<1x1x8xf32>,
    %c0_74 = arith.constant 0 : index
    %c0_75 = arith.constant 0 : index
    %79 = vector.load %arg6[%c0_74, %c0_75] : memref<4x8xbf16, #tpu.memory_space<vmem>>, vector<4x8xbf16>
    %cst_76 = arith.constant dense<0.000000e+00> : vector<64x8xf32>
    %80 = tpu.matmul %31, %79, %cst_76 {dimension_numbers = #tpu.dot_dimension_numbers<[1], [0], [0], [1], [0, 0, 1, 1], [], []>} : vector<64x4xbf16>, vector<4x8xbf16>, vector<64x8xf32> -> vector<64x8xf32>
    %81 = arith.truncf %80 : vector<64x8xf32> to vector<64x8xbf16>
    %c0_77 = arith.constant 0 : index
    %c0_78 = arith.constant 0 : index
    %c0_79 = arith.constant 0 : index
    %82 = vector.load %arg8[%c0_77, %c0_78, %c0_79] : memref<1x64x8xbf16, #tpu.memory_space<vmem>>, vector<1x64x8xbf16>
    %83 = vector.shape_cast %82 : vector<1x64x8xbf16> to vector<64x8xbf16>
    %84 = vector.shape_cast %81 : vector<64x8xbf16> to vector<1x64x8xbf16>
    tpu.vector_store %arg8[%c0_77, %c0_78, %c0_79], %84 {strides = array<i32>} : memref<1x64x8xbf16, #tpu.memory_space<vmem>>, vector<1x64x8xbf16>,
    %cst_80 = arith.constant dense<0.000000e+00> : vector<8xf32>
    %85 = vector.multi_reduction <add>, %80, %cst_80 [0] : vector<64x8xf32> to vector<8xf32>
    %86 = vector.shape_cast %85 : vector<8xf32> to vector<1x8xf32>
    %c0_81 = arith.constant 0 : index
    %c2_82 = arith.constant 2 : index
    %c0_83 = arith.constant 0 : index
    %87 = vector.load %arg9[%c0_81, %c2_82, %c0_83] : memref<1x4x8xf32, #tpu.memory_space<vmem>>, vector<1x1x8xf32>
    %88 = vector.shape_cast %87 : vector<1x1x8xf32> to vector<1x8xf32>
    %89 = vector.shape_cast %86 : vector<1x8xf32> to vector<1x1x8xf32>
    tpu.vector_store %arg9[%c0_81, %c2_82, %c0_83], %89 {strides = array<i32>} : memref<1x4x8xf32, #tpu.memory_space<vmem>>, vector<1x1x8xf32>,
    %90 = arith.mulf %80, %80 : vector<64x8xf32>
    %cst_84 = arith.constant dense<0.000000e+00> : vector<8xf32>
    %91 = vector.multi_reduction <add>, %90, %cst_84 [0] : vector<64x8xf32> to vector<8xf32>
    %92 = vector.shape_cast %91 : vector<8xf32> to vector<1x8xf32>
    %c0_85 = arith.constant 0 : index
    %c3_86 = arith.constant 3 : index
    %c0_87 = arith.constant 0 : index
    %93 = vector.load %arg9[%c0_85, %c3_86, %c0_87] : memref<1x4x8xf32, #tpu.memory_space<vmem>>, vector<1x1x8xf32>
    %94 = vector.shape_cast %93 : vector<1x1x8xf32> to vector<1x8xf32>
    %95 = vector.shape_cast %92 : vector<1x8xf32> to vector<1x1x8xf32>
    tpu.vector_store %arg9[%c0_85, %c3_86, %c0_87], %95 {strides = array<i32>} : memref<1x4x8xf32, #tpu.memory_space<vmem>>, vector<1x1x8xf32>,
    return
  }
  func.func @transform_0(%arg0: i32) -> (i32, i32, i32, i32) {
    %c0_i32 = arith.constant 0 : i32
    %c0_i32_0 = arith.constant 0 : i32
    %c0_i32_1 = arith.constant 0 : i32
    %c0_i32_2 = arith.constant 0 : i32
    return %arg0, %c0_i32, %c0_i32_0, %c0_i32_1 : i32, i32, i32, i32
  }
  func.func @transform_1(%arg0: i32) -> (i32, i32, i32, i32) {
    %c0_i32 = arith.constant 0 : i32
    %c0_i32_0 = arith.constant 0 : i32
    %c0_i32_1 = arith.constant 0 : i32
    %c0_i32_2 = arith.constant 0 : i32
    return %arg0, %c0_i32, %c0_i32_0, %c0_i32_1 : i32, i32, i32, i32
  }
  func.func @transform_2(%arg0: i32) -> (i32, i32, i32, i32) {
    %c0_i32 = arith.constant 0 : i32
    %c0_i32_0 = arith.constant 0 : i32
    %c0_i32_1 = arith.constant 0 : i32
    %c0_i32_2 = arith.constant 0 : i32
    return %arg0, %c0_i32, %c0_i32_0, %c0_i32_1 : i32, i32, i32, i32
  }
  func.func @transform_3(%arg0: i32) -> (i32, i32, i32, i32) {
    %c0_i32 = arith.constant 0 : i32
    %c0_i32_0 = arith.constant 0 : i32
    %c0_i32_1 = arith.constant 0 : i32
    %c0_i32_2 = arith.constant 0 : i32
    return %arg0, %c0_i32, %c0_i32_0, %c0_i32_1 : i32, i32, i32, i32
  }
  func.func @transform_4(%arg0: i32) -> (i32, i32, i32) {
    %c0_i32 = arith.constant 0 : i32
    %c0_i32_0 = arith.constant 0 : i32
    %c0_i32_1 = arith.constant 0 : i32
    %c0_i32_2 = arith.constant 0 : i32
    return %c0_i32, %c0_i32_0, %c0_i32_1 : i32, i32, i32
  }
  func.func @transform_5(%arg0: i32) -> (i32, i32) {
    %c0_i32 = arith.constant 0 : i32
    %c0_i32_0 = arith.constant 0 : i32
    %c0_i32_1 = arith.constant 0 : i32
    return %c0_i32, %c0_i32_0 : i32, i32
  }
  func.func @transform_6(%arg0: i32) -> (i32, i32, i32) {
    %c0_i32 = arith.constant 0 : i32
    %c0_i32_0 = arith.constant 0 : i32
    %c0_i32_1 = arith.constant 0 : i32
    return %arg0, %c0_i32, %c0_i32_0 : i32, i32, i32
  }
  func.func @transform_7(%arg0: i32) -> (i32, i32, i32) {
    %c0_i32 = arith.constant 0 : i32
    %c0_i32_0 = arith.constant 0 : i32
    %c0_i32_1 = arith.constant 0 : i32
    return %arg0, %c0_i32, %c0_i32_0 : i32, i32, i32
  }
  func.func @transform_8(%arg0: i32) -> (i32, i32, i32) {
    %c0_i32 = arith.constant 0 : i32
    %c0_i32_0 = arith.constant 0 : i32
    %c0_i32_1 = arith.constant 0 : i32
    return %arg0, %c0_i32, %c0_i32_0 : i32, i32, i32
  }
}

module attributes {stable_mosaic.version = 11 : i64} {
  func.func @kernel(%arg0: i32, %arg1: memref<1x64x8xbf16, #tpu.memory_space<vmem>>, %arg2: memref<1x8xf32, #tpu.memory_space<vmem>>, %arg3: memref<1x8xf32, #tpu.memory_space<vmem>>, %arg4: memref<1x64x8xbf16, #tpu.memory_space<vmem>>) attributes {dimension_semantics = [#tpu.dimension_semantics<parallel>], iteration_bounds = array<i64: 2>, scalar_prefetch = 0 : i64, scratch_operands = 0 : i64, tpu.core_type = #tpu.core_type<tc>, window_params = [{transform_indices = @transform_0, window_bounds = array<i64: 1, 64, 8>}, {pipeline_mode = #tpu.pipeline_mode<synchronous>, transform_indices = @transform_1, window_bounds = array<i64: 1, 8>}, {pipeline_mode = #tpu.pipeline_mode<synchronous>, transform_indices = @transform_2, window_bounds = array<i64: 1, 8>}, {transform_indices = @transform_3, window_bounds = array<i64: 1, 64, 8>}]} {
    %c0 = arith.constant 0 : index
    %c0_0 = arith.constant 0 : index
    %c0_1 = arith.constant 0 : index
    %0 = vector.load %arg1[%c0, %c0_0, %c0_1] : memref<1x64x8xbf16, #tpu.memory_space<vmem>>, vector<1x64x8xbf16>
    %1 = vector.shape_cast %0 : vector<1x64x8xbf16> to vector<64x8xbf16>
    %2 = arith.extf %1 : vector<64x8xbf16> to vector<64x8xf32>
    %c0_2 = arith.constant 0 : index
    %c0_3 = arith.constant 0 : index
    %3 = vector.load %arg2[%c0_2, %c0_3] : memref<1x8xf32, #tpu.memory_space<vmem>>, vector<1x8xf32>
    %4 = vector.broadcast %3 : vector<1x8xf32> to vector<64x8xf32>
    %5 = arith.mulf %2, %4 : vector<64x8xf32>
    %c0_4 = arith.constant 0 : index
    %c0_5 = arith.constant 0 : index
    %6 = vector.load %arg3[%c0_4, %c0_5] : memref<1x8xf32, #tpu.memory_space<vmem>>, vector<1x8xf32>
    %7 = vector.broadcast %6 : vector<1x8xf32> to vector<64x8xf32>
    %8 = arith.addf %5, %7 : vector<64x8xf32>
    %cst = arith.constant 0.000000e+00 : f32
    %9 = vector.broadcast %cst : f32 to vector<64x8xf32>
    %10 = arith.maximumf %8, %9 : vector<64x8xf32>
    %11 = arith.truncf %10 : vector<64x8xf32> to vector<64x8xbf16>
    %c0_6 = arith.constant 0 : index
    %c0_7 = arith.constant 0 : index
    %c0_8 = arith.constant 0 : index
    %12 = vector.load %arg4[%c0_6, %c0_7, %c0_8] : memref<1x64x8xbf16, #tpu.memory_space<vmem>>, vector<1x64x8xbf16>
    %13 = vector.shape_cast %12 : vector<1x64x8xbf16> to vector<64x8xbf16>
    %14 = vector.shape_cast %11 : vector<64x8xbf16> to vector<1x64x8xbf16>
    tpu.vector_store %arg4[%c0_6, %c0_7, %c0_8], %14 {strides = array<i32>} : memref<1x64x8xbf16, #tpu.memory_space<vmem>>, vector<1x64x8xbf16>,
    return
  }
  func.func @transform_0(%arg0: i32) -> (i32, i32, i32) {
    %c0_i32 = arith.constant 0 : i32
    %c0_i32_0 = arith.constant 0 : i32
    %c0_i32_1 = arith.constant 0 : i32
    return %arg0, %c0_i32, %c0_i32_0 : i32, i32, i32
  }
  func.func @transform_1(%arg0: i32) -> (i32, i32) {
    %c0_i32 = arith.constant 0 : i32
    %c0_i32_0 = arith.constant 0 : i32
    %c0_i32_1 = arith.constant 0 : i32
    return %c0_i32, %c0_i32_0 : i32, i32
  }
  func.func @transform_2(%arg0: i32) -> (i32, i32) {
    %c0_i32 = arith.constant 0 : i32
    %c0_i32_0 = arith.constant 0 : i32
    %c0_i32_1 = arith.constant 0 : i32
    return %c0_i32, %c0_i32_0 : i32, i32
  }
  func.func @transform_3(%arg0: i32) -> (i32, i32, i32) {
    %c0_i32 = arith.constant 0 : i32
    %c0_i32_0 = arith.constant 0 : i32
    %c0_i32_1 = arith.constant 0 : i32
    return %arg0, %c0_i32, %c0_i32_0 : i32, i32, i32
  }
}

module attributes {stable_mosaic.version = 11 : i64} {
  func.func @kernel(%arg0: i32, %arg1: memref<1x10x10x8xbf16, #tpu.memory_space<vmem>>, %arg2: memref<9x8x8xbf16, #tpu.memory_space<vmem>>, %arg3: memref<1x64x8xbf16, #tpu.memory_space<vmem>>, %arg4: memref<1x2x8xf32, #tpu.memory_space<vmem>>) attributes {dimension_semantics = [#tpu.dimension_semantics<parallel>], iteration_bounds = array<i64: 2>, scalar_prefetch = 0 : i64, scratch_operands = 0 : i64, tpu.core_type = #tpu.core_type<tc>, window_params = [{transform_indices = @transform_0, window_bounds = array<i64: 1, 10, 10, 8>}, {pipeline_mode = #tpu.pipeline_mode<synchronous>, transform_indices = @transform_1, window_bounds = array<i64: 9, 8, 8>}, {transform_indices = @transform_2, window_bounds = array<i64: 1, 64, 8>}, {transform_indices = @transform_3, window_bounds = array<i64: 1, 2, 8>}]} {
    %cst = arith.constant 0.000000e+00 : f32
    %0 = vector.broadcast %cst : f32 to vector<64x8xf32>
    %c0 = arith.constant 0 : index
    %c0_0 = arith.constant 0 : index
    %c0_1 = arith.constant 0 : index
    %c0_2 = arith.constant 0 : index
    %1 = vector.load %arg1[%c0, %c0_0, %c0_1, %c0_2] : memref<1x10x10x8xbf16, #tpu.memory_space<vmem>>, vector<1x8x8x8xbf16>
    %2 = vector.shape_cast %1 : vector<1x8x8x8xbf16> to vector<8x8x8xbf16>
    %3 = vector.shape_cast %2 : vector<8x8x8xbf16> to vector<64x8xbf16>
    %c0_3 = arith.constant 0 : index
    %c0_4 = arith.constant 0 : index
    %c0_5 = arith.constant 0 : index
    %4 = vector.load %arg2[%c0_3, %c0_4, %c0_5] : memref<9x8x8xbf16, #tpu.memory_space<vmem>>, vector<1x8x8xbf16>
    %5 = vector.shape_cast %4 : vector<1x8x8xbf16> to vector<8x8xbf16>
    %cst_6 = arith.constant dense<0.000000e+00> : vector<64x8xf32>
    %6 = tpu.matmul %3, %5, %cst_6 {dimension_numbers = #tpu.dot_dimension_numbers<[1], [0], [0], [1], [0, 0, 1, 1], [], []>} : vector<64x8xbf16>, vector<8x8xbf16>, vector<64x8xf32> -> vector<64x8xf32>
    %7 = arith.addf %0, %6 : vector<64x8xf32>
    %c0_7 = arith.constant 0 : index
    %c0_8 = arith.constant 0 : index
    %c1 = arith.constant 1 : index
    %c0_9 = arith.constant 0 : index
    %8 = vector.load %arg1[%c0_7, %c0_8, %c1, %c0_9] : memref<1x10x10x8xbf16, #tpu.memory_space<vmem>>, vector<1x8x8x8xbf16>
    %9 = vector.shape_cast %8 : vector<1x8x8x8xbf16> to vector<8x8x8xbf16>
    %10 = vector.shape_cast %9 : vector<8x8x8xbf16> to vector<64x8xbf16>
    %c1_10 = arith.constant 1 : index
    %c0_11 = arith.constant 0 : index
    %c0_12 = arith.constant 0 : index
    %11 = vector.load %arg2[%c1_10, %c0_11, %c0_12] : memref<9x8x8xbf16, #tpu.memory_space<vmem>>, vector<1x8x8xbf16>
    %12 = vector.shape_cast %11 : vector<1x8x8xbf16> to vector<8x8xbf16>
    %cst_13 = arith.constant dense<0.000000e+00> : vector<64x8xf32>
    %13 = tpu.matmul %10, %12, %cst_13 {dimension_numbers = #tpu.dot_dimension_numbers<[1], [0], [0], [1], [0, 0, 1, 1], [], []>} : vector<64x8xbf16>, vector<8x8xbf16>, vector<64x8xf32> -> vector<64x8xf32>
    %14 = arith.addf %7, %13 : vector<64x8xf32>
    %c0_14 = arith.constant 0 : index
    %c0_15 = arith.constant 0 : index
    %c2 = arith.constant 2 : index
    %c0_16 = arith.constant 0 : index
    %15 = vector.load %arg1[%c0_14, %c0_15, %c2, %c0_16] : memref<1x10x10x8xbf16, #tpu.memory_space<vmem>>, vector<1x8x8x8xbf16>
    %16 = vector.shape_cast %15 : vector<1x8x8x8xbf16> to vector<8x8x8xbf16>
    %17 = vector.shape_cast %16 : vector<8x8x8xbf16> to vector<64x8xbf16>
    %c2_17 = arith.constant 2 : index
    %c0_18 = arith.constant 0 : index
    %c0_19 = arith.constant 0 : index
    %18 = vector.load %arg2[%c2_17, %c0_18, %c0_19] : memref<9x8x8xbf16, #tpu.memory_space<vmem>>, vector<1x8x8xbf16>
    %19 = vector.shape_cast %18 : vector<1x8x8xbf16> to vector<8x8xbf16>
    %cst_20 = arith.constant dense<0.000000e+00> : vector<64x8xf32>
    %20 = tpu.matmul %17, %19, %cst_20 {dimension_numbers = #tpu.dot_dimension_numbers<[1], [0], [0], [1], [0, 0, 1, 1], [], []>} : vector<64x8xbf16>, vector<8x8xbf16>, vector<64x8xf32> -> vector<64x8xf32>
    %21 = arith.addf %14, %20 : vector<64x8xf32>
    %c0_21 = arith.constant 0 : index
    %c1_22 = arith.constant 1 : index
    %c0_23 = arith.constant 0 : index
    %c0_24 = arith.constant 0 : index
    %22 = vector.load %arg1[%c0_21, %c1_22, %c0_23, %c0_24] : memref<1x10x10x8xbf16, #tpu.memory_space<vmem>>, vector<1x8x8x8xbf16>
    %23 = vector.shape_cast %22 : vector<1x8x8x8xbf16> to vector<8x8x8xbf16>
    %24 = vector.shape_cast %23 : vector<8x8x8xbf16> to vector<64x8xbf16>
    %c3 = arith.constant 3 : index
    %c0_25 = arith.constant 0 : index
    %c0_26 = arith.constant 0 : index
    %25 = vector.load %arg2[%c3, %c0_25, %c0_26] : memref<9x8x8xbf16, #tpu.memory_space<vmem>>, vector<1x8x8xbf16>
    %26 = vector.shape_cast %25 : vector<1x8x8xbf16> to vector<8x8xbf16>
    %cst_27 = arith.constant dense<0.000000e+00> : vector<64x8xf32>
    %27 = tpu.matmul %24, %26, %cst_27 {dimension_numbers = #tpu.dot_dimension_numbers<[1], [0], [0], [1], [0, 0, 1, 1], [], []>} : vector<64x8xbf16>, vector<8x8xbf16>, vector<64x8xf32> -> vector<64x8xf32>
    %28 = arith.addf %21, %27 : vector<64x8xf32>
    %c0_28 = arith.constant 0 : index
    %c1_29 = arith.constant 1 : index
    %c1_30 = arith.constant 1 : index
    %c0_31 = arith.constant 0 : index
    %29 = vector.load %arg1[%c0_28, %c1_29, %c1_30, %c0_31] : memref<1x10x10x8xbf16, #tpu.memory_space<vmem>>, vector<1x8x8x8xbf16>
    %30 = vector.shape_cast %29 : vector<1x8x8x8xbf16> to vector<8x8x8xbf16>
    %31 = vector.shape_cast %30 : vector<8x8x8xbf16> to vector<64x8xbf16>
    %c4 = arith.constant 4 : index
    %c0_32 = arith.constant 0 : index
    %c0_33 = arith.constant 0 : index
    %32 = vector.load %arg2[%c4, %c0_32, %c0_33] : memref<9x8x8xbf16, #tpu.memory_space<vmem>>, vector<1x8x8xbf16>
    %33 = vector.shape_cast %32 : vector<1x8x8xbf16> to vector<8x8xbf16>
    %cst_34 = arith.constant dense<0.000000e+00> : vector<64x8xf32>
    %34 = tpu.matmul %31, %33, %cst_34 {dimension_numbers = #tpu.dot_dimension_numbers<[1], [0], [0], [1], [0, 0, 1, 1], [], []>} : vector<64x8xbf16>, vector<8x8xbf16>, vector<64x8xf32> -> vector<64x8xf32>
    %35 = arith.addf %28, %34 : vector<64x8xf32>
    %c0_35 = arith.constant 0 : index
    %c1_36 = arith.constant 1 : index
    %c2_37 = arith.constant 2 : index
    %c0_38 = arith.constant 0 : index
    %36 = vector.load %arg1[%c0_35, %c1_36, %c2_37, %c0_38] : memref<1x10x10x8xbf16, #tpu.memory_space<vmem>>, vector<1x8x8x8xbf16>
    %37 = vector.shape_cast %36 : vector<1x8x8x8xbf16> to vector<8x8x8xbf16>
    %38 = vector.shape_cast %37 : vector<8x8x8xbf16> to vector<64x8xbf16>
    %c5 = arith.constant 5 : index
    %c0_39 = arith.constant 0 : index
    %c0_40 = arith.constant 0 : index
    %39 = vector.load %arg2[%c5, %c0_39, %c0_40] : memref<9x8x8xbf16, #tpu.memory_space<vmem>>, vector<1x8x8xbf16>
    %40 = vector.shape_cast %39 : vector<1x8x8xbf16> to vector<8x8xbf16>
    %cst_41 = arith.constant dense<0.000000e+00> : vector<64x8xf32>
    %41 = tpu.matmul %38, %40, %cst_41 {dimension_numbers = #tpu.dot_dimension_numbers<[1], [0], [0], [1], [0, 0, 1, 1], [], []>} : vector<64x8xbf16>, vector<8x8xbf16>, vector<64x8xf32> -> vector<64x8xf32>
    %42 = arith.addf %35, %41 : vector<64x8xf32>
    %c0_42 = arith.constant 0 : index
    %c2_43 = arith.constant 2 : index
    %c0_44 = arith.constant 0 : index
    %c0_45 = arith.constant 0 : index
    %43 = vector.load %arg1[%c0_42, %c2_43, %c0_44, %c0_45] : memref<1x10x10x8xbf16, #tpu.memory_space<vmem>>, vector<1x8x8x8xbf16>
    %44 = vector.shape_cast %43 : vector<1x8x8x8xbf16> to vector<8x8x8xbf16>
    %45 = vector.shape_cast %44 : vector<8x8x8xbf16> to vector<64x8xbf16>
    %c6 = arith.constant 6 : index
    %c0_46 = arith.constant 0 : index
    %c0_47 = arith.constant 0 : index
    %46 = vector.load %arg2[%c6, %c0_46, %c0_47] : memref<9x8x8xbf16, #tpu.memory_space<vmem>>, vector<1x8x8xbf16>
    %47 = vector.shape_cast %46 : vector<1x8x8xbf16> to vector<8x8xbf16>
    %cst_48 = arith.constant dense<0.000000e+00> : vector<64x8xf32>
    %48 = tpu.matmul %45, %47, %cst_48 {dimension_numbers = #tpu.dot_dimension_numbers<[1], [0], [0], [1], [0, 0, 1, 1], [], []>} : vector<64x8xbf16>, vector<8x8xbf16>, vector<64x8xf32> -> vector<64x8xf32>
    %49 = arith.addf %42, %48 : vector<64x8xf32>
    %c0_49 = arith.constant 0 : index
    %c2_50 = arith.constant 2 : index
    %c1_51 = arith.constant 1 : index
    %c0_52 = arith.constant 0 : index
    %50 = vector.load %arg1[%c0_49, %c2_50, %c1_51, %c0_52] : memref<1x10x10x8xbf16, #tpu.memory_space<vmem>>, vector<1x8x8x8xbf16>
    %51 = vector.shape_cast %50 : vector<1x8x8x8xbf16> to vector<8x8x8xbf16>
    %52 = vector.shape_cast %51 : vector<8x8x8xbf16> to vector<64x8xbf16>
    %c7 = arith.constant 7 : index
    %c0_53 = arith.constant 0 : index
    %c0_54 = arith.constant 0 : index
    %53 = vector.load %arg2[%c7, %c0_53, %c0_54] : memref<9x8x8xbf16, #tpu.memory_space<vmem>>, vector<1x8x8xbf16>
    %54 = vector.shape_cast %53 : vector<1x8x8xbf16> to vector<8x8xbf16>
    %cst_55 = arith.constant dense<0.000000e+00> : vector<64x8xf32>
    %55 = tpu.matmul %52, %54, %cst_55 {dimension_numbers = #tpu.dot_dimension_numbers<[1], [0], [0], [1], [0, 0, 1, 1], [], []>} : vector<64x8xbf16>, vector<8x8xbf16>, vector<64x8xf32> -> vector<64x8xf32>
    %56 = arith.addf %49, %55 : vector<64x8xf32>
    %c0_56 = arith.constant 0 : index
    %c2_57 = arith.constant 2 : index
    %c2_58 = arith.constant 2 : index
    %c0_59 = arith.constant 0 : index
    %57 = vector.load %arg1[%c0_56, %c2_57, %c2_58, %c0_59] : memref<1x10x10x8xbf16, #tpu.memory_space<vmem>>, vector<1x8x8x8xbf16>
    %58 = vector.shape_cast %57 : vector<1x8x8x8xbf16> to vector<8x8x8xbf16>
    %59 = vector.shape_cast %58 : vector<8x8x8xbf16> to vector<64x8xbf16>
    %c8 = arith.constant 8 : index
    %c0_60 = arith.constant 0 : index
    %c0_61 = arith.constant 0 : index
    %60 = vector.load %arg2[%c8, %c0_60, %c0_61] : memref<9x8x8xbf16, #tpu.memory_space<vmem>>, vector<1x8x8xbf16>
    %61 = vector.shape_cast %60 : vector<1x8x8xbf16> to vector<8x8xbf16>
    %cst_62 = arith.constant dense<0.000000e+00> : vector<64x8xf32>
    %62 = tpu.matmul %59, %61, %cst_62 {dimension_numbers = #tpu.dot_dimension_numbers<[1], [0], [0], [1], [0, 0, 1, 1], [], []>} : vector<64x8xbf16>, vector<8x8xbf16>, vector<64x8xf32> -> vector<64x8xf32>
    %63 = arith.addf %56, %62 : vector<64x8xf32>
    %64 = arith.truncf %63 : vector<64x8xf32> to vector<64x8xbf16>
    %c0_63 = arith.constant 0 : index
    %c0_64 = arith.constant 0 : index
    %c0_65 = arith.constant 0 : index
    %65 = vector.load %arg3[%c0_63, %c0_64, %c0_65] : memref<1x64x8xbf16, #tpu.memory_space<vmem>>, vector<1x64x8xbf16>
    %66 = vector.shape_cast %65 : vector<1x64x8xbf16> to vector<64x8xbf16>
    %67 = vector.shape_cast %64 : vector<64x8xbf16> to vector<1x64x8xbf16>
    tpu.vector_store %arg3[%c0_63, %c0_64, %c0_65], %67 {strides = array<i32>} : memref<1x64x8xbf16, #tpu.memory_space<vmem>>, vector<1x64x8xbf16>,
    %cst_66 = arith.constant dense<0.000000e+00> : vector<8xf32>
    %68 = vector.multi_reduction <add>, %63, %cst_66 [0] : vector<64x8xf32> to vector<8xf32>
    %69 = vector.shape_cast %68 : vector<8xf32> to vector<1x8xf32>
    %c0_67 = arith.constant 0 : index
    %c0_68 = arith.constant 0 : index
    %c0_69 = arith.constant 0 : index
    %70 = vector.load %arg4[%c0_67, %c0_68, %c0_69] : memref<1x2x8xf32, #tpu.memory_space<vmem>>, vector<1x1x8xf32>
    %71 = vector.shape_cast %70 : vector<1x1x8xf32> to vector<1x8xf32>
    %72 = vector.shape_cast %69 : vector<1x8xf32> to vector<1x1x8xf32>
    tpu.vector_store %arg4[%c0_67, %c0_68, %c0_69], %72 {strides = array<i32>} : memref<1x2x8xf32, #tpu.memory_space<vmem>>, vector<1x1x8xf32>,
    %73 = arith.mulf %63, %63 : vector<64x8xf32>
    %cst_70 = arith.constant dense<0.000000e+00> : vector<8xf32>
    %74 = vector.multi_reduction <add>, %73, %cst_70 [0] : vector<64x8xf32> to vector<8xf32>
    %75 = vector.shape_cast %74 : vector<8xf32> to vector<1x8xf32>
    %c0_71 = arith.constant 0 : index
    %c1_72 = arith.constant 1 : index
    %c0_73 = arith.constant 0 : index
    %76 = vector.load %arg4[%c0_71, %c1_72, %c0_73] : memref<1x2x8xf32, #tpu.memory_space<vmem>>, vector<1x1x8xf32>
    %77 = vector.shape_cast %76 : vector<1x1x8xf32> to vector<1x8xf32>
    %78 = vector.shape_cast %75 : vector<1x8xf32> to vector<1x1x8xf32>
    tpu.vector_store %arg4[%c0_71, %c1_72, %c0_73], %78 {strides = array<i32>} : memref<1x2x8xf32, #tpu.memory_space<vmem>>, vector<1x1x8xf32>,
    return
  }
  func.func @transform_0(%arg0: i32) -> (i32, i32, i32, i32) {
    %c0_i32 = arith.constant 0 : i32
    %c0_i32_0 = arith.constant 0 : i32
    %c0_i32_1 = arith.constant 0 : i32
    %c0_i32_2 = arith.constant 0 : i32
    return %arg0, %c0_i32, %c0_i32_0, %c0_i32_1 : i32, i32, i32, i32
  }
  func.func @transform_1(%arg0: i32) -> (i32, i32, i32) {
    %c0_i32 = arith.constant 0 : i32
    %c0_i32_0 = arith.constant 0 : i32
    %c0_i32_1 = arith.constant 0 : i32
    %c0_i32_2 = arith.constant 0 : i32
    return %c0_i32, %c0_i32_0, %c0_i32_1 : i32, i32, i32
  }
  func.func @transform_2(%arg0: i32) -> (i32, i32, i32) {
    %c0_i32 = arith.constant 0 : i32
    %c0_i32_0 = arith.constant 0 : i32
    %c0_i32_1 = arith.constant 0 : i32
    return %arg0, %c0_i32, %c0_i32_0 : i32, i32, i32
  }
  func.func @transform_3(%arg0: i32) -> (i32, i32, i32) {
    %c0_i32 = arith.constant 0 : i32
    %c0_i32_0 = arith.constant 0 : i32
    %c0_i32_1 = arith.constant 0 : i32
    return %arg0, %c0_i32, %c0_i32_0 : i32, i32, i32
  }
}

module attributes {stable_mosaic.version = 11 : i64} {
  func.func @kernel(%arg0: i32, %arg1: memref<1x64x8xbf16, #tpu.memory_space<vmem>>, %arg2: memref<1x8xf32, #tpu.memory_space<vmem>>, %arg3: memref<1x8xf32, #tpu.memory_space<vmem>>, %arg4: memref<1x64x8xbf16, #tpu.memory_space<vmem>>, %arg5: memref<1x8xf32, #tpu.memory_space<vmem>>, %arg6: memref<1x8xf32, #tpu.memory_space<vmem>>, %arg7: memref<1x64x8xf32, #tpu.memory_space<vmem>>) attributes {dimension_semantics = [#tpu.dimension_semantics<parallel>], iteration_bounds = array<i64: 2>, scalar_prefetch = 0 : i64, scratch_operands = 0 : i64, tpu.core_type = #tpu.core_type<tc>, window_params = [{transform_indices = @transform_0, window_bounds = array<i64: 1, 64, 8>}, {pipeline_mode = #tpu.pipeline_mode<synchronous>, transform_indices = @transform_1, window_bounds = array<i64: 1, 8>}, {pipeline_mode = #tpu.pipeline_mode<synchronous>, transform_indices = @transform_2, window_bounds = array<i64: 1, 8>}, {transform_indices = @transform_3, window_bounds = array<i64: 1, 64, 8>}, {pipeline_mode = #tpu.pipeline_mode<synchronous>, transform_indices = @transform_4, window_bounds = array<i64: 1, 8>}, {pipeline_mode = #tpu.pipeline_mode<synchronous>, transform_indices = @transform_5, window_bounds = array<i64: 1, 8>}, {transform_indices = @transform_6, window_bounds = array<i64: 1, 64, 8>}]} {
    %c0 = arith.constant 0 : index
    %c0_0 = arith.constant 0 : index
    %c0_1 = arith.constant 0 : index
    %0 = vector.load %arg1[%c0, %c0_0, %c0_1] : memref<1x64x8xbf16, #tpu.memory_space<vmem>>, vector<1x64x8xbf16>
    %1 = vector.shape_cast %0 : vector<1x64x8xbf16> to vector<64x8xbf16>
    %2 = arith.extf %1 : vector<64x8xbf16> to vector<64x8xf32>
    %c0_2 = arith.constant 0 : index
    %c0_3 = arith.constant 0 : index
    %3 = vector.load %arg2[%c0_2, %c0_3] : memref<1x8xf32, #tpu.memory_space<vmem>>, vector<1x8xf32>
    %4 = vector.broadcast %3 : vector<1x8xf32> to vector<64x8xf32>
    %5 = arith.mulf %2, %4 : vector<64x8xf32>
    %c0_4 = arith.constant 0 : index
    %c0_5 = arith.constant 0 : index
    %6 = vector.load %arg3[%c0_4, %c0_5] : memref<1x8xf32, #tpu.memory_space<vmem>>, vector<1x8xf32>
    %7 = vector.broadcast %6 : vector<1x8xf32> to vector<64x8xf32>
    %8 = arith.addf %5, %7 : vector<64x8xf32>
    %c0_6 = arith.constant 0 : index
    %c0_7 = arith.constant 0 : index
    %c0_8 = arith.constant 0 : index
    %9 = vector.load %arg4[%c0_6, %c0_7, %c0_8] : memref<1x64x8xbf16, #tpu.memory_space<vmem>>, vector<1x64x8xbf16>
    %10 = vector.shape_cast %9 : vector<1x64x8xbf16> to vector<64x8xbf16>
    %11 = arith.extf %10 : vector<64x8xbf16> to vector<64x8xf32>
    %c0_9 = arith.constant 0 : index
    %c0_10 = arith.constant 0 : index
    %12 = vector.load %arg5[%c0_9, %c0_10] : memref<1x8xf32, #tpu.memory_space<vmem>>, vector<1x8xf32>
    %13 = vector.broadcast %12 : vector<1x8xf32> to vector<64x8xf32>
    %14 = arith.mulf %11, %13 : vector<64x8xf32>
    %c0_11 = arith.constant 0 : index
    %c0_12 = arith.constant 0 : index
    %15 = vector.load %arg6[%c0_11, %c0_12] : memref<1x8xf32, #tpu.memory_space<vmem>>, vector<1x8xf32>
    %16 = vector.broadcast %15 : vector<1x8xf32> to vector<64x8xf32>
    %17 = arith.addf %14, %16 : vector<64x8xf32>
    %18 = arith.addf %8, %17 : vector<64x8xf32>
    %cst = arith.constant 0.000000e+00 : f32
    %19 = vector.broadcast %cst : f32 to vector<64x8xf32>
    %20 = arith.maximumf %18, %19 : vector<64x8xf32>
    %c0_13 = arith.constant 0 : index
    %c0_14 = arith.constant 0 : index
    %c0_15 = arith.constant 0 : index
    %21 = vector.load %arg7[%c0_13, %c0_14, %c0_15] : memref<1x64x8xf32, #tpu.memory_space<vmem>>, vector<1x64x8xf32>
    %22 = vector.shape_cast %21 : vector<1x64x8xf32> to vector<64x8xf32>
    %23 = vector.shape_cast %20 : vector<64x8xf32> to vector<1x64x8xf32>
    tpu.vector_store %arg7[%c0_13, %c0_14, %c0_15], %23 {strides = array<i32>} : memref<1x64x8xf32, #tpu.memory_space<vmem>>, vector<1x64x8xf32>,
    return
  }
  func.func @transform_0(%arg0: i32) -> (i32, i32, i32) {
    %c0_i32 = arith.constant 0 : i32
    %c0_i32_0 = arith.constant 0 : i32
    %c0_i32_1 = arith.constant 0 : i32
    return %arg0, %c0_i32, %c0_i32_0 : i32, i32, i32
  }
  func.func @transform_1(%arg0: i32) -> (i32, i32) {
    %c0_i32 = arith.constant 0 : i32
    %c0_i32_0 = arith.constant 0 : i32
    %c0_i32_1 = arith.constant 0 : i32
    return %c0_i32, %c0_i32_0 : i32, i32
  }
  func.func @transform_2(%arg0: i32) -> (i32, i32) {
    %c0_i32 = arith.constant 0 : i32
    %c0_i32_0 = arith.constant 0 : i32
    %c0_i32_1 = arith.constant 0 : i32
    return %c0_i32, %c0_i32_0 : i32, i32
  }
  func.func @transform_3(%arg0: i32) -> (i32, i32, i32) {
    %c0_i32 = arith.constant 0 : i32
    %c0_i32_0 = arith.constant 0 : i32
    %c0_i32_1 = arith.constant 0 : i32
    return %arg0, %c0_i32, %c0_i32_0 : i32, i32, i32
  }
  func.func @transform_4(%arg0: i32) -> (i32, i32) {
    %c0_i32 = arith.constant 0 : i32
    %c0_i32_0 = arith.constant 0 : i32
    %c0_i32_1 = arith.constant 0 : i32
    return %c0_i32, %c0_i32_0 : i32, i32
  }
  func.func @transform_5(%arg0: i32) -> (i32, i32) {
    %c0_i32 = arith.constant 0 : i32
    %c0_i32_0 = arith.constant 0 : i32
    %c0_i32_1 = arith.constant 0 : i32
    return %c0_i32, %c0_i32_0 : i32, i32
  }
  func.func @transform_6(%arg0: i32) -> (i32, i32, i32) {
    %c0_i32 = arith.constant 0 : i32
    %c0_i32_0 = arith.constant 0 : i32
    %c0_i32_1 = arith.constant 0 : i32
    return %arg0, %c0_i32, %c0_i32_0 : i32, i32, i32
  }
}

</mosaic_0001>

<llo_original>
// kernel: basic_block_forward.5
$region0: #{basic_block_forward.5}
  #allocation0 [shape = 'u32[]', space=smem, size = 0x4, offset = 0x4, fixed_abs, tag = 'smem constant byte address 0x4 - core index']
  #allocation1 [shape = 'u32[72,128]{1,0:T(1,128)}', space=vmem, size = 0x9000, scoped, tag = 'internal scratch']
  %s0 = inlined_call_operand.vmem [shape: bf16[2,64,8], index: 0, kind: input, shape index: {}]
  %s1 = inlined_call_operand.vmem [shape: f32[1,8], index: 1, kind: input, shape index: {}]
  %s2 = inlined_call_operand.vmem [shape: f32[1,8], index: 2, kind: input, shape index: {}]
  %s3 = inlined_call_operand.vmem [shape: bf16[2,64,8], index: 3, kind: output, shape index: {}]
  %s4 = sld [smem:[#allocation0]]
  $region45: #{basic_block_forward.5} parent=0
    _
  %s6 = ssub.s32 1, %s4
  %s7 = scalar_select 0, %s6, %s4
  loop: start=0, step=1, limit=4
  $region2: #{basic_block_forward.5} parent=0 // loop_pre_header
    _
  $region3: #{basic_block_forward.5} parent=0 // loop_header
    %s9 = sphi 0, %s13
    %p10 = scmp.ge.s32.totalorder %s9, 4
    %s19 = sphi 0, %s21
    %s22 = sphi 0, %s19
    %s23 = sphi 0, %s22
    %s39 = sphi 0, %s23
    %s43 = sphi 0, %s43
    %s45 = sphi 0, %s43
    %s46 = sphi 0, %s45
    %s60 = sphi 0, %s46
    %s64 = sphi 0, %s64
    %s66 = sphi 0, %s64
    %s67 = sphi 0, %s66
    %s81 = sphi 0, %s67
    %s87 = sphi 0, %s89
    %s90 = sphi 0, %s87
    %s91 = sphi 0, %s90
    %s107 = sphi 0, %s91
  $region4: #{basic_block_forward.5} parent=0 // loop_header_branch
    %12 = sbr.rel (%p10) target = $region8
  $region5: #{basic_block_forward.5} parent=0 // loop_body
    %s14 = ssub.s32 %s9, 1
    %s15 = ssub.s32 %s9, 2
    %s16 = sadd.s32 %s9, 1
    %s17 = ssub.s32 %s9, %s16
    %p18 = scmp.eq.s32.totalorder %s17, 0
    %s20 = sadd.s32 %s19, 1
    %s21 = scalar_select %p18, %s19, %s20
    %p24 = pneg %p18
    %p25 = scmp.eq.s32.totalorder %s9, 1
    %p26 = por %p24, %p25
    %p27 = scmp.ne.s32.totalorder %s19, %s22
    %p28 = scmp.eq.s32.totalorder %s9, 0
    %p29 = por %p27, %p28
    %p30 = scmp.ne.s32.totalorder %s19, %s22
    %p31 = scmp.eq.s32.totalorder %s14, 1
    %p32 = por %p30, %p31
    %p33 = scmp.ne.s32.totalorder %s22, %s23
    %p34 = scmp.eq.s32.totalorder %s14, 0
    %p35 = por %p33, %p34
    %p36 = scmp.ne.s32.totalorder %s22, %s23
    %p37 = scmp.eq.s32.totalorder %s15, 1
    %p38 = por %p36, %p37
    %p40 = scmp.ne.s32.totalorder %s23, %s39
    %p41 = scmp.eq.s32.totalorder %s15, 0
    %p42 = por %p40, %p41
    %s44 = sadd.s32 %s43, 1
    %p47 = scmp.eq.s32.totalorder %s9, 1
    %p48 = scmp.ne.s32.totalorder %s43, %s45
    %p49 = scmp.eq.s32.totalorder %s9, 0
    %p50 = por %p48, %p49
    %p51 = scmp.ne.s32.totalorder %s43, %s45
    %p52 = scmp.eq.s32.totalorder %s14, 1
    %p53 = por %p51, %p52
    %p54 = scmp.ne.s32.totalorder %s45, %s46
    %p55 = scmp.eq.s32.totalorder %s14, 0
    %p56 = por %p54, %p55
    %p57 = scmp.ne.s32.totalorder %s45, %s46
    %p58 = scmp.eq.s32.totalorder %s15, 1
    %p59 = por %p57, %p58
    %p61 = scmp.ne.s32.totalorder %s46, %s60
    %p62 = scmp.eq.s32.totalorder %s15, 0
    %p63 = por %p61, %p62
    %s65 = sadd.s32 %s64, 1
    %p68 = scmp.eq.s32.totalorder %s9, 1
    %p69 = scmp.ne.s32.totalorder %s64, %s66
    %p70 = scmp.eq.s32.totalorder %s9, 0
    %p71 = por %p69, %p70
    %p72 = scmp.ne.s32.totalorder %s64, %s66
    %p73 = scmp.eq.s32.totalorder %s14, 1
    %p74 = por %p72, %p73
    %p75 = scmp.ne.s32.totalorder %s66, %s67
    %p76 = scmp.eq.s32.totalorder %s14, 0
    %p77 = por %p75, %p76
    %p78 = scmp.ne.s32.totalorder %s66, %s67
    %p79 = scmp.eq.s32.totalorder %s15, 1
    %p80 = por %p78, %p79
    %p82 = scmp.ne.s32.totalorder %s67, %s81
    %p83 = scmp.eq.s32.totalorder %s15, 0
    %p84 = por %p82, %p83
    %s85 = ssub.s32 %s9, %s16
    %p86 = scmp.eq.s32.totalorder %s85, 0
    %s88 = sadd.s32 %s87, 1
    %s89 = scalar_select %p86, %s87, %s88
    %p92 = pneg %p86
    %p93 = scmp.eq.s32.totalorder %s9, 1
    %p94 = por %p92, %p93
    %p95 = scmp.ne.s32.totalorder %s87, %s90
    %p96 = scmp.eq.s32.totalorder %s9, 0
    %p97 = por %p95, %p96
    %p98 = scmp.ne.s32.totalorder %s87, %s90
    %p99 = scmp.eq.s32.totalorder %s14, 1
    %p100 = por %p98, %p99
    %p101 = scmp.ne.s32.totalorder %s90, %s91
    %p102 = scmp.eq.s32.totalorder %s14, 0
    %p103 = por %p101, %p102
    %p104 = scmp.ne.s32.totalorder %s90, %s91
    %p105 = scmp.eq.s32.totalorder %s15, 1
    %p106 = por %p104, %p105
    %p108 = scmp.ne.s32.totalorder %s91, %s107
    %p109 = scmp.eq.s32.totalorder %s15, 0
    %p110 = por %p108, %p109
    %p111 = scmp.le.s32.totalorder 1, %s9
    %p112 = scmp.lt.s32.totalorder %s9, 3
    %p113 = pnand %p111, %p112
    %p114 = pneg %p113
    // Predicated region
    $region9: #{basic_block_forward.5} parent=5 // pred_check
      _
    $region10: #{basic_block_forward.5} parent=5 // pred_check_branch
      %116 = sbr.rel (%p113) target = $region12
    $region11: #{basic_block_forward.5} parent=5 // pred_region
      %s117 = ssub.s32 %s9, 1
      // Predicated region
      $region13: #{basic_block_forward.5} parent=11 // pred_check
        %p118 = pneg %p56
      $region14: #{basic_block_forward.5} parent=11 // pred_check_branch
        %120 = sbr.rel (%p118) target = $region16
      $region15: #{basic_block_forward.5} parent=11 // pred_region
        _
      $region16: #{basic_block_forward.5} parent=11 // pred_fallthru
        _
      // Predicated region
      $region17: #{basic_block_forward.5} parent=11 // pred_check
        %p121 = pneg %p77
      $region18: #{basic_block_forward.5} parent=11 // pred_check_branch
        %123 = sbr.rel (%p121) target = $region20
      $region19: #{basic_block_forward.5} parent=11 // pred_region
        _
      $region20: #{basic_block_forward.5} parent=11 // pred_fallthru
        _
    $region12: #{basic_block_forward.5} parent=5 // pred_fallthru
      _
    %p124 = scmp.lt.s32.totalorder %s9, 2
    // Predicated region
    $region21: #{basic_block_forward.5} parent=5 // pred_check
      %p125 = pneg %p124
    $region22: #{basic_block_forward.5} parent=5 // pred_check_branch
      %127 = sbr.rel (%p125) target = $region24
    $region23: #{basic_block_forward.5} parent=5 // pred_region
      // Predicated region
      $region25: #{basic_block_forward.5} parent=23 // pred_check
        %p128 = pneg %p29
      $region26: #{basic_block_forward.5} parent=23 // pred_check_branch
        %130 = sbr.rel (%p128) target = $region28
      $region27: #{basic_block_forward.5} parent=23 // pred_region
        %p131 = scmp.lt.s32.totalorder %s9, 1
        %s132 = scalar_select %p131, %s9, 1
        %s133 = smul.addr %s132, 8
        %s134 = smul.addr %s133, 4
        %s135 = scalar_lea.vmem %s0, %s134
      $region28: #{basic_block_forward.5} parent=23 // pred_fallthru
        _
    $region24: #{basic_block_forward.5} parent=5 // pred_fallthru
      _
    %p136 = scmp.le.s32.totalorder 1, %s9
    %p137 = scmp.lt.s32.totalorder %s9, 3
    %p138 = pnand %p136, %p137
    %p139 = pneg %p138
    // Predicated region
    $region29: #{basic_block_forward.5} parent=5 // pred_check
      _
    $region30: #{basic_block_forward.5} parent=5 // pred_check_branch
      %141 = sbr.rel (%p138) target = $region32
    $region31: #{basic_block_forward.5} parent=5 // pred_region
      %s142 = ssub.s32 %s9, 1
      %p143 = scmp.lt.s32.totalorder %s14, 1
      %s144 = scalar_select %p143, %s14, 1
      %s145 = smul.addr %s144, 8
      %s146 = smul.addr %s145, 4
      %s147 = scalar_lea.vmem %s0, %s146
      %p148 = pneg %p35
      %p149 = pneg %p32
      %p150 = pneg %p56
      %p151 = pneg %p53
      %p152 = pneg %p77
      %p153 = pneg %p74
      %p154 = pneg %p103
      %p155 = pneg %p100
      %p156 = scmp.lt.s32.totalorder %s14, 1
      %s157 = scalar_select %p156, %s14, 1
      %s158 = smul.addr %s157, 8
      %s159 = smul.addr %s158, 4
      %s160 = scalar_lea.vmem %s3, %s159
      %p161 = scmp.lt.s32.totalorder %s14, 1
      %s162 = scalar_select %p161, %s14, 1
      %s163 = smul.addr %s162, 8
      %s164 = smul.addr %s163, 4
      %s165 = scalar_lea.vmem %s0, %s164
      %p166 = scmp.lt.s32.totalorder %s14, 1
      %s167 = scalar_select %p166, %s14, 1
      %s168 = smul.addr %s167, 8
      %s169 = smul.addr %s168, 4
      %s170 = scalar_lea.vmem %s3, %s169
      %v171 = vld [vmem:[%s165] sm:$0xf]
      %v172 = vld [vmem:[%s165 + $0x4] sm:$0xf]
      %v173 = vld [vmem:[%s165 + $0x8] sm:$0xf]
      %v174 = vld [vmem:[%s165 + $0xc] sm:$0xf]
      %v175 = vld [vmem:[%s165 + $0x10] sm:$0xf]
      %v176 = vld [vmem:[%s165 + $0x14] sm:$0xf]
      %v177 = vld [vmem:[%s165 + $0x18] sm:$0xf]
      %v178 = vld [vmem:[%s165 + $0x1c] sm:$0xf]
      %v179 = vunpack.c.l.bf16 %v171
      %v180 = vunpack.c.l.bf16 %v172
      %v181 = vunpack.c.l.bf16 %v173
      %v182 = vunpack.c.l.bf16 %v174
      %v183 = vunpack.c.l.bf16 %v175
      %v184 = vunpack.c.l.bf16 %v176
      %v185 = vunpack.c.l.bf16 %v177
      %v186 = vunpack.c.l.bf16 %v178
      %v187 = vld [vmem:[%s1] sm:$0x1]
      %v189 = vperm.slane %v187, 0
      %v191 = vmul.f32 %v179, %v189
      %v192 = vmul.f32 %v180, %v189
      %v193 = vmul.f32 %v181, %v189
      %v194 = vmul.f32 %v182, %v189
      %v195 = vmul.f32 %v183, %v189
      %v196 = vmul.f32 %v184, %v189
      %v197 = vmul.f32 %v185, %v189
      %v198 = vmul.f32 %v186, %v189
      %v199 = vld [vmem:[%s2] sm:$0x1]
      %v201 = vperm.slane %v199, 0
      %v203 = vadd.f32 %v191, %v201
      %v204 = vadd.f32 %v192, %v201
      %v205 = vadd.f32 %v193, %v201
      %v206 = vadd.f32 %v194, %v201
      %v207 = vadd.f32 %v195, %v201
      %v208 = vadd.f32 %v196, %v201
      %v209 = vadd.f32 %v197, %v201
      %v210 = vadd.f32 %v198, %v201
      %v211 = vmax.f32 %v203, 0.0
      %v212 = vmax.f32 %v204, 0.0
      %v213 = vmax.f32 %v205, 0.0
      %v214 = vmax.f32 %v206, 0.0
      %v215 = vmax.f32 %v207, 0.0
      %v216 = vmax.f32 %v208, 0.0
      %v217 = vmax.f32 %v209, 0.0
      %v218 = vmax.f32 %v210, 0.0
      %v219 = vpack.c.bf16 %v211, %v211
      %v220 = vpack.c.bf16 %v212, %v212
      %v221 = vpack.c.bf16 %v213, %v213
      %v222 = vpack.c.bf16 %v214, %v214
      %v223 = vpack.c.bf16 %v215, %v215
      %v224 = vpack.c.bf16 %v216, %v216
      %v225 = vpack.c.bf16 %v217, %v217
      %v226 = vpack.c.bf16 %v218, %v218
      %vm227 = vcmask 60416
      %228 = vst.msk [vmem:[%s170] sm:$0xf] %vm227, %v219
      %229 = vst.msk [vmem:[%s170 + $0x4] sm:$0xf] %vm227, %v220
      %230 = vst.msk [vmem:[%s170 + $0x8] sm:$0xf] %vm227, %v221
      %231 = vst.msk [vmem:[%s170 + $0xc] sm:$0xf] %vm227, %v222
      %232 = vst.msk [vmem:[%s170 + $0x10] sm:$0xf] %vm227, %v223
      %233 = vst.msk [vmem:[%s170 + $0x14] sm:$0xf] %vm227, %v224
      %234 = vst.msk [vmem:[%s170 + $0x18] sm:$0xf] %vm227, %v225
      %235 = vst.msk [vmem:[%s170 + $0x1c] sm:$0xf] %vm227, %v226
      %p236 = scmp.lt.s32.totalorder %s14, 1
      %s237 = scalar_select %p236, %s14, 1
      %s238 = smul.addr %s237, 8
      %s239 = smul.addr %s238, 4
      %s240 = scalar_lea.vmem %s3, %s239
      // Predicated region
      $region33: #{basic_block_forward.5} parent=31 // pred_check
        %p241 = pneg %p100
      $region34: #{basic_block_forward.5} parent=31 // pred_check_branch
        %243 = sbr.rel (%p241) target = $region36
      $region35: #{basic_block_forward.5} parent=31 // pred_region
        _
      $region36: #{basic_block_forward.5} parent=31 // pred_fallthru
        _
    $region32: #{basic_block_forward.5} parent=5 // pred_fallthru
      _
    %p244 = scmp.le.s32.totalorder 2, %s9
    // Predicated region
    $region37: #{basic_block_forward.5} parent=5 // pred_check
      %p245 = pneg %p244
    $region38: #{basic_block_forward.5} parent=5 // pred_check_branch
      %247 = sbr.rel (%p245) target = $region40
    $region39: #{basic_block_forward.5} parent=5 // pred_region
      %s248 = ssub.s32 %s9, 2
      // Predicated region
      $region41: #{basic_block_forward.5} parent=39 // pred_check
        %p249 = pneg %p106
      $region42: #{basic_block_forward.5} parent=39 // pred_check_branch
        %251 = sbr.rel (%p249) target = $region44
      $region43: #{basic_block_forward.5} parent=39 // pred_region
        %p252 = scmp.lt.s32.totalorder %s15, 1
        %s253 = scalar_select %p252, %s15, 1
        %s254 = smul.addr %s253, 8
        %s255 = smul.addr %s254, 4
        %s256 = scalar_lea.vmem %s3, %s255
      $region44: #{basic_block_forward.5} parent=39 // pred_fallthru
        _
    $region40: #{basic_block_forward.5} parent=5 // pred_fallthru
      _
  $region6: #{basic_block_forward.5} parent=0 // loop_footer
    %s13 = sadd.s32 1, %s9
  $region7: #{basic_block_forward.5} parent=0 // loop_footer_branch
    %8 = sbr.rel target = $region3
  $region8: #{basic_block_forward.5} parent=0 // loop_exit
    _

// kernel: basic_block_forward.7
$region0: #{basic_block_forward.7}
  #allocation0 [shape = 'u32[]', space=smem, size = 0x4, offset = 0x4, fixed_abs, tag = 'smem constant byte address 0x4 - core index']
  #allocation1 [shape = 'u32[72,128]{1,0:T(1,128)}', space=vmem, size = 0x9000, scoped, tag = 'internal scratch']
  %s0 = inlined_call_operand.vmem [shape: bf16[2,64,8], index: 0, kind: input, shape index: {}]
  %s1 = inlined_call_operand.vmem [shape: f32[1,8], index: 1, kind: input, shape index: {}]
  %s2 = inlined_call_operand.vmem [shape: f32[1,8], index: 2, kind: input, shape index: {}]
  %s3 = inlined_call_operand.vmem [shape: bf16[2,64,8], index: 3, kind: input, shape index: {}]
  %s4 = inlined_call_operand.vmem [shape: f32[1,8], index: 4, kind: input, shape index: {}]
  %s5 = inlined_call_operand.vmem [shape: f32[1,8], index: 5, kind: input, shape index: {}]
  %s6 = inlined_call_operand.vmem [shape: f32[2,64,8], index: 6, kind: output, shape index: {}]
  %s7 = sld [smem:[#allocation0]]
  $region57: #{basic_block_forward.7} parent=0
    _
  %s9 = ssub.s32 1, %s7
  %s10 = scalar_select 0, %s9, %s7
  loop: start=0, step=1, limit=4
  $region2: #{basic_block_forward.7} parent=0 // loop_pre_header
    _
  $region3: #{basic_block_forward.7} parent=0 // loop_header
    %s12 = sphi 0, %s16
    %p13 = scmp.ge.s32.totalorder %s12, 4
    %s22 = sphi 0, %s24
    %s25 = sphi 0, %s22
    %s26 = sphi 0, %s25
    %s42 = sphi 0, %s26
    %s46 = sphi 0, %s46
    %s48 = sphi 0, %s46
    %s49 = sphi 0, %s48
    %s63 = sphi 0, %s49
    %s67 = sphi 0, %s67
    %s69 = sphi 0, %s67
    %s70 = sphi 0, %s69
    %s84 = sphi 0, %s70
    %s90 = sphi 0, %s92
    %s93 = sphi 0, %s90
    %s94 = sphi 0, %s93
    %s110 = sphi 0, %s94
    %s114 = sphi 0, %s114
    %s116 = sphi 0, %s114
    %s117 = sphi 0, %s116
    %s131 = sphi 0, %s117
    %s135 = sphi 0, %s135
    %s137 = sphi 0, %s135
    %s138 = sphi 0, %s137
    %s152 = sphi 0, %s138
    %s158 = sphi 0, %s160
    %s161 = sphi 0, %s158
    %s162 = sphi 0, %s161
    %s178 = sphi 0, %s162
  $region4: #{basic_block_forward.7} parent=0 // loop_header_branch
    %15 = sbr.rel (%p13) target = $region8
  $region5: #{basic_block_forward.7} parent=0 // loop_body
    %s17 = ssub.s32 %s12, 1
    %s18 = ssub.s32 %s12, 2
    %s19 = sadd.s32 %s12, 1
    %s20 = ssub.s32 %s12, %s19
    %p21 = scmp.eq.s32.totalorder %s20, 0
    %s23 = sadd.s32 %s22, 1
    %s24 = scalar_select %p21, %s22, %s23
    %p27 = pneg %p21
    %p28 = scmp.eq.s32.totalorder %s12, 1
    %p29 = por %p27, %p28
    %p30 = scmp.ne.s32.totalorder %s22, %s25
    %p31 = scmp.eq.s32.totalorder %s12, 0
    %p32 = por %p30, %p31
    %p33 = scmp.ne.s32.totalorder %s22, %s25
    %p34 = scmp.eq.s32.totalorder %s17, 1
    %p35 = por %p33, %p34
    %p36 = scmp.ne.s32.totalorder %s25, %s26
    %p37 = scmp.eq.s32.totalorder %s17, 0
    %p38 = por %p36, %p37
    %p39 = scmp.ne.s32.totalorder %s25, %s26
    %p40 = scmp.eq.s32.totalorder %s18, 1
    %p41 = por %p39, %p40
    %p43 = scmp.ne.s32.totalorder %s26, %s42
    %p44 = scmp.eq.s32.totalorder %s18, 0
    %p45 = por %p43, %p44
    %s47 = sadd.s32 %s46, 1
    %p50 = scmp.eq.s32.totalorder %s12, 1
    %p51 = scmp.ne.s32.totalorder %s46, %s48
    %p52 = scmp.eq.s32.totalorder %s12, 0
    %p53 = por %p51, %p52
    %p54 = scmp.ne.s32.totalorder %s46, %s48
    %p55 = scmp.eq.s32.totalorder %s17, 1
    %p56 = por %p54, %p55
    %p57 = scmp.ne.s32.totalorder %s48, %s49
    %p58 = scmp.eq.s32.totalorder %s17, 0
    %p59 = por %p57, %p58
    %p60 = scmp.ne.s32.totalorder %s48, %s49
    %p61 = scmp.eq.s32.totalorder %s18, 1
    %p62 = por %p60, %p61
    %p64 = scmp.ne.s32.totalorder %s49, %s63
    %p65 = scmp.eq.s32.totalorder %s18, 0
    %p66 = por %p64, %p65
    %s68 = sadd.s32 %s67, 1
    %p71 = scmp.eq.s32.totalorder %s12, 1
    %p72 = scmp.ne.s32.totalorder %s67, %s69
    %p73 = scmp.eq.s32.totalorder %s12, 0
    %p74 = por %p72, %p73
    %p75 = scmp.ne.s32.totalorder %s67, %s69
    %p76 = scmp.eq.s32.totalorder %s17, 1
    %p77 = por %p75, %p76
    %p78 = scmp.ne.s32.totalorder %s69, %s70
    %p79 = scmp.eq.s32.totalorder %s17, 0
    %p80 = por %p78, %p79
    %p81 = scmp.ne.s32.totalorder %s69, %s70
    %p82 = scmp.eq.s32.totalorder %s18, 1
    %p83 = por %p81, %p82
    %p85 = scmp.ne.s32.totalorder %s70, %s84
    %p86 = scmp.eq.s32.totalorder %s18, 0
    %p87 = por %p85, %p86
    %s88 = ssub.s32 %s12, %s19
    %p89 = scmp.eq.s32.totalorder %s88, 0
    %s91 = sadd.s32 %s90, 1
    %s92 = scalar_select %p89, %s90, %s91
    %p95 = pneg %p89
    %p96 = scmp.eq.s32.totalorder %s12, 1
    %p97 = por %p95, %p96
    %p98 = scmp.ne.s32.totalorder %s90, %s93
    %p99 = scmp.eq.s32.totalorder %s12, 0
    %p100 = por %p98, %p99
    %p101 = scmp.ne.s32.totalorder %s90, %s93
    %p102 = scmp.eq.s32.totalorder %s17, 1
    %p103 = por %p101, %p102
    %p104 = scmp.ne.s32.totalorder %s93, %s94
    %p105 = scmp.eq.s32.totalorder %s17, 0
    %p106 = por %p104, %p105
    %p107 = scmp.ne.s32.totalorder %s93, %s94
    %p108 = scmp.eq.s32.totalorder %s18, 1
    %p109 = por %p107, %p108
    %p111 = scmp.ne.s32.totalorder %s94, %s110
    %p112 = scmp.eq.s32.totalorder %s18, 0
    %p113 = por %p111, %p112
    %s115 = sadd.s32 %s114, 1
    %p118 = scmp.eq.s32.totalorder %s12, 1
    %p119 = scmp.ne.s32.totalorder %s114, %s116
    %p120 = scmp.eq.s32.totalorder %s12, 0
    %p121 = por %p119, %p120
    %p122 = scmp.ne.s32.totalorder %s114, %s116
    %p123 = scmp.eq.s32.totalorder %s17, 1
    %p124 = por %p122, %p123
    %p125 = scmp.ne.s32.totalorder %s116, %s117
    %p126 = scmp.eq.s32.totalorder %s17, 0
    %p127 = por %p125, %p126
    %p128 = scmp.ne.s32.totalorder %s116, %s117
    %p129 = scmp.eq.s32.totalorder %s18, 1
    %p130 = por %p128, %p129
    %p132 = scmp.ne.s32.totalorder %s117, %s131
    %p133 = scmp.eq.s32.totalorder %s18, 0
    %p134 = por %p132, %p133
    %s136 = sadd.s32 %s135, 1
    %p139 = scmp.eq.s32.totalorder %s12, 1
    %p140 = scmp.ne.s32.totalorder %s135, %s137
    %p141 = scmp.eq.s32.totalorder %s12, 0
    %p142 = por %p140, %p141
    %p143 = scmp.ne.s32.totalorder %s135, %s137
    %p144 = scmp.eq.s32.totalorder %s17, 1
    %p145 = por %p143, %p144
    %p146 = scmp.ne.s32.totalorder %s137, %s138
    %p147 = scmp.eq.s32.totalorder %s17, 0
    %p148 = por %p146, %p147
    %p149 = scmp.ne.s32.totalorder %s137, %s138
    %p150 = scmp.eq.s32.totalorder %s18, 1
    %p151 = por %p149, %p150
    %p153 = scmp.ne.s32.totalorder %s138, %s152
    %p154 = scmp.eq.s32.totalorder %s18, 0
    %p155 = por %p153, %p154
    %s156 = ssub.s32 %s12, %s19
    %p157 = scmp.eq.s32.totalorder %s156, 0
    %s159 = sadd.s32 %s158, 1
    %s160 = scalar_select %p157, %s158, %s159
    %p163 = pneg %p157
    %p164 = scmp.eq.s32.totalorder %s12, 1
    %p165 = por %p163, %p164
    %p166 = scmp.ne.s32.totalorder %s158, %s161
    %p167 = scmp.eq.s32.totalorder %s12, 0
    %p168 = por %p166, %p167
    %p169 = scmp.ne.s32.totalorder %s158, %s161
    %p170 = scmp.eq.s32.totalorder %s17, 1
    %p171 = por %p169, %p170
    %p172 = scmp.ne.s32.totalorder %s161, %s162
    %p173 = scmp.eq.s32.totalorder %s17, 0
    %p174 = por %p172, %p173
    %p175 = scmp.ne.s32.totalorder %s161, %s162
    %p176 = scmp.eq.s32.totalorder %s18, 1
    %p177 = por %p175, %p176
    %p179 = scmp.ne.s32.totalorder %s162, %s178
    %p180 = scmp.eq.s32.totalorder %s18, 0
    %p181 = por %p179, %p180
    %p182 = scmp.le.s32.totalorder 1, %s12
    %p183 = scmp.lt.s32.totalorder %s12, 3
    %p184 = pnand %p182, %p183
    %p185 = pneg %p184
    // Predicated region
    $region9: #{basic_block_forward.7} parent=5 // pred_check
      _
    $region10: #{basic_block_forward.7} parent=5 // pred_check_branch
      %187 = sbr.rel (%p184) target = $region12
    $region11: #{basic_block_forward.7} parent=5 // pred_region
      %s188 = ssub.s32 %s12, 1
      // Predicated region
      $region13: #{basic_block_forward.7} parent=11 // pred_check
        %p189 = pneg %p59
      $region14: #{basic_block_forward.7} parent=11 // pred_check_branch
        %191 = sbr.rel (%p189) target = $region16
      $region15: #{basic_block_forward.7} parent=11 // pred_region
        _
      $region16: #{basic_block_forward.7} parent=11 // pred_fallthru
        _
      // Predicated region
      $region17: #{basic_block_forward.7} parent=11 // pred_check
        %p192 = pneg %p80
      $region18: #{basic_block_forward.7} parent=11 // pred_check_branch
        %194 = sbr.rel (%p192) target = $region20
      $region19: #{basic_block_forward.7} parent=11 // pred_region
        _
      $region20: #{basic_block_forward.7} parent=11 // pred_fallthru
        _
      // Predicated region
      $region21: #{basic_block_forward.7} parent=11 // pred_check
        %p195 = pneg %p127
      $region22: #{basic_block_forward.7} parent=11 // pred_check_branch
        %197 = sbr.rel (%p195) target = $region24
      $region23: #{basic_block_forward.7} parent=11 // pred_region
        _
      $region24: #{basic_block_forward.7} parent=11 // pred_fallthru
        _
      // Predicated region
      $region25: #{basic_block_forward.7} parent=11 // pred_check
        %p198 = pneg %p148
      $region26: #{basic_block_forward.7} parent=11 // pred_check_branch
        %200 = sbr.rel (%p198) target = $region28
      $region27: #{basic_block_forward.7} parent=11 // pred_region
        _
      $region28: #{basic_block_forward.7} parent=11 // pred_fallthru
        _
    $region12: #{basic_block_forward.7} parent=5 // pred_fallthru
      _
    %p201 = scmp.lt.s32.totalorder %s12, 2
    // Predicated region
    $region29: #{basic_block_forward.7} parent=5 // pred_check
      %p202 = pneg %p201
    $region30: #{basic_block_forward.7} parent=5 // pred_check_branch
      %204 = sbr.rel (%p202) target = $region32
    $region31: #{basic_block_forward.7} parent=5 // pred_region
      // Predicated region
      $region33: #{basic_block_forward.7} parent=31 // pred_check
        %p205 = pneg %p32
      $region34: #{basic_block_forward.7} parent=31 // pred_check_branch
        %207 = sbr.rel (%p205) target = $region36
      $region35: #{basic_block_forward.7} parent=31 // pred_region
        %p208 = scmp.lt.s32.totalorder %s12, 1
        %s209 = scalar_select %p208, %s12, 1
        %s210 = smul.addr %s209, 8
        %s211 = smul.addr %s210, 4
        %s212 = scalar_lea.vmem %s0, %s211
      $region36: #{basic_block_forward.7} parent=31 // pred_fallthru
        _
      // Predicated region
      $region37: #{basic_block_forward.7} parent=31 // pred_check
        %p213 = pneg %p100
      $region38: #{basic_block_forward.7} parent=31 // pred_check_branch
        %215 = sbr.rel (%p213) target = $region40
      $region39: #{basic_block_forward.7} parent=31 // pred_region
        %p216 = scmp.lt.s32.totalorder %s12, 1
        %s217 = scalar_select %p216, %s12, 1
        %s218 = smul.addr %s217, 8
        %s219 = smul.addr %s218, 4
        %s220 = scalar_lea.vmem %s3, %s219
      $region40: #{basic_block_forward.7} parent=31 // pred_fallthru
        _
    $region32: #{basic_block_forward.7} parent=5 // pred_fallthru
      _
    %p221 = scmp.le.s32.totalorder 1, %s12
    %p222 = scmp.lt.s32.totalorder %s12, 3
    %p223 = pnand %p221, %p222
    %p224 = pneg %p223
    // Predicated region
    $region41: #{basic_block_forward.7} parent=5 // pred_check
      _
    $region42: #{basic_block_forward.7} parent=5 // pred_check_branch
      %226 = sbr.rel (%p223) target = $region44
    $region43: #{basic_block_forward.7} parent=5 // pred_region
      %s227 = ssub.s32 %s12, 1
      %p228 = scmp.lt.s32.totalorder %s17, 1
      %s229 = scalar_select %p228, %s17, 1
      %s230 = smul.addr %s229, 8
      %s231 = smul.addr %s230, 4
      %s232 = scalar_lea.vmem %s0, %s231
      %p233 = pneg %p38
      %p234 = pneg %p35
      %p235 = pneg %p59
      %p236 = pneg %p56
      %p237 = pneg %p80
      %p238 = pneg %p77
      %p239 = scmp.lt.s32.totalorder %s17, 1
      %s240 = scalar_select %p239, %s17, 1
      %s241 = smul.addr %s240, 8
      %s242 = smul.addr %s241, 4
      %s243 = scalar_lea.vmem %s3, %s242
      %p244 = pneg %p106
      %p245 = pneg %p103
      %p246 = pneg %p127
      %p247 = pneg %p124
      %p248 = pneg %p148
      %p249 = pneg %p145
      %p250 = pneg %p174
      %p251 = pneg %p171
      %p252 = scmp.lt.s32.totalorder %s17, 1
      %s253 = scalar_select %p252, %s17, 1
      %s254 = smul.addr %s253, 8
      %s255 = smul.addr %s254, 8
      %s256 = scalar_lea.vmem %s6, %s255
      %p257 = scmp.lt.s32.totalorder %s17, 1
      %s258 = scalar_select %p257, %s17, 1
      %s259 = smul.addr %s258, 8
      %s260 = smul.addr %s259, 4
      %s261 = scalar_lea.vmem %s0, %s260
      %p262 = scmp.lt.s32.totalorder %s17, 1
      %s263 = scalar_select %p262, %s17, 1
      %s264 = smul.addr %s263, 8
      %s265 = smul.addr %s264, 4
      %s266 = scalar_lea.vmem %s3, %s265
      %p267 = scmp.lt.s32.totalorder %s17, 1
      %s268 = scalar_select %p267, %s17, 1
      %s269 = smul.addr %s268, 8
      %s270 = smul.addr %s269, 8
      %s271 = scalar_lea.vmem %s6, %s270
      %v272 = vld [vmem:[%s261] sm:$0xf]
      %v273 = vld [vmem:[%s261 + $0x4] sm:$0xf]
      %v274 = vld [vmem:[%s261 + $0x8] sm:$0xf]
      %v275 = vld [vmem:[%s261 + $0xc] sm:$0xf]
      %v276 = vld [vmem:[%s261 + $0x10] sm:$0xf]
      %v277 = vld [vmem:[%s261 + $0x14] sm:$0xf]
      %v278 = vld [vmem:[%s261 + $0x18] sm:$0xf]
      %v279 = vld [vmem:[%s261 + $0x1c] sm:$0xf]
      %v280 = vunpack.c.l.bf16 %v272
      %v281 = vunpack.c.l.bf16 %v273
      %v282 = vunpack.c.l.bf16 %v274
      %v283 = vunpack.c.l.bf16 %v275
      %v284 = vunpack.c.l.bf16 %v276
      %v285 = vunpack.c.l.bf16 %v277
      %v286 = vunpack.c.l.bf16 %v278
      %v287 = vunpack.c.l.bf16 %v279
      %v288 = vld [vmem:[%s1] sm:$0x1]
      %v290 = vperm.slane %v288, 0
      %v292 = vmul.f32 %v280, %v290
      %v293 = vmul.f32 %v281, %v290
      %v294 = vmul.f32 %v282, %v290
      %v295 = vmul.f32 %v283, %v290
      %v296 = vmul.f32 %v284, %v290
      %v297 = vmul.f32 %v285, %v290
      %v298 = vmul.f32 %v286, %v290
      %v299 = vmul.f32 %v287, %v290
      %v300 = vld [vmem:[%s2] sm:$0x1]
      %v302 = vperm.slane %v300, 0
      %v304 = vadd.f32 %v292, %v302
      %v305 = vadd.f32 %v293, %v302
      %v306 = vadd.f32 %v294, %v302
      %v307 = vadd.f32 %v295, %v302
      %v308 = vadd.f32 %v296, %v302
      %v309 = vadd.f32 %v297, %v302
      %v310 = vadd.f32 %v298, %v302
      %v311 = vadd.f32 %v299, %v302
      %v312 = vld [vmem:[%s266] sm:$0xf]
      %v313 = vld [vmem:[%s266 + $0x4] sm:$0xf]
      %v314 = vld [vmem:[%s266 + $0x8] sm:$0xf]
      %v315 = vld [vmem:[%s266 + $0xc] sm:$0xf]
      %v316 = vld [vmem:[%s266 + $0x10] sm:$0xf]
      %v317 = vld [vmem:[%s266 + $0x14] sm:$0xf]
      %v318 = vld [vmem:[%s266 + $0x18] sm:$0xf]
      %v319 = vld [vmem:[%s266 + $0x1c] sm:$0xf]
      %v320 = vunpack.c.l.bf16 %v312
      %v321 = vunpack.c.l.bf16 %v313
      %v322 = vunpack.c.l.bf16 %v314
      %v323 = vunpack.c.l.bf16 %v315
      %v324 = vunpack.c.l.bf16 %v316
      %v325 = vunpack.c.l.bf16 %v317
      %v326 = vunpack.c.l.bf16 %v318
      %v327 = vunpack.c.l.bf16 %v319
      %v328 = vld [vmem:[%s4] sm:$0x1]
      %v330 = vperm.slane %v328, 0
      %v332 = vmul.f32 %v320, %v330
      %v333 = vmul.f32 %v321, %v330
      %v334 = vmul.f32 %v322, %v330
      %v335 = vmul.f32 %v323, %v330
      %v336 = vmul.f32 %v324, %v330
      %v337 = vmul.f32 %v325, %v330
      %v338 = vmul.f32 %v326, %v330
      %v339 = vmul.f32 %v327, %v330
      %v340 = vld [vmem:[%s5] sm:$0x1]
      %v342 = vperm.slane %v340, 0
      %v344 = vadd.f32 %v332, %v342
      %v345 = vadd.f32 %v333, %v342
      %v346 = vadd.f32 %v334, %v342
      %v347 = vadd.f32 %v335, %v342
      %v348 = vadd.f32 %v336, %v342
      %v349 = vadd.f32 %v337, %v342
      %v350 = vadd.f32 %v338, %v342
      %v351 = vadd.f32 %v339, %v342
      %v352 = vadd.f32 %v304, %v344
      %v353 = vadd.f32 %v305, %v345
      %v354 = vadd.f32 %v306, %v346
      %v355 = vadd.f32 %v307, %v347
      %v356 = vadd.f32 %v308, %v348
      %v357 = vadd.f32 %v309, %v349
      %v358 = vadd.f32 %v310, %v350
      %v359 = vadd.f32 %v311, %v351
      %v360 = vmax.f32 %v352, 0.0
      %v361 = vmax.f32 %v353, 0.0
      %v362 = vmax.f32 %v354, 0.0
      %v363 = vmax.f32 %v355, 0.0
      %v364 = vmax.f32 %v356, 0.0
      %v365 = vmax.f32 %v357, 0.0
      %v366 = vmax.f32 %v358, 0.0
      %v367 = vmax.f32 %v359, 0.0
      %vm368 = vcmask 64512
      %369 = vst.msk [vmem:[%s271] sm:$0xff] %vm368, %v360
      %370 = vst.msk [vmem:[%s271 + $0x8] sm:$0xff] %vm368, %v361
      %371 = vst.msk [vmem:[%s271 + $0x10] sm:$0xff] %vm368, %v362
      %372 = vst.msk [vmem:[%s271 + $0x18] sm:$0xff] %vm368, %v363
      %373 = vst.msk [vmem:[%s271 + $0x20] sm:$0xff] %vm368, %v364
      %374 = vst.msk [vmem:[%s271 + $0x28] sm:$0xff] %vm368, %v365
      %375 = vst.msk [vmem:[%s271 + $0x30] sm:$0xff] %vm368, %v366
      %376 = vst.msk [vmem:[%s271 + $0x38] sm:$0xff] %vm368, %v367
      %p377 = scmp.lt.s32.totalorder %s17, 1
      %s378 = scalar_select %p377, %s17, 1
      %s379 = smul.addr %s378, 8
      %s380 = smul.addr %s379, 8
      %s381 = scalar_lea.vmem %s6, %s380
      // Predicated region
      $region45: #{basic_block_forward.7} parent=43 // pred_check
        %p382 = pneg %p171
      $region46: #{basic_block_forward.7} parent=43 // pred_check_branch
        %384 = sbr.rel (%p382) target = $region48
      $region47: #{basic_block_forward.7} parent=43 // pred_region
        _
      $region48: #{basic_block_forward.7} parent=43 // pred_fallthru
        _
    $region44: #{basic_block_forward.7} parent=5 // pred_fallthru
      _
    %p385 = scmp.le.s32.totalorder 2, %s12
    // Predicated region
    $region49: #{basic_block_forward.7} parent=5 // pred_check
      %p386 = pneg %p385
    $region50: #{basic_block_forward.7} parent=5 // pred_check_branch
      %388 = sbr.rel (%p386) target = $region52
    $region51: #{basic_block_forward.7} parent=5 // pred_region
      %s389 = ssub.s32 %s12, 2
      // Predicated region
      $region53: #{basic_block_forward.7} parent=51 // pred_check
        %p390 = pneg %p177
      $region54: #{basic_block_forward.7} parent=51 // pred_check_branch
        %392 = sbr.rel (%p390) target = $region56
      $region55: #{basic_block_forward.7} parent=51 // pred_region
        %p393 = scmp.lt.s32.totalorder %s18, 1
        %s394 = scalar_select %p393, %s18, 1
        %s395 = smul.addr %s394, 8
        %s396 = smul.addr %s395, 8
        %s397 = scalar_lea.vmem %s6, %s396
      $region56: #{basic_block_forward.7} parent=51 // pred_fallthru
        _
    $region52: #{basic_block_forward.7} parent=5 // pred_fallthru
      _
  $region6: #{basic_block_forward.7} parent=0 // loop_footer
    %s16 = sadd.s32 1, %s12
  $region7: #{basic_block_forward.7} parent=0 // loop_footer_branch
    %11 = sbr.rel target = $region3
  $region8: #{basic_block_forward.7} parent=0 // loop_exit
    _

// kernel: basic_block_forward.4
$region0: #{basic_block_forward.4}
  #allocation0 [shape = 'u32[]', space=smem, size = 0x4, offset = 0x4, fixed_abs, tag = 'smem constant byte address 0x4 - core index']
  #allocation1 [shape = 'u32[72,128]{1,0:T(1,128)}', space=vmem, size = 0x9000, scoped, tag = 'internal scratch']
  %s0 = inlined_call_operand.vmem [shape: bf16[2,9,9,4], index: 0, kind: input, shape index: {}]
  %s1 = inlined_call_operand.vmem [shape: bf16[2,9,9,4], index: 1, kind: input, shape index: {}]
  %s2 = inlined_call_operand.vmem [shape: bf16[2,9,9,4], index: 2, kind: input, shape index: {}]
  %s3 = inlined_call_operand.vmem [shape: bf16[2,9,9,4], index: 3, kind: input, shape index: {}]
  %s4 = inlined_call_operand.vmem [shape: bf16[9,4,8], index: 4, kind: input, shape index: {}]
  %s5 = inlined_call_operand.vmem [shape: bf16[4,8], index: 5, kind: input, shape index: {}]
  %s6 = inlined_call_operand.vmem [shape: bf16[2,64,8], index: 6, kind: output, shape index: {0}]
  %s7 = inlined_call_operand.vmem [shape: bf16[2,64,8], index: 7, kind: output, shape index: {1}]
  %s8 = inlined_call_operand.vmem [shape: f32[2,4,8], index: 8, kind: output, shape index: {2}]
  %9 = xla_tuple %s6, %s7, %s8
  %s10 = sld [smem:[#allocation0]]
  $region73: #{basic_block_forward.4} parent=0
    _
  %s12 = ssub.s32 1, %s10
  %s13 = scalar_select 0, %s12, %s10
  loop: start=0, step=1, limit=4
  $region2: #{basic_block_forward.4} parent=0 // loop_pre_header
    _
  $region3: #{basic_block_forward.4} parent=0 // loop_header
    %s15 = sphi 0, %s19
    %p16 = scmp.ge.s32.totalorder %s15, 4
    %s25 = sphi 0, %s27
    %s28 = sphi 0, %s25
    %s29 = sphi 0, %s28
    %s45 = sphi 0, %s29
    %s51 = sphi 0, %s53
    %s54 = sphi 0, %s51
    %s55 = sphi 0, %s54
    %s71 = sphi 0, %s55
    %s77 = sphi 0, %s79
    %s80 = sphi 0, %s77
    %s81 = sphi 0, %s80
    %s97 = sphi 0, %s81
    %s103 = sphi 0, %s105
    %s106 = sphi 0, %s103
    %s107 = sphi 0, %s106
    %s123 = sphi 0, %s107
    %s127 = sphi 0, %s127
    %s129 = sphi 0, %s127
    %s130 = sphi 0, %s129
    %s144 = sphi 0, %s130
    %s148 = sphi 0, %s148
    %s150 = sphi 0, %s148
    %s151 = sphi 0, %s150
    %s165 = sphi 0, %s151
    %s171 = sphi 0, %s173
    %s174 = sphi 0, %s171
    %s175 = sphi 0, %s174
    %s191 = sphi 0, %s175
    %s197 = sphi 0, %s199
    %s200 = sphi 0, %s197
    %s201 = sphi 0, %s200
    %s217 = sphi 0, %s201
    %s223 = sphi 0, %s225
    %s226 = sphi 0, %s223
    %s227 = sphi 0, %s226
    %s243 = sphi 0, %s227
  $region4: #{basic_block_forward.4} parent=0 // loop_header_branch
    %18 = sbr.rel (%p16) target = $region8
  $region5: #{basic_block_forward.4} parent=0 // loop_body
    %s20 = ssub.s32 %s15, 1
    %s21 = ssub.s32 %s15, 2
    %s22 = sadd.s32 %s15, 1
    %s23 = ssub.s32 %s15, %s22
    %p24 = scmp.eq.s32.totalorder %s23, 0
    %s26 = sadd.s32 %s25, 1
    %s27 = scalar_select %p24, %s25, %s26
    %p30 = pneg %p24
    %p31 = scmp.eq.s32.totalorder %s15, 1
    %p32 = por %p30, %p31
    %p33 = scmp.ne.s32.totalorder %s25, %s28
    %p34 = scmp.eq.s32.totalorder %s15, 0
    %p35 = por %p33, %p34
    %p36 = scmp.ne.s32.totalorder %s25, %s28
    %p37 = scmp.eq.s32.totalorder %s20, 1
    %p38 = por %p36, %p37
    %p39 = scmp.ne.s32.totalorder %s28, %s29
    %p40 = scmp.eq.s32.totalorder %s20, 0
    %p41 = por %p39, %p40
    %p42 = scmp.ne.s32.totalorder %s28, %s29
    %p43 = scmp.eq.s32.totalorder %s21, 1
    %p44 = por %p42, %p43
    %p46 = scmp.ne.s32.totalorder %s29, %s45
    %p47 = scmp.eq.s32.totalorder %s21, 0
    %p48 = por %p46, %p47
    %s49 = ssub.s32 %s15, %s22
    %p50 = scmp.eq.s32.totalorder %s49, 0
    %s52 = sadd.s32 %s51, 1
    %s53 = scalar_select %p50, %s51, %s52
    %p56 = pneg %p50
    %p57 = scmp.eq.s32.totalorder %s15, 1
    %p58 = por %p56, %p57
    %p59 = scmp.ne.s32.totalorder %s51, %s54
    %p60 = scmp.eq.s32.totalorder %s15, 0
    %p61 = por %p59, %p60
    %p62 = scmp.ne.s32.totalorder %s51, %s54
    %p63 = scmp.eq.s32.totalorder %s20, 1
    %p64 = por %p62, %p63
    %p65 = scmp.ne.s32.totalorder %s54, %s55
    %p66 = scmp.eq.s32.totalorder %s20, 0
    %p67 = por %p65, %p66
    %p68 = scmp.ne.s32.totalorder %s54, %s55
    %p69 = scmp.eq.s32.totalorder %s21, 1
    %p70 = por %p68, %p69
    %p72 = scmp.ne.s32.totalorder %s55, %s71
    %p73 = scmp.eq.s32.totalorder %s21, 0
    %p74 = por %p72, %p73
    %s75 = ssub.s32 %s15, %s22
    %p76 = scmp.eq.s32.totalorder %s75, 0
    %s78 = sadd.s32 %s77, 1
    %s79 = scalar_select %p76, %s77, %s78
    %p82 = pneg %p76
    %p83 = scmp.eq.s32.totalorder %s15, 1
    %p84 = por %p82, %p83
    %p85 = scmp.ne.s32.totalorder %s77, %s80
    %p86 = scmp.eq.s32.totalorder %s15, 0
    %p87 = por %p85, %p86
    %p88 = scmp.ne.s32.totalorder %s77, %s80
    %p89 = scmp.eq.s32.totalorder %s20, 1
    %p90 = por %p88, %p89
    %p91 = scmp.ne.s32.totalorder %s80, %s81
    %p92 = scmp.eq.s32.totalorder %s20, 0
    %p93 = por %p91, %p92
    %p94 = scmp.ne.s32.totalorder %s80, %s81
    %p95 = scmp.eq.s32.totalorder %s21, 1
    %p96 = por %p94, %p95
    %p98 = scmp.ne.s32.totalorder %s81, %s97
    %p99 = scmp.eq.s32.totalorder %s21, 0
    %p100 = por %p98, %p99
    %s101 = ssub.s32 %s15, %s22
    %p102 = scmp.eq.s32.totalorder %s101, 0
    %s104 = sadd.s32 %s103, 1
    %s105 = scalar_select %p102, %s103, %s104
    %p108 = pneg %p102
    %p109 = scmp.eq.s32.totalorder %s15, 1
    %p110 = por %p108, %p109
    %p111 = scmp.ne.s32.totalorder %s103, %s106
    %p112 = scmp.eq.s32.totalorder %s15, 0
    %p113 = por %p111, %p112
    %p114 = scmp.ne.s32.totalorder %s103, %s106
    %p115 = scmp.eq.s32.totalorder %s20, 1
    %p116 = por %p114, %p115
    %p117 = scmp.ne.s32.totalorder %s106, %s107
    %p118 = scmp.eq.s32.totalorder %s20, 0
    %p119 = por %p117, %p118
    %p120 = scmp.ne.s32.totalorder %s106, %s107
    %p121 = scmp.eq.s32.totalorder %s21, 1
    %p122 = por %p120, %p121
    %p124 = scmp.ne.s32.totalorder %s107, %s123
    %p125 = scmp.eq.s32.totalorder %s21, 0
    %p126 = por %p124, %p125
    %s128 = sadd.s32 %s127, 1
    %p131 = scmp.eq.s32.totalorder %s15, 1
    %p132 = scmp.ne.s32.totalorder %s127, %s129
    %p133 = scmp.eq.s32.totalorder %s15, 0
    %p134 = por %p132, %p133
    %p135 = scmp.ne.s32.totalorder %s127, %s129
    %p136 = scmp.eq.s32.totalorder %s20, 1
    %p137 = por %p135, %p136
    %p138 = scmp.ne.s32.totalorder %s129, %s130
    %p139 = scmp.eq.s32.totalorder %s20, 0
    %p140 = por %p138, %p139
    %p141 = scmp.ne.s32.totalorder %s129, %s130
    %p142 = scmp.eq.s32.totalorder %s21, 1
    %p143 = por %p141, %p142
    %p145 = scmp.ne.s32.totalorder %s130, %s144
    %p146 = scmp.eq.s32.totalorder %s21, 0
    %p147 = por %p145, %p146
    %s149 = sadd.s32 %s148, 1
    %p152 = scmp.eq.s32.totalorder %s15, 1
    %p153 = scmp.ne.s32.totalorder %s148, %s150
    %p154 = scmp.eq.s32.totalorder %s15, 0
    %p155 = por %p153, %p154
    %p156 = scmp.ne.s32.totalorder %s148, %s150
    %p157 = scmp.eq.s32.totalorder %s20, 1
    %p158 = por %p156, %p157
    %p159 = scmp.ne.s32.totalorder %s150, %s151
    %p160 = scmp.eq.s32.totalorder %s20, 0
    %p161 = por %p159, %p160
    %p162 = scmp.ne.s32.totalorder %s150, %s151
    %p163 = scmp.eq.s32.totalorder %s21, 1
    %p164 = por %p162, %p163
    %p166 = scmp.ne.s32.totalorder %s151, %s165
    %p167 = scmp.eq.s32.totalorder %s21, 0
    %p168 = por %p166, %p167
    %s169 = ssub.s32 %s15, %s22
    %p170 = scmp.eq.s32.totalorder %s169, 0
    %s172 = sadd.s32 %s171, 1
    %s173 = scalar_select %p170, %s171, %s172
    %p176 = pneg %p170
    %p177 = scmp.eq.s32.totalorder %s15, 1
    %p178 = por %p176, %p177
    %p179 = scmp.ne.s32.totalorder %s171, %s174
    %p180 = scmp.eq.s32.totalorder %s15, 0
    %p181 = por %p179, %p180
    %p182 = scmp.ne.s32.totalorder %s171, %s174
    %p183 = scmp.eq.s32.totalorder %s20, 1
    %p184 = por %p182, %p183
    %p185 = scmp.ne.s32.totalorder %s174, %s175
    %p186 = scmp.eq.s32.totalorder %s20, 0
    %p187 = por %p185, %p186
    %p188 = scmp.ne.s32.totalorder %s174, %s175
    %p189 = scmp.eq.s32.totalorder %s21, 1
    %p190 = por %p188, %p189
    %p192 = scmp.ne.s32.totalorder %s175, %s191
    %p193 = scmp.eq.s32.totalorder %s21, 0
    %p194 = por %p192, %p193
    %s195 = ssub.s32 %s15, %s22
    %p196 = scmp.eq.s32.totalorder %s195, 0
    %s198 = sadd.s32 %s197, 1
    %s199 = scalar_select %p196, %s197, %s198
    %p202 = pneg %p196
    %p203 = scmp.eq.s32.totalorder %s15, 1
    %p204 = por %p202, %p203
    %p205 = scmp.ne.s32.totalorder %s197, %s200
    %p206 = scmp.eq.s32.totalorder %s15, 0
    %p207 = por %p205, %p206
    %p208 = scmp.ne.s32.totalorder %s197, %s200
    %p209 = scmp.eq.s32.totalorder %s20, 1
    %p210 = por %p208, %p209
    %p211 = scmp.ne.s32.totalorder %s200, %s201
    %p212 = scmp.eq.s32.totalorder %s20, 0
    %p213 = por %p211, %p212
    %p214 = scmp.ne.s32.totalorder %s200, %s201
    %p215 = scmp.eq.s32.totalorder %s21, 1
    %p216 = por %p214, %p215
    %p218 = scmp.ne.s32.totalorder %s201, %s217
    %p219 = scmp.eq.s32.totalorder %s21, 0
    %p220 = por %p218, %p219
    %s221 = ssub.s32 %s15, %s22
    %p222 = scmp.eq.s32.totalorder %s221, 0
    %s224 = sadd.s32 %s223, 1
    %s225 = scalar_select %p222, %s223, %s224
    %p228 = pneg %p222
    %p229 = scmp.eq.s32.totalorder %s15, 1
    %p230 = por %p228, %p229
    %p231 = scmp.ne.s32.totalorder %s223, %s226
    %p232 = scmp.eq.s32.totalorder %s15, 0
    %p233 = por %p231, %p232
    %p234 = scmp.ne.s32.totalorder %s223, %s226
    %p235 = scmp.eq.s32.totalorder %s20, 1
    %p236 = por %p234, %p235
    %p237 = scmp.ne.s32.totalorder %s226, %s227
    %p238 = scmp.eq.s32.totalorder %s20, 0
    %p239 = por %p237, %p238
    %p240 = scmp.ne.s32.totalorder %s226, %s227
    %p241 = scmp.eq.s32.totalorder %s21, 1
    %p242 = por %p240, %p241
    %p244 = scmp.ne.s32.totalorder %s227, %s243
    %p245 = scmp.eq.s32.totalorder %s21, 0
    %p246 = por %p244, %p245
    %p247 = scmp.le.s32.totalorder 1, %s15
    %p248 = scmp.lt.s32.totalorder %s15, 3
    %p249 = pnand %p247, %p248
    %p250 = pneg %p249
    // Predicated region
    $region9: #{basic_block_forward.4} parent=5 // pred_check
      _
    $region10: #{basic_block_forward.4} parent=5 // pred_check_branch
      %252 = sbr.rel (%p249) target = $region12
    $region11: #{basic_block_forward.4} parent=5 // pred_region
      %s253 = ssub.s32 %s15, 1
      // Predicated region
      $region13: #{basic_block_forward.4} parent=11 // pred_check
        %p254 = pneg %p140
      $region14: #{basic_block_forward.4} parent=11 // pred_check_branch
        %256 = sbr.rel (%p254) target = $region16
      $region15: #{basic_block_forward.4} parent=11 // pred_region
        _
      $region16: #{basic_block_forward.4} parent=11 // pred_fallthru
        _
      // Predicated region
      $region17: #{basic_block_forward.4} parent=11 // pred_check
        %p257 = pneg %p161
      $region18: #{basic_block_forward.4} parent=11 // pred_check_branch
        %259 = sbr.rel (%p257) target = $region20
      $region19: #{basic_block_forward.4} parent=11 // pred_region
        _
      $region20: #{basic_block_forward.4} parent=11 // pred_fallthru
        _
    $region12: #{basic_block_forward.4} parent=5 // pred_fallthru
      _
    %p260 = scmp.lt.s32.totalorder %s15, 2
    // Predicated region
    $region21: #{basic_block_forward.4} parent=5 // pred_check
      %p261 = pneg %p260
    $region22: #{basic_block_forward.4} parent=5 // pred_check_branch
      %263 = sbr.rel (%p261) target = $region24
    $region23: #{basic_block_forward.4} parent=5 // pred_region
      // Predicated region
      $region25: #{basic_block_forward.4} parent=23 // pred_check
        %p264 = pneg %p35
      $region26: #{basic_block_forward.4} parent=23 // pred_check_branch
        %266 = sbr.rel (%p264) target = $region28
      $region27: #{basic_block_forward.4} parent=23 // pred_region
        %p267 = scmp.lt.s32.totalorder %s15, 1
        %s268 = scalar_select %p267, %s15, 1
        %s269 = smul.addr %s268, 18
        %s270 = smul.addr %s269, 4
        %s271 = scalar_lea.vmem %s0, %s270
      $region28: #{basic_block_forward.4} parent=23 // pred_fallthru
        _
      // Predicated region
      $region29: #{basic_block_forward.4} parent=23 // pred_check
        %p272 = pneg %p61
      $region30: #{basic_block_forward.4} parent=23 // pred_check_branch
        %274 = sbr.rel (%p272) target = $region32
      $region31: #{basic_block_forward.4} parent=23 // pred_region
        %p275 = scmp.lt.s32.totalorder %s15, 1
        %s276 = scalar_select %p275, %s15, 1
        %s277 = smul.addr %s276, 18
        %s278 = smul.addr %s277, 4
        %s279 = scalar_lea.vmem %s1, %s278
      $region32: #{basic_block_forward.4} parent=23 // pred_fallthru
        _
      // Predicated region
      $region33: #{basic_block_forward.4} parent=23 // pred_check
        %p280 = pneg %p87
      $region34: #{basic_block_forward.4} parent=23 // pred_check_branch
        %282 = sbr.rel (%p280) target = $region36
      $region35: #{basic_block_forward.4} parent=23 // pred_region
        %p283 = scmp.lt.s32.totalorder %s15, 1
        %s284 = scalar_select %p283, %s15, 1
        %s285 = smul.addr %s284, 18
        %s286 = smul.addr %s285, 4
        %s287 = scalar_lea.vmem %s2, %s286
      $region36: #{basic_block_forward.4} parent=23 // pred_fallthru
        _
      // Predicated region
      $region37: #{basic_block_forward.4} parent=23 // pred_check
        %p288 = pneg %p113
      $region38: #{basic_block_forward.4} parent=23 // pred_check_branch
        %290 = sbr.rel (%p288) target = $region40
      $region39: #{basic_block_forward.4} parent=23 // pred_region
        %p291 = scmp.lt.s32.totalorder %s15, 1
        %s292 = scalar_select %p291, %s15, 1
        %s293 = smul.addr %s292, 18
        %s294 = smul.addr %s293, 4
        %s295 = scalar_lea.vmem %s3, %s294
      $region40: #{basic_block_forward.4} parent=23 // pred_fallthru
        _
    $region24: #{basic_block_forward.4} parent=5 // pred_fallthru
      _
    %p296 = scmp.le.s32.totalorder 1, %s15
    %p297 = scmp.lt.s32.totalorder %s15, 3
    %p298 = pnand %p296, %p297
    %p299 = pneg %p298
    // Predicated region
    $region41: #{basic_block_forward.4} parent=5 // pred_check
      _
    $region42: #{basic_block_forward.4} parent=5 // pred_check_branch
      %301 = sbr.rel (%p298) target = $region44
    $region43: #{basic_block_forward.4} parent=5 // pred_region
      %s302 = ssub.s32 %s15, 1
      %p303 = scmp.lt.s32.totalorder %s20, 1
      %s304 = scalar_select %p303, %s20, 1
      %s305 = smul.addr %s304, 18
      %s306 = smul.addr %s305, 4
      %s307 = scalar_lea.vmem %s0, %s306
      %p308 = pneg %p41
      %p309 = pneg %p38
      %p310 = scmp.lt.s32.totalorder %s20, 1
      %s311 = scalar_select %p310, %s20, 1
      %s312 = smul.addr %s311, 18
      %s313 = smul.addr %s312, 4
      %s314 = scalar_lea.vmem %s1, %s313
      %p315 = pneg %p67
      %p316 = pneg %p64
      %p317 = scmp.lt.s32.totalorder %s20, 1
      %s318 = scalar_select %p317, %s20, 1
      %s319 = smul.addr %s318, 18
      %s320 = smul.addr %s319, 4
      %s321 = scalar_lea.vmem %s2, %s320
      %p322 = pneg %p93
      %p323 = pneg %p90
      %p324 = scmp.lt.s32.totalorder %s20, 1
      %s325 = scalar_select %p324, %s20, 1
      %s326 = smul.addr %s325, 18
      %s327 = smul.addr %s326, 4
      %s328 = scalar_lea.vmem %s3, %s327
      %p329 = pneg %p119
      %p330 = pneg %p116
      %p331 = pneg %p140
      %p332 = pneg %p137
      %p333 = pneg %p161
      %p334 = pneg %p158
      %p335 = pneg %p187
      %p336 = pneg %p184
      %p337 = scmp.lt.s32.totalorder %s20, 1
      %s338 = scalar_select %p337, %s20, 1
      %s339 = smul.addr %s338, 8
      %s340 = smul.addr %s339, 4
      %s341 = scalar_lea.vmem %s6, %s340
      %p342 = pneg %p213
      %p343 = pneg %p210
      %p344 = scmp.lt.s32.totalorder %s20, 1
      %s345 = scalar_select %p344, %s20, 1
      %s346 = smul.addr %s345, 8
      %s347 = smul.addr %s346, 4
      %s348 = scalar_lea.vmem %s7, %s347
      %p349 = pneg %p239
      %p350 = pneg %p236
      %p351 = scmp.lt.s32.totalorder %s20, 1
      %s352 = scalar_select %p351, %s20, 1
      %s353 = smul.addr %s352, 4
      %s354 = scalar_lea.vmem %s8, %s353
      %p355 = scmp.lt.s32.totalorder %s20, 1
      %s356 = scalar_select %p355, %s20, 1
      %s357 = smul.addr %s356, 18
      %s358 = smul.addr %s357, 4
      %s359 = scalar_lea.vmem %s0, %s358
      %p360 = scmp.lt.s32.totalorder %s20, 1
      %s361 = scalar_select %p360, %s20, 1
      %s362 = smul.addr %s361, 18
      %s363 = smul.addr %s362, 4
      %s364 = scalar_lea.vmem %s1, %s363
      %p365 = scmp.lt.s32.totalorder %s20, 1
      %s366 = scalar_select %p365, %s20, 1
      %s367 = smul.addr %s366, 18
      %s368 = smul.addr %s367, 4
      %s369 = scalar_lea.vmem %s2, %s368
      %p370 = scmp.lt.s32.totalorder %s20, 1
      %s371 = scalar_select %p370, %s20, 1
      %s372 = smul.addr %s371, 18
      %s373 = smul.addr %s372, 4
      %s374 = scalar_lea.vmem %s3, %s373
      %p375 = scmp.lt.s32.totalorder %s20, 1
      %s376 = scalar_select %p375, %s20, 1
      %s377 = smul.addr %s376, 8
      %s378 = smul.addr %s377, 4
      %s379 = scalar_lea.vmem %s6, %s378
      %p380 = scmp.lt.s32.totalorder %s20, 1
      %s381 = scalar_select %p380, %s20, 1
      %s382 = smul.addr %s381, 8
      %s383 = smul.addr %s382, 4
      %s384 = scalar_lea.vmem %s7, %s383
      %p385 = scmp.lt.s32.totalorder %s20, 1
      %s386 = scalar_select %p385, %s20, 1
      %s387 = smul.addr %s386, 4
      %s388 = scalar_lea.vmem %s8, %s387
      %v390 = vld [vmem:[%s359] sm:$0xf]
      %v391 = vld [vmem:[%s359 + $0x8] sm:$0xf]
      %v392 = vld [vmem:[%s359 + $0x10] sm:$0xf]
      %v393 = vld [vmem:[%s359 + $0x18] sm:$0xf]
      %v394 = vld [vmem:[%s359 + $0x20] sm:$0xf]
      %v395 = vld [vmem:[%s359 + $0x28] sm:$0xf]
      %v396 = vld [vmem:[%s359 + $0x30] sm:$0xf]
      %v397 = vld [vmem:[%s359 + $0x38] sm:$0xf]
      %v398 = vld [vmem:[%s4] sm:$0x3]
      %v399 = vld [vmem:[%s364] sm:$0xf]
      %v400 = vld [vmem:[%s364 + $0x8] sm:$0xf]
      %v401 = vld [vmem:[%s364 + $0x10] sm:$0xf]
      %v402 = vld [vmem:[%s364 + $0x18] sm:$0xf]
      %v403 = vld [vmem:[%s364 + $0x20] sm:$0xf]
      %v404 = vld [vmem:[%s364 + $0x28] sm:$0xf]
      %v405 = vld [vmem:[%s364 + $0x30] sm:$0xf]
      %v406 = vld [vmem:[%s364 + $0x38] sm:$0xf]
      %s407 = scalar_lea.vmem %s4, 2
      %v408 = vld [vmem:[%s407] sm:$0x3]
      %v417 = vunpack.c.l.b16 %v399
      %v418 = vunpack.c.l.b16 %v400
      %v419 = vunpack.c.l.b16 %v401
      %v420 = vunpack.c.l.b16 %v402
      %v421 = vunpack.c.l.b16 %v403
      %v422 = vunpack.c.l.b16 %v404
      %v423 = vunpack.c.l.b16 %v405
      %v424 = vunpack.c.l.b16 %v406
      %v425 = vpack.c.b16 %v418, %v417
      %v426 = vpack.c.b16 %v420, %v419
      %v427 = vpack.c.b16 %v422, %v421
      %v428 = vpack.c.b16 %v424, %v423
      %vm429 = vcmask 31744
      %v431 = vsel %vm429, %v425, 0
      %v434 = vsel %vm429, %v426, 0
      %v437 = vsel %vm429, %v427, 0
      %v440 = vsel %vm429, %v428, 0
      %vm442 = vcmask 1041408
      %v444 = vsel %vm442, %v408, 0
      %446 = vmatpush.bf16.msra.mxu0 0
      %447 = vmatpush.bf16.msra.mxu0 0
      %448 = vmatpush.bf16.msra.mxu0 0
      %449 = vmatpush.bf16.msra.mxu0 0
      %450 = vmatpush.bf16.msra.mxu0 0
      %451 = vmatpush.bf16.msra.mxu0 0
      %452 = vmatpush.bf16.msra.mxu0 0
      %453 = vmatpush.bf16.msra.mxu0 %v444
      %454 = vmatmul.bf16.gmra.mxu0 %v431
      %v455 = vpop.f32.mrf.mxu0
      %v456 = vadd.f32 0.0, %v455
      %v457 = vpop.f32.mrf.mxu0
      %v458 = vadd.f32 0.0, %v457
      %459 = vmatmul.bf16.gmra.mxu0 %v434
      %v460 = vpop.f32.mrf.mxu0
      %v461 = vadd.f32 0.0, %v460
      %v462 = vpop.f32.mrf.mxu0
      %v463 = vadd.f32 0.0, %v462
      %464 = vmatmul.bf16.gmra.mxu0 %v437
      %v465 = vpop.f32.mrf.mxu0
      %v466 = vadd.f32 0.0, %v465
      %v467 = vpop.f32.mrf.mxu0
      %v468 = vadd.f32 0.0, %v467
      %469 = vmatmul.bf16.gmra.mxu0 %v440
      %v470 = vpop.f32.mrf.mxu0
      %v471 = vadd.f32 0.0, %v470
      %v472 = vpop.f32.mrf.mxu0
      %v473 = vadd.f32 0.0, %v472
      %474 = vdwg.mxu0
      %v483 = vunpack.c.l.b16 %v390
      %v484 = vunpack.c.l.b16 %v391
      %v485 = vunpack.c.l.b16 %v392
      %v486 = vunpack.c.l.b16 %v393
      %v487 = vunpack.c.l.b16 %v394
      %v488 = vunpack.c.l.b16 %v395
      %v489 = vunpack.c.l.b16 %v396
      %v490 = vunpack.c.l.b16 %v397
      %v491 = vpack.c.b16 %v484, %v483
      %v492 = vpack.c.b16 %v486, %v485
      %v493 = vpack.c.b16 %v488, %v487
      %v494 = vpack.c.b16 %v490, %v489
      %v496 = vsel %vm429, %v491, 0
      %v499 = vsel %vm429, %v492, 0
      %v502 = vsel %vm429, %v493, 0
      %v505 = vsel %vm429, %v494, 0
      %v508 = vsel %vm442, %v398, 0
      %510 = vmatpush.bf16.msra.mxu0 0
      %511 = vmatpush.bf16.msra.mxu0 0
      %512 = vmatpush.bf16.msra.mxu0 0
      %513 = vmatpush.bf16.msra.mxu0 0
      %514 = vmatpush.bf16.msra.mxu0 0
      %515 = vmatpush.bf16.msra.mxu0 0
      %516 = vmatpush.bf16.msra.mxu0 0
      %517 = vmatpush.bf16.msra.mxu0 %v508
      %518 = vmatmul.bf16.gmra.mxu0 %v496
      %v519 = vpop.f32.mrf.mxu0
      %v520 = vadd.f32 %v456, %v519
      %v521 = vpop.f32.mrf.mxu0
      %v522 = vadd.f32 %v458, %v521
      %523 = vmatmul.bf16.gmra.mxu0 %v499
      %v524 = vpop.f32.mrf.mxu0
      %v525 = vadd.f32 %v461, %v524
      %v526 = vpop.f32.mrf.mxu0
      %v527 = vadd.f32 %v463, %v526
      %528 = vmatmul.bf16.gmra.mxu0 %v502
      %v529 = vpop.f32.mrf.mxu0
      %v530 = vadd.f32 %v466, %v529
      %v531 = vpop.f32.mrf.mxu0
      %v532 = vadd.f32 %v468, %v531
      %533 = vmatmul.bf16.gmra.mxu0 %v505
      %v534 = vpop.f32.mrf.mxu0
      %v535 = vadd.f32 %v471, %v534
      %v536 = vpop.f32.mrf.mxu0
      %v537 = vadd.f32 %v473, %v536
      %538 = vdwg.mxu0
      %v539 = vld [vmem:[%s359] sm:$0xf]
      %v540 = vld [vmem:[%s359 + $0x4] sm:$0x1]
      %v541 = vld [vmem:[%s359 + $0x8] sm:$0xf]
      %v542 = vld [vmem:[%s359 + $0xc] sm:$0x1]
      %v543 = vld [vmem:[%s359 + $0x10] sm:$0xf]
      %v544 = vld [vmem:[%s359 + $0x14] sm:$0x1]
      %v545 = vld [vmem:[%s359 + $0x18] sm:$0xf]
      %v546 = vld [vmem:[%s359 + $0x1c] sm:$0x1]
      %v547 = vld [vmem:[%s359 + $0x20] sm:$0xf]
      %v548 = vld [vmem:[%s359 + $0x24] sm:$0x1]
      %v549 = vld [vmem:[%s359 + $0x28] sm:$0xf]
      %v550 = vld [vmem:[%s359 + $0x2c] sm:$0x1]
      %v551 = vld [vmem:[%s359 + $0x30] sm:$0xf]
      %v552 = vld [vmem:[%s359 + $0x34] sm:$0x1]
      %v553 = vld [vmem:[%s359 + $0x38] sm:$0xf]
      %v554 = vld [vmem:[%s359 + $0x3c] sm:$0x1]
      %vm555 = vsmask.f32 3328
      %vm556 = vsmask.f32 7440
      %vm557 = vmor %vm555, %vm556
      %v559 = vshrl.u32 %v539, 16
      %v561 = vrot.slane %v559, 4
      %v562 = vshll.u32 %v539, 16
      %v564 = vrot.slane %v562, 5
      %v565 = vor.u32 %v561, %v564
      %v566 = vrot.slane %v565, 4
      %v568 = vshll.u32 %v540, 16
      %v570 = vrot.slane %v568, 5
      %v571 = vsel %vm557, %v566, %v570
      %v573 = vshrl.u32 %v541, 16
      %v575 = vrot.slane %v573, 4
      %v576 = vshll.u32 %v541, 16
      %v578 = vrot.slane %v576, 5
      %v579 = vor.u32 %v575, %v578
      %v580 = vrot.slane %v579, 4
      %v582 = vshll.u32 %v542, 16
      %v584 = vrot.slane %v582, 5
      %v585 = vsel %vm557, %v580, %v584
      %v587 = vshrl.u32 %v543, 16
      %v589 = vrot.slane %v587, 4
      %v590 = vshll.u32 %v543, 16
      %v592 = vrot.slane %v590, 5
      %v593 = vor.u32 %v589, %v592
      %v594 = vrot.slane %v593, 4
      %v596 = vshll.u32 %v544, 16
      %v598 = vrot.slane %v596, 5
      %v599 = vsel %vm557, %v594, %v598
      %v601 = vshrl.u32 %v545, 16
      %v603 = vrot.slane %v601, 4
      %v604 = vshll.u32 %v545, 16
      %v606 = vrot.slane %v604, 5
      %v607 = vor.u32 %v603, %v606
      %v608 = vrot.slane %v607, 4
      %v610 = vshll.u32 %v546, 16
      %v612 = vrot.slane %v610, 5
      %v613 = vsel %vm557, %v608, %v612
      %v615 = vshrl.u32 %v547, 16
      %v617 = vrot.slane %v615, 4
      %v618 = vshll.u32 %v547, 16
      %v620 = vrot.slane %v618, 5
      %v621 = vor.u32 %v617, %v620
      %v622 = vrot.slane %v621, 4
      %v624 = vshll.u32 %v548, 16
      %v626 = vrot.slane %v624, 5
      %v627 = vsel %vm557, %v622, %v626
      %v629 = vshrl.u32 %v549, 16
      %v631 = vrot.slane %v629, 4
      %v632 = vshll.u32 %v549, 16
      %v634 = vrot.slane %v632, 5
      %v635 = vor.u32 %v631, %v634
      %v636 = vrot.slane %v635, 4
      %v638 = vshll.u32 %v550, 16
      %v640 = vrot.slane %v638, 5
      %v641 = vsel %vm557, %v636, %v640
      %v643 = vshrl.u32 %v551, 16
      %v645 = vrot.slane %v643, 4
      %v646 = vshll.u32 %v551, 16
      %v648 = vrot.slane %v646, 5
      %v649 = vor.u32 %v645, %v648
      %v650 = vrot.slane %v649, 4
      %v652 = vshll.u32 %v552, 16
      %v654 = vrot.slane %v652, 5
      %v655 = vsel %vm557, %v650, %v654
      %v657 = vshrl.u32 %v553, 16
      %v659 = vrot.slane %v657, 4
      %v660 = vshll.u32 %v553, 16
      %v662 = vrot.slane %v660, 5
      %v663 = vor.u32 %v659, %v662
      %v664 = vrot.slane %v663, 4
      %v666 = vshll.u32 %v554, 16
      %v668 = vrot.slane %v666, 5
      %v669 = vsel %vm557, %v664, %v668
      %s670 = scalar_lea.vmem %s4, 4
      %v671 = vld [vmem:[%s670] sm:$0x3]
      %v672 = vunpack.c.l.b16 %v571
      %v673 = vunpack.c.l.b16 %v585
      %v674 = vunpack.c.l.b16 %v599
      %v675 = vunpack.c.l.b16 %v613
      %v676 = vunpack.c.l.b16 %v627
      %v677 = vunpack.c.l.b16 %v641
      %v678 = vunpack.c.l.b16 %v655
      %v679 = vunpack.c.l.b16 %v669
      %v680 = vpack.c.b16 %v673, %v672
      %v681 = vpack.c.b16 %v675, %v674
      %v682 = vpack.c.b16 %v677, %v676
      %v683 = vpack.c.b16 %v679, %v678
      %v685 = vsel %vm429, %v680, 0
      %v688 = vsel %vm429, %v681, 0
      %v691 = vsel %vm429, %v682, 0
      %v694 = vsel %vm429, %v683, 0
      %v697 = vsel %vm442, %v671, 0
      %699 = vmatpush.bf16.msra.mxu0 0
      %700 = vmatpush.bf16.msra.mxu0 0
      %701 = vmatpush.bf16.msra.mxu0 0
      %702 = vmatpush.bf16.msra.mxu0 0
      %703 = vmatpush.bf16.msra.mxu0 0
      %704 = vmatpush.bf16.msra.mxu0 0
      %705 = vmatpush.bf16.msra.mxu0 0
      %706 = vmatpush.bf16.msra.mxu0 %v697
      %707 = vmatmul.bf16.gmra.mxu0 %v685
      %v708 = vpop.f32.mrf.mxu0
      %v709 = vadd.f32 0.0, %v708
      %v710 = vpop.f32.mrf.mxu0
      %v711 = vadd.f32 0.0, %v710
      %712 = vmatmul.bf16.gmra.mxu0 %v688
      %v713 = vpop.f32.mrf.mxu0
      %v714 = vadd.f32 0.0, %v713
      %v715 = vpop.f32.mrf.mxu0
      %v716 = vadd.f32 0.0, %v715
      %717 = vmatmul.bf16.gmra.mxu0 %v691
      %v718 = vpop.f32.mrf.mxu0
      %v719 = vadd.f32 0.0, %v718
      %v720 = vpop.f32.mrf.mxu0
      %v721 = vadd.f32 0.0, %v720
      %722 = vmatmul.bf16.gmra.mxu0 %v694
      %v723 = vpop.f32.mrf.mxu0
      %v724 = vadd.f32 0.0, %v723
      %v725 = vpop.f32.mrf.mxu0
      %v726 = vadd.f32 0.0, %v725
      %727 = vdwg.mxu0
      %v728 = vadd.f32 %v520, %v709
      %v729 = vadd.f32 %v522, %v711
      %v730 = vadd.f32 %v525, %v714
      %v731 = vadd.f32 %v527, %v716
      %v732 = vadd.f32 %v530, %v719
      %v733 = vadd.f32 %v532, %v721
      %v734 = vadd.f32 %v535, %v724
      %v735 = vadd.f32 %v537, %v726
      %v736 = vld [vmem:[%s369] sm:$0xf]
      %v737 = vld [vmem:[%s369 + $0x8] sm:$0xf]
      %v738 = vld [vmem:[%s369 + $0x10] sm:$0xf]
      %v739 = vld [vmem:[%s369 + $0x18] sm:$0xf]
      %v740 = vld [vmem:[%s369 + $0x20] sm:$0xf]
      %v741 = vld [vmem:[%s369 + $0x28] sm:$0xf]
      %v742 = vld [vmem:[%s369 + $0x30] sm:$0xf]
      %v743 = vld [vmem:[%s369 + $0x38] sm:$0xf]
      %s744 = scalar_lea.vmem %s4, 6
      %v745 = vld [vmem:[%s744] sm:$0x3]
      %v754 = vunpack.c.l.b16 %v736
      %v755 = vunpack.c.l.b16 %v737
      %v756 = vunpack.c.l.b16 %v738
      %v757 = vunpack.c.l.b16 %v739
      %v758 = vunpack.c.l.b16 %v740
      %v759 = vunpack.c.l.b16 %v741
      %v760 = vunpack.c.l.b16 %v742
      %v761 = vunpack.c.l.b16 %v743
      %v762 = vpack.c.b16 %v755, %v754
      %v763 = vpack.c.b16 %v757, %v756
      %v764 = vpack.c.b16 %v759, %v758
      %v765 = vpack.c.b16 %v761, %v760
      %v767 = vsel %vm429, %v762, 0
      %v770 = vsel %vm429, %v763, 0
      %v773 = vsel %vm429, %v764, 0
      %v776 = vsel %vm429, %v765, 0
      %v779 = vsel %vm442, %v745, 0
      %781 = vmatpush.bf16.msra.mxu0 0
      %782 = vmatpush.bf16.msra.mxu0 0
      %783 = vmatpush.bf16.msra.mxu0 0
      %784 = vmatpush.bf16.msra.mxu0 0
      %785 = vmatpush.bf16.msra.mxu0 0
      %786 = vmatpush.bf16.msra.mxu0 0
      %787 = vmatpush.bf16.msra.mxu0 0
      %788 = vmatpush.bf16.msra.mxu0 %v779
      %789 = vmatmul.bf16.gmra.mxu0 %v767
      %v790 = vpop.f32.mrf.mxu0
      %v791 = vadd.f32 0.0, %v790
      %v792 = vpop.f32.mrf.mxu0
      %v793 = vadd.f32 0.0, %v792
      %794 = vmatmul.bf16.gmra.mxu0 %v770
      %v795 = vpop.f32.mrf.mxu0
      %v796 = vadd.f32 0.0, %v795
      %v797 = vpop.f32.mrf.mxu0
      %v798 = vadd.f32 0.0, %v797
      %799 = vmatmul.bf16.gmra.mxu0 %v773
      %v800 = vpop.f32.mrf.mxu0
      %v801 = vadd.f32 0.0, %v800
      %v802 = vpop.f32.mrf.mxu0
      %v803 = vadd.f32 0.0, %v802
      %804 = vmatmul.bf16.gmra.mxu0 %v776
      %v805 = vpop.f32.mrf.mxu0
      %v806 = vadd.f32 0.0, %v805
      %v807 = vpop.f32.mrf.mxu0
      %v808 = vadd.f32 0.0, %v807
      %809 = vdwg.mxu0
      %v810 = vadd.f32 %v728, %v791
      %v811 = vadd.f32 %v729, %v793
      %v812 = vadd.f32 %v730, %v796
      %v813 = vadd.f32 %v731, %v798
      %v814 = vadd.f32 %v732, %v801
      %v815 = vadd.f32 %v733, %v803
      %v816 = vadd.f32 %v734, %v806
      %v817 = vadd.f32 %v735, %v808
      %v818 = vld [vmem:[%s374] sm:$0xf]
      %v819 = vld [vmem:[%s374 + $0x8] sm:$0xf]
      %v820 = vld [vmem:[%s374 + $0x10] sm:$0xf]
      %v821 = vld [vmem:[%s374 + $0x18] sm:$0xf]
      %v822 = vld [vmem:[%s374 + $0x20] sm:$0xf]
      %v823 = vld [vmem:[%s374 + $0x28] sm:$0xf]
      %v824 = vld [vmem:[%s374 + $0x30] sm:$0xf]
      %v825 = vld [vmem:[%s374 + $0x38] sm:$0xf]
      %s826 = scalar_lea.vmem %s4, 8
      %v827 = vld [vmem:[%s826] sm:$0x3]
      %v836 = vunpack.c.l.b16 %v818
      %v837 = vunpack.c.l.b16 %v819
      %v838 = vunpack.c.l.b16 %v820
      %v839 = vunpack.c.l.b16 %v821
      %v840 = vunpack.c.l.b16 %v822
      %v841 = vunpack.c.l.b16 %v823
      %v842 = vunpack.c.l.b16 %v824
      %v843 = vunpack.c.l.b16 %v825
      %v844 = vpack.c.b16 %v837, %v836
      %v845 = vpack.c.b16 %v839, %v838
      %v846 = vpack.c.b16 %v841, %v840
      %v847 = vpack.c.b16 %v843, %v842
      %v849 = vsel %vm429, %v844, 0
      %v852 = vsel %vm429, %v845, 0
      %v855 = vsel %vm429, %v846, 0
      %v858 = vsel %vm429, %v847, 0
      %v861 = vsel %vm442, %v827, 0
      %863 = vmatpush.bf16.msra.mxu0 0
      %864 = vmatpush.bf16.msra.mxu0 0
      %865 = vmatpush.bf16.msra.mxu0 0
      %866 = vmatpush.bf16.msra.mxu0 0
      %867 = vmatpush.bf16.msra.mxu0 0
      %868 = vmatpush.bf16.msra.mxu0 0
      %869 = vmatpush.bf16.msra.mxu0 0
      %870 = vmatpush.bf16.msra.mxu0 %v861
      %871 = vmatmul.bf16.gmra.mxu0 %v849
      %v872 = vpop.f32.mrf.mxu0
      %v873 = vadd.f32 0.0, %v872
      %v874 = vpop.f32.mrf.mxu0
      %v875 = vadd.f32 0.0, %v874
      %876 = vmatmul.bf16.gmra.mxu0 %v852
      %v877 = vpop.f32.mrf.mxu0
      %v878 = vadd.f32 0.0, %v877
      %v879 = vpop.f32.mrf.mxu0
      %v880 = vadd.f32 0.0, %v879
      %881 = vmatmul.bf16.gmra.mxu0 %v855
      %v882 = vpop.f32.mrf.mxu0
      %v883 = vadd.f32 0.0, %v882
      %v884 = vpop.f32.mrf.mxu0
      %v885 = vadd.f32 0.0, %v884
      %886 = vmatmul.bf16.gmra.mxu0 %v858
      %v887 = vpop.f32.mrf.mxu0
      %v888 = vadd.f32 0.0, %v887
      %v889 = vpop.f32.mrf.mxu0
      %v890 = vadd.f32 0.0, %v889
      %891 = vdwg.mxu0
      %v892 = vadd.f32 %v810, %v873
      %v893 = vadd.f32 %v811, %v875
      %v894 = vadd.f32 %v812, %v878
      %v895 = vadd.f32 %v813, %v880
      %v896 = vadd.f32 %v814, %v883
      %v897 = vadd.f32 %v815, %v885
      %v898 = vadd.f32 %v816, %v888
      %v899 = vadd.f32 %v817, %v890
      %v900 = vld [vmem:[%s369] sm:$0xf]
      %v901 = vld [vmem:[%s369 + $0x4] sm:$0x1]
      %v902 = vld [vmem:[%s369 + $0x8] sm:$0xf]
      %v903 = vld [vmem:[%s369 + $0xc] sm:$0x1]
      %v904 = vld [vmem:[%s369 + $0x10] sm:$0xf]
      %v905 = vld [vmem:[%s369 + $0x14] sm:$0x1]
      %v906 = vld [vmem:[%s369 + $0x18] sm:$0xf]
      %v907 = vld [vmem:[%s369 + $0x1c] sm:$0x1]
      %v908 = vld [vmem:[%s369 + $0x20] sm:$0xf]
      %v909 = vld [vmem:[%s369 + $0x24] sm:$0x1]
      %v910 = vld [vmem:[%s369 + $0x28] sm:$0xf]
      %v911 = vld [vmem:[%s369 + $0x2c] sm:$0x1]
      %v912 = vld [vmem:[%s369 + $0x30] sm:$0xf]
      %v913 = vld [vmem:[%s369 + $0x34] sm:$0x1]
      %v914 = vld [vmem:[%s369 + $0x38] sm:$0xf]
      %v915 = vld [vmem:[%s369 + $0x3c] sm:$0x1]
      %v917 = vshrl.u32 %v900, 16
      %v919 = vrot.slane %v917, 4
      %v920 = vshll.u32 %v900, 16
      %v922 = vrot.slane %v920, 5
      %v923 = vor.u32 %v919, %v922
      %v924 = vrot.slane %v923, 4
      %v926 = vshll.u32 %v901, 16
      %v928 = vrot.slane %v926, 5
      %v929 = vsel %vm557, %v924, %v928
      %v931 = vshrl.u32 %v902, 16
      %v933 = vrot.slane %v931, 4
      %v934 = vshll.u32 %v902, 16
      %v936 = vrot.slane %v934, 5
      %v937 = vor.u32 %v933, %v936
      %v938 = vrot.slane %v937, 4
      %v940 = vshll.u32 %v903, 16
      %v942 = vrot.slane %v940, 5
      %v943 = vsel %vm557, %v938, %v942
      %v945 = vshrl.u32 %v904, 16
      %v947 = vrot.slane %v945, 4
      %v948 = vshll.u32 %v904, 16
      %v950 = vrot.slane %v948, 5
      %v951 = vor.u32 %v947, %v950
      %v952 = vrot.slane %v951, 4
      %v954 = vshll.u32 %v905, 16
      %v956 = vrot.slane %v954, 5
      %v957 = vsel %vm557, %v952, %v956
      %v959 = vshrl.u32 %v906, 16
      %v961 = vrot.slane %v959, 4
      %v962 = vshll.u32 %v906, 16
      %v964 = vrot.slane %v962, 5
      %v965 = vor.u32 %v961, %v964
      %v966 = vrot.slane %v965, 4
      %v968 = vshll.u32 %v907, 16
      %v970 = vrot.slane %v968, 5
      %v971 = vsel %vm557, %v966, %v970
      %v973 = vshrl.u32 %v908, 16
      %v975 = vrot.slane %v973, 4
      %v976 = vshll.u32 %v908, 16
      %v978 = vrot.slane %v976, 5
      %v979 = vor.u32 %v975, %v978
      %v980 = vrot.slane %v979, 4
      %v982 = vshll.u32 %v909, 16
      %v984 = vrot.slane %v982, 5
      %v985 = vsel %vm557, %v980, %v984
      %v987 = vshrl.u32 %v910, 16
      %v989 = vrot.slane %v987, 4
      %v990 = vshll.u32 %v910, 16
      %v992 = vrot.slane %v990, 5
      %v993 = vor.u32 %v989, %v992
      %v994 = vrot.slane %v993, 4
      %v996 = vshll.u32 %v911, 16
      %v998 = vrot.slane %v996, 5
      %v999 = vsel %vm557, %v994, %v998
      %v1001 = vshrl.u32 %v912, 16
      %v1003 = vrot.slane %v1001, 4
      %v1004 = vshll.u32 %v912, 16
      %v1006 = vrot.slane %v1004, 5
      %v1007 = vor.u32 %v1003, %v1006
      %v1008 = vrot.slane %v1007, 4
      %v1010 = vshll.u32 %v913, 16
      %v1012 = vrot.slane %v1010, 5
      %v1013 = vsel %vm557, %v1008, %v1012
      %v1015 = vshrl.u32 %v914, 16
      %v1017 = vrot.slane %v1015, 4
      %v1018 = vshll.u32 %v914, 16
      %v1020 = vrot.slane %v1018, 5
      %v1021 = vor.u32 %v1017, %v1020
      %v1022 = vrot.slane %v1021, 4
      %v1024 = vshll.u32 %v915, 16
      %v1026 = vrot.slane %v1024, 5
      %v1027 = vsel %vm557, %v1022, %v1026
      %s1028 = scalar_lea.vmem %s4, 10
      %v1029 = vld [vmem:[%s1028] sm:$0x3]
      %v1030 = vunpack.c.l.b16 %v929
      %v1031 = vunpack.c.l.b16 %v943
      %v1032 = vunpack.c.l.b16 %v957
      %v1033 = vunpack.c.l.b16 %v971
      %v1034 = vunpack.c.l.b16 %v985
      %v1035 = vunpack.c.l.b16 %v999
      %v1036 = vunpack.c.l.b16 %v1013
      %v1037 = vunpack.c.l.b16 %v1027
      %v1038 = vpack.c.b16 %v1031, %v1030
      %v1039 = vpack.c.b16 %v1033, %v1032
      %v1040 = vpack.c.b16 %v1035, %v1034
      %v1041 = vpack.c.b16 %v1037, %v1036
      %v1043 = vsel %vm429, %v1038, 0
      %v1046 = vsel %vm429, %v1039, 0
      %v1049 = vsel %vm429, %v1040, 0
      %v1052 = vsel %vm429, %v1041, 0
      %v1055 = vsel %vm442, %v1029, 0
      %1057 = vmatpush.bf16.msra.mxu0 0
      %1058 = vmatpush.bf16.msra.mxu0 0
      %1059 = vmatpush.bf16.msra.mxu0 0
      %1060 = vmatpush.bf16.msra.mxu0 0
      %1061 = vmatpush.bf16.msra.mxu0 0
      %1062 = vmatpush.bf16.msra.mxu0 0
      %1063 = vmatpush.bf16.msra.mxu0 0
      %1064 = vmatpush.bf16.msra.mxu0 %v1055
      %1065 = vmatmul.bf16.gmra.mxu0 %v1043
      %v1066 = vpop.f32.mrf.mxu0
      %v1067 = vadd.f32 0.0, %v1066
      %v1068 = vpop.f32.mrf.mxu0
      %v1069 = vadd.f32 0.0, %v1068
      %1070 = vmatmul.bf16.gmra.mxu0 %v1046
      %v1071 = vpop.f32.mrf.mxu0
      %v1072 = vadd.f32 0.0, %v1071
      %v1073 = vpop.f32.mrf.mxu0
      %v1074 = vadd.f32 0.0, %v1073
      %1075 = vmatmul.bf16.gmra.mxu0 %v1049
      %v1076 = vpop.f32.mrf.mxu0
      %v1077 = vadd.f32 0.0, %v1076
      %v1078 = vpop.f32.mrf.mxu0
      %v1079 = vadd.f32 0.0, %v1078
      %1080 = vmatmul.bf16.gmra.mxu0 %v1052
      %v1081 = vpop.f32.mrf.mxu0
      %v1082 = vadd.f32 0.0, %v1081
      %v1083 = vpop.f32.mrf.mxu0
      %v1084 = vadd.f32 0.0, %v1083
      %1085 = vdwg.mxu0
      %v1086 = vadd.f32 %v892, %v1067
      %v1087 = vadd.f32 %v893, %v1069
      %v1088 = vadd.f32 %v894, %v1072
      %v1089 = vadd.f32 %v895, %v1074
      %v1090 = vadd.f32 %v896, %v1077
      %v1091 = vadd.f32 %v897, %v1079
      %v1092 = vadd.f32 %v898, %v1082
      %v1093 = vadd.f32 %v899, %v1084
      %s1094 = scalar_lea.vmem %s359, 8
      %v1095 = vld [vmem:[%s1094] sm:$0xf]
      %v1096 = vld [vmem:[%s1094 + $0x8] sm:$0xf]
      %v1097 = vld [vmem:[%s1094 + $0x10] sm:$0xf]
      %v1098 = vld [vmem:[%s1094 + $0x18] sm:$0xf]
      %v1099 = vld [vmem:[%s1094 + $0x20] sm:$0xf]
      %v1100 = vld [vmem:[%s1094 + $0x28] sm:$0xf]
      %v1101 = vld [vmem:[%s1094 + $0x30] sm:$0xf]
      %v1102 = vld [vmem:[%s1094 + $0x38] sm:$0xf]
      %s1103 = scalar_lea.vmem %s4, 12
      %v1104 = vld [vmem:[%s1103] sm:$0x3]
      %v1113 = vunpack.c.l.b16 %v1095
      %v1114 = vunpack.c.l.b16 %v1096
      %v1115 = vunpack.c.l.b16 %v1097
      %v1116 = vunpack.c.l.b16 %v1098
      %v1117 = vunpack.c.l.b16 %v1099
      %v1118 = vunpack.c.l.b16 %v1100
      %v1119 = vunpack.c.l.b16 %v1101
      %v1120 = vunpack.c.l.b16 %v1102
      %v1121 = vpack.c.b16 %v1114, %v1113
      %v1122 = vpack.c.b16 %v1116, %v1115
      %v1123 = vpack.c.b16 %v1118, %v1117
      %v1124 = vpack.c.b16 %v1120, %v1119
      %v1126 = vsel %vm429, %v1121, 0
      %v1129 = vsel %vm429, %v1122, 0
      %v1132 = vsel %vm429, %v1123, 0
      %v1135 = vsel %vm429, %v1124, 0
      %v1138 = vsel %vm442, %v1104, 0
      %1140 = vmatpush.bf16.msra.mxu0 0
      %1141 = vmatpush.bf16.msra.mxu0 0
      %1142 = vmatpush.bf16.msra.mxu0 0
      %1143 = vmatpush.bf16.msra.mxu0 0
      %1144 = vmatpush.bf16.msra.mxu0 0
      %1145 = vmatpush.bf16.msra.mxu0 0
      %1146 = vmatpush.bf16.msra.mxu0 0
      %1147 = vmatpush.bf16.msra.mxu0 %v1138
      %1148 = vmatmul.bf16.gmra.mxu0 %v1126
      %v1149 = vpop.f32.mrf.mxu0
      %v1150 = vadd.f32 0.0, %v1149
      %v1151 = vpop.f32.mrf.mxu0
      %v1152 = vadd.f32 0.0, %v1151
      %1153 = vmatmul.bf16.gmra.mxu0 %v1129
      %v1154 = vpop.f32.mrf.mxu0
      %v1155 = vadd.f32 0.0, %v1154
      %v1156 = vpop.f32.mrf.mxu0
      %v1157 = vadd.f32 0.0, %v1156
      %1158 = vmatmul.bf16.gmra.mxu0 %v1132
      %v1159 = vpop.f32.mrf.mxu0
      %v1160 = vadd.f32 0.0, %v1159
      %v1161 = vpop.f32.mrf.mxu0
      %v1162 = vadd.f32 0.0, %v1161
      %1163 = vmatmul.bf16.gmra.mxu0 %v1135
      %v1164 = vpop.f32.mrf.mxu0
      %v1165 = vadd.f32 0.0, %v1164
      %v1166 = vpop.f32.mrf.mxu0
      %v1167 = vadd.f32 0.0, %v1166
      %1168 = vdwg.mxu0
      %v1169 = vadd.f32 %v1086, %v1150
      %v1170 = vadd.f32 %v1087, %v1152
      %v1171 = vadd.f32 %v1088, %v1155
      %v1172 = vadd.f32 %v1089, %v1157
      %v1173 = vadd.f32 %v1090, %v1160
      %v1174 = vadd.f32 %v1091, %v1162
      %v1175 = vadd.f32 %v1092, %v1165
      %v1176 = vadd.f32 %v1093, %v1167
      %s1177 = scalar_lea.vmem %s364, 8
      %v1178 = vld [vmem:[%s1177] sm:$0xf]
      %v1179 = vld [vmem:[%s1177 + $0x8] sm:$0xf]
      %v1180 = vld [vmem:[%s1177 + $0x10] sm:$0xf]
      %v1181 = vld [vmem:[%s1177 + $0x18] sm:$0xf]
      %v1182 = vld [vmem:[%s1177 + $0x20] sm:$0xf]
      %v1183 = vld [vmem:[%s1177 + $0x28] sm:$0xf]
      %v1184 = vld [vmem:[%s1177 + $0x30] sm:$0xf]
      %v1185 = vld [vmem:[%s1177 + $0x38] sm:$0xf]
      %s1186 = scalar_lea.vmem %s4, 14
      %v1187 = vld [vmem:[%s1186] sm:$0x3]
      %v1196 = vunpack.c.l.b16 %v1178
      %v1197 = vunpack.c.l.b16 %v1179
      %v1198 = vunpack.c.l.b16 %v1180
      %v1199 = vunpack.c.l.b16 %v1181
      %v1200 = vunpack.c.l.b16 %v1182
      %v1201 = vunpack.c.l.b16 %v1183
      %v1202 = vunpack.c.l.b16 %v1184
      %v1203 = vunpack.c.l.b16 %v1185
      %v1204 = vpack.c.b16 %v1197, %v1196
      %v1205 = vpack.c.b16 %v1199, %v1198
      %v1206 = vpack.c.b16 %v1201, %v1200
      %v1207 = vpack.c.b16 %v1203, %v1202
      %v1209 = vsel %vm429, %v1204, 0
      %v1212 = vsel %vm429, %v1205, 0
      %v1215 = vsel %vm429, %v1206, 0
      %v1218 = vsel %vm429, %v1207, 0
      %v1221 = vsel %vm442, %v1187, 0
      %1223 = vmatpush.bf16.msra.mxu0 0
      %1224 = vmatpush.bf16.msra.mxu0 0
      %1225 = vmatpush.bf16.msra.mxu0 0
      %1226 = vmatpush.bf16.msra.mxu0 0
      %1227 = vmatpush.bf16.msra.mxu0 0
      %1228 = vmatpush.bf16.msra.mxu0 0
      %1229 = vmatpush.bf16.msra.mxu0 0
      %1230 = vmatpush.bf16.msra.mxu0 %v1221
      %1231 = vmatmul.bf16.gmra.mxu0 %v1209
      %v1232 = vpop.f32.mrf.mxu0
      %v1233 = vadd.f32 0.0, %v1232
      %v1234 = vpop.f32.mrf.mxu0
      %v1235 = vadd.f32 0.0, %v1234
      %1236 = vmatmul.bf16.gmra.mxu0 %v1212
      %v1237 = vpop.f32.mrf.mxu0
      %v1238 = vadd.f32 0.0, %v1237
      %v1239 = vpop.f32.mrf.mxu0
      %v1240 = vadd.f32 0.0, %v1239
      %1241 = vmatmul.bf16.gmra.mxu0 %v1215
      %v1242 = vpop.f32.mrf.mxu0
      %v1243 = vadd.f32 0.0, %v1242
      %v1244 = vpop.f32.mrf.mxu0
      %v1245 = vadd.f32 0.0, %v1244
      %1246 = vmatmul.bf16.gmra.mxu0 %v1218
      %v1247 = vpop.f32.mrf.mxu0
      %v1248 = vadd.f32 0.0, %v1247
      %v1249 = vpop.f32.mrf.mxu0
      %v1250 = vadd.f32 0.0, %v1249
      %1251 = vdwg.mxu0
      %v1252 = vadd.f32 %v1169, %v1233
      %v1253 = vadd.f32 %v1170, %v1235
      %v1254 = vadd.f32 %v1171, %v1238
      %v1255 = vadd.f32 %v1172, %v1240
      %v1256 = vadd.f32 %v1173, %v1243
      %v1257 = vadd.f32 %v1174, %v1245
      %v1258 = vadd.f32 %v1175, %v1248
      %v1259 = vadd.f32 %v1176, %v1250
      %v1260 = vld [vmem:[%s1094] sm:$0xf]
      %v1261 = vld [vmem:[%s1094 + $0x4] sm:$0x1]
      %v1262 = vld [vmem:[%s1094 + $0x8] sm:$0xf]
      %v1263 = vld [vmem:[%s1094 + $0xc] sm:$0x1]
      %v1264 = vld [vmem:[%s1094 + $0x10] sm:$0xf]
      %v1265 = vld [vmem:[%s1094 + $0x14] sm:$0x1]
      %v1266 = vld [vmem:[%s1094 + $0x18] sm:$0xf]
      %v1267 = vld [vmem:[%s1094 + $0x1c] sm:$0x1]
      %v1268 = vld [vmem:[%s1094 + $0x20] sm:$0xf]
      %v1269 = vld [vmem:[%s1094 + $0x24] sm:$0x1]
      %v1270 = vld [vmem:[%s1094 + $0x28] sm:$0xf]
      %v1271 = vld [vmem:[%s1094 + $0x2c] sm:$0x1]
      %v1272 = vld [vmem:[%s1094 + $0x30] sm:$0xf]
      %v1273 = vld [vmem:[%s1094 + $0x34] sm:$0x1]
      %v1274 = vld [vmem:[%s1094 + $0x38] sm:$0xf]
      %v1275 = vld [vmem:[%s1094 + $0x3c] sm:$0x1]
      %v1277 = vshrl.u32 %v1260, 16
      %v1279 = vrot.slane %v1277, 4
      %v1280 = vshll.u32 %v1260, 16
      %v1282 = vrot.slane %v1280, 5
      %v1283 = vor.u32 %v1279, %v1282
      %v1284 = vrot.slane %v1283, 4
      %v1286 = vshll.u32 %v1261, 16
      %v1288 = vrot.slane %v1286, 5
      %v1289 = vsel %vm557, %v1284, %v1288
      %v1291 = vshrl.u32 %v1262, 16
      %v1293 = vrot.slane %v1291, 4
      %v1294 = vshll.u32 %v1262, 16
      %v1296 = vrot.slane %v1294, 5
      %v1297 = vor.u32 %v1293, %v1296
      %v1298 = vrot.slane %v1297, 4
      %v1300 = vshll.u32 %v1263, 16
      %v1302 = vrot.slane %v1300, 5
      %v1303 = vsel %vm557, %v1298, %v1302
      %v1305 = vshrl.u32 %v1264, 16
      %v1307 = vrot.slane %v1305, 4
      %v1308 = vshll.u32 %v1264, 16
      %v1310 = vrot.slane %v1308, 5
      %v1311 = vor.u32 %v1307, %v1310
      %v1312 = vrot.slane %v1311, 4
      %v1314 = vshll.u32 %v1265, 16
      %v1316 = vrot.slane %v1314, 5
      %v1317 = vsel %vm557, %v1312, %v1316
      %v1319 = vshrl.u32 %v1266, 16
      %v1321 = vrot.slane %v1319, 4
      %v1322 = vshll.u32 %v1266, 16
      %v1324 = vrot.slane %v1322, 5
      %v1325 = vor.u32 %v1321, %v1324
      %v1326 = vrot.slane %v1325, 4
      %v1328 = vshll.u32 %v1267, 16
      %v1330 = vrot.slane %v1328, 5
      %v1331 = vsel %vm557, %v1326, %v1330
      %v1333 = vshrl.u32 %v1268, 16
      %v1335 = vrot.slane %v1333, 4
      %v1336 = vshll.u32 %v1268, 16
      %v1338 = vrot.slane %v1336, 5
      %v1339 = vor.u32 %v1335, %v1338
      %v1340 = vrot.slane %v1339, 4
      %v1342 = vshll.u32 %v1269, 16
      %v1344 = vrot.slane %v1342, 5
      %v1345 = vsel %vm557, %v1340, %v1344
      %v1347 = vshrl.u32 %v1270, 16
      %v1349 = vrot.slane %v1347, 4
      %v1350 = vshll.u32 %v1270, 16
      %v1352 = vrot.slane %v1350, 5
      %v1353 = vor.u32 %v1349, %v1352
      %v1354 = vrot.slane %v1353, 4
      %v1356 = vshll.u32 %v1271, 16
      %v1358 = vrot.slane %v1356, 5
      %v1359 = vsel %vm557, %v1354, %v1358
      %v1361 = vshrl.u32 %v1272, 16
      %v1363 = vrot.slane %v1361, 4
      %v1364 = vshll.u32 %v1272, 16
      %v1366 = vrot.slane %v1364, 5
      %v1367 = vor.u32 %v1363, %v1366
      %v1368 = vrot.slane %v1367, 4
      %v1370 = vshll.u32 %v1273, 16
      %v1372 = vrot.slane %v1370, 5
      %v1373 = vsel %vm557, %v1368, %v1372
      %v1375 = vshrl.u32 %v1274, 16
      %v1377 = vrot.slane %v1375, 4
      %v1378 = vshll.u32 %v1274, 16
      %v1380 = vrot.slane %v1378, 5
      %v1381 = vor.u32 %v1377, %v1380
      %v1382 = vrot.slane %v1381, 4
      %v1384 = vshll.u32 %v1275, 16
      %v1386 = vrot.slane %v1384, 5
      %v1387 = vsel %vm557, %v1382, %v1386
      %s1388 = scalar_lea.vmem %s4, 16
      %v1389 = vld [vmem:[%s1388] sm:$0x3]
      %v1390 = vunpack.c.l.b16 %v1289
      %v1391 = vunpack.c.l.b16 %v1303
      %v1392 = vunpack.c.l.b16 %v1317
      %v1393 = vunpack.c.l.b16 %v1331
      %v1394 = vunpack.c.l.b16 %v1345
      %v1395 = vunpack.c.l.b16 %v1359
      %v1396 = vunpack.c.l.b16 %v1373
      %v1397 = vunpack.c.l.b16 %v1387
      %v1398 = vpack.c.b16 %v1391, %v1390
      %v1399 = vpack.c.b16 %v1393, %v1392
      %v1400 = vpack.c.b16 %v1395, %v1394
      %v1401 = vpack.c.b16 %v1397, %v1396
      %v1403 = vsel %vm429, %v1398, 0
      %v1406 = vsel %vm429, %v1399, 0
      %v1409 = vsel %vm429, %v1400, 0
      %v1412 = vsel %vm429, %v1401, 0
      %v1415 = vsel %vm442, %v1389, 0
      %1417 = vmatpush.bf16.msra.mxu0 0
      %1418 = vmatpush.bf16.msra.mxu0 0
      %1419 = vmatpush.bf16.msra.mxu0 0
      %1420 = vmatpush.bf16.msra.mxu0 0
      %1421 = vmatpush.bf16.msra.mxu0 0
      %1422 = vmatpush.bf16.msra.mxu0 0
      %1423 = vmatpush.bf16.msra.mxu0 0
      %1424 = vmatpush.bf16.msra.mxu0 %v1415
      %1425 = vmatmul.bf16.gmra.mxu0 %v1403
      %v1426 = vpop.f32.mrf.mxu0
      %v1427 = vadd.f32 0.0, %v1426
      %v1428 = vpop.f32.mrf.mxu0
      %v1429 = vadd.f32 0.0, %v1428
      %1430 = vmatmul.bf16.gmra.mxu0 %v1406
      %v1431 = vpop.f32.mrf.mxu0
      %v1432 = vadd.f32 0.0, %v1431
      %v1433 = vpop.f32.mrf.mxu0
      %v1434 = vadd.f32 0.0, %v1433
      %1435 = vmatmul.bf16.gmra.mxu0 %v1409
      %v1436 = vpop.f32.mrf.mxu0
      %v1437 = vadd.f32 0.0, %v1436
      %v1438 = vpop.f32.mrf.mxu0
      %v1439 = vadd.f32 0.0, %v1438
      %1440 = vmatmul.bf16.gmra.mxu0 %v1412
      %v1441 = vpop.f32.mrf.mxu0
      %v1442 = vadd.f32 0.0, %v1441
      %v1443 = vpop.f32.mrf.mxu0
      %v1444 = vadd.f32 0.0, %v1443
      %1445 = vdwg.mxu0
      %v1446 = vadd.f32 %v1252, %v1427
      %v1447 = vadd.f32 %v1253, %v1429
      %v1448 = vadd.f32 %v1254, %v1432
      %v1449 = vadd.f32 %v1255, %v1434
      %v1450 = vadd.f32 %v1256, %v1437
      %v1451 = vadd.f32 %v1257, %v1439
      %v1452 = vadd.f32 %v1258, %v1442
      %v1453 = vadd.f32 %v1259, %v1444
      %v1454 = vpack.c.bf16 %v1446, %v1446
      %v1455 = vpack.c.bf16 %v1447, %v1447
      %v1456 = vpack.c.bf16 %v1448, %v1448
      %v1457 = vpack.c.bf16 %v1449, %v1449
      %v1458 = vpack.c.bf16 %v1450, %v1450
      %v1459 = vpack.c.bf16 %v1451, %v1451
      %v1460 = vpack.c.bf16 %v1452, %v1452
      %v1461 = vpack.c.bf16 %v1453, %v1453
      %vm1462 = vcmask 60416
      %1463 = vst.msk [vmem:[%s379] sm:$0xf] %vm1462, %v1454
      %1464 = vst.msk [vmem:[%s379 + $0x4] sm:$0xf] %vm1462, %v1455
      %1465 = vst.msk [vmem:[%s379 + $0x8] sm:$0xf] %vm1462, %v1456
      %1466 = vst.msk [vmem:[%s379 + $0xc] sm:$0xf] %vm1462, %v1457
      %1467 = vst.msk [vmem:[%s379 + $0x10] sm:$0xf] %vm1462, %v1458
      %1468 = vst.msk [vmem:[%s379 + $0x14] sm:$0xf] %vm1462, %v1459
      %1469 = vst.msk [vmem:[%s379 + $0x18] sm:$0xf] %vm1462, %v1460
      %1470 = vst.msk [vmem:[%s379 + $0x1c] sm:$0xf] %vm1462, %v1461
      %vm1471 = vcmask 64512
      %v1472 = vsel %vm1471, %v1446, 0.0
      %v1473 = vsel %vm1471, %v1447, 0.0
      %v1474 = vadd.f32 %v1472, %v1473
      %v1475 = vsel %vm1471, %v1448, 0.0
      %v1476 = vadd.f32 %v1474, %v1475
      %v1477 = vsel %vm1471, %v1449, 0.0
      %v1478 = vadd.f32 %v1476, %v1477
      %v1479 = vsel %vm1471, %v1450, 0.0
      %v1480 = vadd.f32 %v1478, %v1479
      %v1481 = vsel %vm1471, %v1451, 0.0
      %v1482 = vadd.f32 %v1480, %v1481
      %v1483 = vsel %vm1471, %v1452, 0.0
      %v1484 = vadd.f32 %v1482, %v1483
      %v1485 = vsel %vm1471, %v1453, 0.0
      %v1486 = vadd.f32 %v1484, %v1485
      %v1487 = vrot.slane %v1486, 4
      %v1488 = vadd.f32 %v1486, %v1487
      %v1489 = vrot.slane %v1488, 2
      %v1490 = vadd.f32 %v1488, %v1489
      %v1491 = vrot.slane %v1490, 1
      %v1492 = vadd.f32 %v1490, %v1491
      %vm1493 = vcmask 57344
      %1494 = vst.msk [vmem:[%s388] sm:$0x1] %vm1493, %v1492
      %v1495 = vmul.f32 %v1446, %v1446
      %v1496 = vmul.f32 %v1447, %v1447
      %v1497 = vmul.f32 %v1448, %v1448
      %v1498 = vmul.f32 %v1449, %v1449
      %v1499 = vmul.f32 %v1450, %v1450
      %v1500 = vmul.f32 %v1451, %v1451
      %v1501 = vmul.f32 %v1452, %v1452
      %v1502 = vmul.f32 %v1453, %v1453
      %v1503 = vsel %vm1471, %v1495, 0.0
      %v1504 = vsel %vm1471, %v1496, 0.0
      %v1505 = vadd.f32 %v1503, %v1504
      %v1506 = vsel %vm1471, %v1497, 0.0
      %v1507 = vadd.f32 %v1505, %v1506
      %v1508 = vsel %vm1471, %v1498, 0.0
      %v1509 = vadd.f32 %v1507, %v1508
      %v1510 = vsel %vm1471, %v1499, 0.0
      %v1511 = vadd.f32 %v1509, %v1510
      %v1512 = vsel %vm1471, %v1500, 0.0
      %v1513 = vadd.f32 %v1511, %v1512
      %v1514 = vsel %vm1471, %v1501, 0.0
      %v1515 = vadd.f32 %v1513, %v1514
      %v1516 = vsel %vm1471, %v1502, 0.0
      %v1517 = vadd.f32 %v1515, %v1516
      %v1518 = vrot.slane %v1517, 4
      %v1519 = vadd.f32 %v1517, %v1518
      %v1520 = vrot.slane %v1519, 2
      %v1521 = vadd.f32 %v1519, %v1520
      %v1522 = vrot.slane %v1521, 1
      %v1523 = vadd.f32 %v1521, %v1522
      %1524 = vst.msk [vmem:[%s388 + $0x1] sm:$0x1] %vm1493, %v1523
      %v1525 = vld [vmem:[%s5] sm:$0x3]
      %v1527 = vsel %vm442, %v1525, 0
      %1529 = vmatpush.bf16.msra.mxu0 0
      %1530 = vmatpush.bf16.msra.mxu0 0
      %1531 = vmatpush.bf16.msra.mxu0 0
      %1532 = vmatpush.bf16.msra.mxu0 0
      %1533 = vmatpush.bf16.msra.mxu0 0
      %1534 = vmatpush.bf16.msra.mxu0 0
      %1535 = vmatpush.bf16.msra.mxu0 0
      %1536 = vmatpush.bf16.msra.mxu0 %v1527
      %1537 = vmatmul.bf16.gmra.mxu0 %v849
      %v1538 = vpop.f32.mrf.mxu0
      %v1539 = vadd.f32 0.0, %v1538
      %v1540 = vpop.f32.mrf.mxu0
      %v1541 = vadd.f32 0.0, %v1540
      %1542 = vmatmul.bf16.gmra.mxu0 %v852
      %v1543 = vpop.f32.mrf.mxu0
      %v1544 = vadd.f32 0.0, %v1543
      %v1545 = vpop.f32.mrf.mxu0
      %v1546 = vadd.f32 0.0, %v1545
      %1547 = vmatmul.bf16.gmra.mxu0 %v855
      %v1548 = vpop.f32.mrf.mxu0
      %v1549 = vadd.f32 0.0, %v1548
      %v1550 = vpop.f32.mrf.mxu0
      %v1551 = vadd.f32 0.0, %v1550
      %1552 = vmatmul.bf16.gmra.mxu0 %v858
      %v1553 = vpop.f32.mrf.mxu0
      %v1554 = vadd.f32 0.0, %v1553
      %v1555 = vpop.f32.mrf.mxu0
      %v1556 = vadd.f32 0.0, %v1555
      %1557 = vdwg.mxu0
      %v1558 = vpack.c.bf16 %v1539, %v1539
      %v1559 = vpack.c.bf16 %v1541, %v1541
      %v1560 = vpack.c.bf16 %v1544, %v1544
      %v1561 = vpack.c.bf16 %v1546, %v1546
      %v1562 = vpack.c.bf16 %v1549, %v1549
      %v1563 = vpack.c.bf16 %v1551, %v1551
      %v1564 = vpack.c.bf16 %v1554, %v1554
      %v1565 = vpack.c.bf16 %v1556, %v1556
      %1566 = vst.msk [vmem:[%s384] sm:$0xf] %vm1462, %v1558
      %1567 = vst.msk [vmem:[%s384 + $0x4] sm:$0xf] %vm1462, %v1559
      %1568 = vst.msk [vmem:[%s384 + $0x8] sm:$0xf] %vm1462, %v1560
      %1569 = vst.msk [vmem:[%s384 + $0xc] sm:$0xf] %vm1462, %v1561
      %1570 = vst.msk [vmem:[%s384 + $0x10] sm:$0xf] %vm1462, %v1562
      %1571 = vst.msk [vmem:[%s384 + $0x14] sm:$0xf] %vm1462, %v1563
      %1572 = vst.msk [vmem:[%s384 + $0x18] sm:$0xf] %vm1462, %v1564
      %1573 = vst.msk [vmem:[%s384 + $0x1c] sm:$0xf] %vm1462, %v1565
      %v1574 = vsel %vm1471, %v1539, 0.0
      %v1575 = vsel %vm1471, %v1541, 0.0
      %v1576 = vadd.f32 %v1574, %v1575
      %v1577 = vsel %vm1471, %v1544, 0.0
      %v1578 = vadd.f32 %v1576, %v1577
      %v1579 = vsel %vm1471, %v1546, 0.0
      %v1580 = vadd.f32 %v1578, %v1579
      %v1581 = vsel %vm1471, %v1549, 0.0
      %v1582 = vadd.f32 %v1580, %v1581
      %v1583 = vsel %vm1471, %v1551, 0.0
      %v1584 = vadd.f32 %v1582, %v1583
      %v1585 = vsel %vm1471, %v1554, 0.0
      %v1586 = vadd.f32 %v1584, %v1585
      %v1587 = vsel %vm1471, %v1556, 0.0
      %v1588 = vadd.f32 %v1586, %v1587
      %v1589 = vrot.slane %v1588, 4
      %v1590 = vadd.f32 %v1588, %v1589
      %v1591 = vrot.slane %v1590, 2
      %v1592 = vadd.f32 %v1590, %v1591
      %v1593 = vrot.slane %v1592, 1
      %v1594 = vadd.f32 %v1592, %v1593
      %1595 = vst.msk [vmem:[%s388 + $0x2] sm:$0x1] %vm1493, %v1594
      %v1596 = vmul.f32 %v1539, %v1539
      %v1597 = vmul.f32 %v1541, %v1541
      %v1598 = vmul.f32 %v1544, %v1544
      %v1599 = vmul.f32 %v1546, %v1546
      %v1600 = vmul.f32 %v1549, %v1549
      %v1601 = vmul.f32 %v1551, %v1551
      %v1602 = vmul.f32 %v1554, %v1554
      %v1603 = vmul.f32 %v1556, %v1556
      %v1604 = vsel %vm1471, %v1596, 0.0
      %v1605 = vsel %vm1471, %v1597, 0.0
      %v1606 = vadd.f32 %v1604, %v1605
      %v1607 = vsel %vm1471, %v1598, 0.0
      %v1608 = vadd.f32 %v1606, %v1607
      %v1609 = vsel %vm1471, %v1599, 0.0
      %v1610 = vadd.f32 %v1608, %v1609
      %v1611 = vsel %vm1471, %v1600, 0.0
      %v1612 = vadd.f32 %v1610, %v1611
      %v1613 = vsel %vm1471, %v1601, 0.0
      %v1614 = vadd.f32 %v1612, %v1613
      %v1615 = vsel %vm1471, %v1602, 0.0
      %v1616 = vadd.f32 %v1614, %v1615
      %v1617 = vsel %vm1471, %v1603, 0.0
      %v1618 = vadd.f32 %v1616, %v1617
      %v1619 = vrot.slane %v1618, 4
      %v1620 = vadd.f32 %v1618, %v1619
      %v1621 = vrot.slane %v1620, 2
      %v1622 = vadd.f32 %v1620, %v1621
      %v1623 = vrot.slane %v1622, 1
      %v1624 = vadd.f32 %v1622, %v1623
      %1625 = vst.msk [vmem:[%s388 + $0x3] sm:$0x1] %vm1493, %v1624
      %p1626 = scmp.lt.s32.totalorder %s20, 1
      %s1627 = scalar_select %p1626, %s20, 1
      %s1628 = smul.addr %s1627, 8
      %s1629 = smul.addr %s1628, 4
      %s1630 = scalar_lea.vmem %s6, %s1629
      %p1631 = scmp.lt.s32.totalorder %s20, 1
      %s1632 = scalar_select %p1631, %s20, 1
      %s1633 = smul.addr %s1632, 8
      %s1634 = smul.addr %s1633, 4
      %s1635 = scalar_lea.vmem %s7, %s1634
      %p1636 = scmp.lt.s32.totalorder %s20, 1
      %s1637 = scalar_select %p1636, %s20, 1
      %s1638 = smul.addr %s1637, 4
      %s1639 = scalar_lea.vmem %s8, %s1638
      // Predicated region
      $region45: #{basic_block_forward.4} parent=43 // pred_check
        %p1640 = pneg %p184
      $region46: #{basic_block_forward.4} parent=43 // pred_check_branch
        %1642 = sbr.rel (%p1640) target = $region48
      $region47: #{basic_block_forward.4} parent=43 // pred_region
        _
      $region48: #{basic_block_forward.4} parent=43 // pred_fallthru
        _
      // Predicated region
      $region49: #{basic_block_forward.4} parent=43 // pred_check
        %p1643 = pneg %p210
      $region50: #{basic_block_forward.4} parent=43 // pred_check_branch
        %1645 = sbr.rel (%p1643) target = $region52
      $region51: #{basic_block_forward.4} parent=43 // pred_region
        _
      $region52: #{basic_block_forward.4} parent=43 // pred_fallthru
        _
      // Predicated region
      $region53: #{basic_block_forward.4} parent=43 // pred_check
        %p1646 = pneg %p236
      $region54: #{basic_block_forward.4} parent=43 // pred_check_branch
        %1648 = sbr.rel (%p1646) target = $region56
      $region55: #{basic_block_forward.4} parent=43 // pred_region
        _
      $region56: #{basic_block_forward.4} parent=43 // pred_fallthru
        _
    $region44: #{basic_block_forward.4} parent=5 // pred_fallthru
      _
    %p1649 = scmp.le.s32.totalorder 2, %s15
    // Predicated region
    $region57: #{basic_block_forward.4} parent=5 // pred_check
      %p1650 = pneg %p1649
    $region58: #{basic_block_forward.4} parent=5 // pred_check_branch
      %1652 = sbr.rel (%p1650) target = $region60
    $region59: #{basic_block_forward.4} parent=5 // pred_region
      %s1653 = ssub.s32 %s15, 2
      // Predicated region
      $region61: #{basic_block_forward.4} parent=59 // pred_check
        %p1654 = pneg %p190
      $region62: #{basic_block_forward.4} parent=59 // pred_check_branch
        %1656 = sbr.rel (%p1654) target = $region64
      $region63: #{basic_block_forward.4} parent=59 // pred_region
        %p1657 = scmp.lt.s32.totalorder %s21, 1
        %s1658 = scalar_select %p1657, %s21, 1
        %s1659 = smul.addr %s1658, 8
        %s1660 = smul.addr %s1659, 4
        %s1661 = scalar_lea.vmem %s6, %s1660
      $region64: #{basic_block_forward.4} parent=59 // pred_fallthru
        _
      // Predicated region
      $region65: #{basic_block_forward.4} parent=59 // pred_check
        %p1662 = pneg %p216
      $region66: #{basic_block_forward.4} parent=59 // pred_check_branch
        %1664 = sbr.rel (%p1662) target = $region68
      $region67: #{basic_block_forward.4} parent=59 // pred_region
        %p1665 = scmp.lt.s32.totalorder %s21, 1
        %s1666 = scalar_select %p1665, %s21, 1
        %s1667 = smul.addr %s1666, 8
        %s1668 = smul.addr %s1667, 4
        %s1669 = scalar_lea.vmem %s7, %s1668
      $region68: #{basic_block_forward.4} parent=59 // pred_fallthru
        _
      // Predicated region
      $region69: #{basic_block_forward.4} parent=59 // pred_check
        %p1670 = pneg %p242
      $region70: #{basic_block_forward.4} parent=59 // pred_check_branch
        %1672 = sbr.rel (%p1670) target = $region72
      $region71: #{basic_block_forward.4} parent=59 // pred_region
        %p1673 = scmp.lt.s32.totalorder %s21, 1
        %s1674 = scalar_select %p1673, %s21, 1
        %s1675 = smul.addr %s1674, 4
        %s1676 = scalar_lea.vmem %s8, %s1675
      $region72: #{basic_block_forward.4} parent=59 // pred_fallthru
        _
    $region60: #{basic_block_forward.4} parent=5 // pred_fallthru
      _
  $region6: #{basic_block_forward.4} parent=0 // loop_footer
    %s19 = sadd.s32 1, %s15
  $region7: #{basic_block_forward.4} parent=0 // loop_footer_branch
    %14 = sbr.rel target = $region3
  $region8: #{basic_block_forward.4} parent=0 // loop_exit
    _

// kernel: basic_block_forward.6
$region0: #{basic_block_forward.6}
  #allocation0 [shape = 'u32[]', space=smem, size = 0x4, offset = 0x4, fixed_abs, tag = 'smem constant byte address 0x4 - core index']
  #allocation1 [shape = 'u32[72,128]{1,0:T(1,128)}', space=vmem, size = 0x9000, scoped, tag = 'internal scratch']
  %s0 = inlined_call_operand.vmem [shape: bf16[2,10,10,8], index: 0, kind: input, shape index: {}]
  %s1 = inlined_call_operand.vmem [shape: bf16[9,8,8], index: 1, kind: input, shape index: {}]
  %s2 = inlined_call_operand.vmem [shape: bf16[2,64,8], index: 2, kind: output, shape index: {0}]
  %s3 = inlined_call_operand.vmem [shape: f32[2,2,8], index: 3, kind: output, shape index: {1}]
  %4 = xla_tuple %s2, %s3
  %s5 = sld [smem:[#allocation0]]
  $region49: #{basic_block_forward.6} parent=0
    _
  %s7 = ssub.s32 1, %s5
  %s8 = scalar_select 0, %s7, %s5
  loop: start=0, step=1, limit=4
  $region2: #{basic_block_forward.6} parent=0 // loop_pre_header
    _
  $region3: #{basic_block_forward.6} parent=0 // loop_header
    %s10 = sphi 0, %s14
    %p11 = scmp.ge.s32.totalorder %s10, 4
    %s20 = sphi 0, %s22
    %s23 = sphi 0, %s20
    %s24 = sphi 0, %s23
    %s40 = sphi 0, %s24
    %s44 = sphi 0, %s44
    %s46 = sphi 0, %s44
    %s47 = sphi 0, %s46
    %s61 = sphi 0, %s47
    %s67 = sphi 0, %s69
    %s70 = sphi 0, %s67
    %s71 = sphi 0, %s70
    %s87 = sphi 0, %s71
    %s93 = sphi 0, %s95
    %s96 = sphi 0, %s93
    %s97 = sphi 0, %s96
    %s113 = sphi 0, %s97
  $region4: #{basic_block_forward.6} parent=0 // loop_header_branch
    %13 = sbr.rel (%p11) target = $region8
  $region5: #{basic_block_forward.6} parent=0 // loop_body
    %s15 = ssub.s32 %s10, 1
    %s16 = ssub.s32 %s10, 2
    %s17 = sadd.s32 %s10, 1
    %s18 = ssub.s32 %s10, %s17
    %p19 = scmp.eq.s32.totalorder %s18, 0
    %s21 = sadd.s32 %s20, 1
    %s22 = scalar_select %p19, %s20, %s21
    %p25 = pneg %p19
    %p26 = scmp.eq.s32.totalorder %s10, 1
    %p27 = por %p25, %p26
    %p28 = scmp.ne.s32.totalorder %s20, %s23
    %p29 = scmp.eq.s32.totalorder %s10, 0
    %p30 = por %p28, %p29
    %p31 = scmp.ne.s32.totalorder %s20, %s23
    %p32 = scmp.eq.s32.totalorder %s15, 1
    %p33 = por %p31, %p32
    %p34 = scmp.ne.s32.totalorder %s23, %s24
    %p35 = scmp.eq.s32.totalorder %s15, 0
    %p36 = por %p34, %p35
    %p37 = scmp.ne.s32.totalorder %s23, %s24
    %p38 = scmp.eq.s32.totalorder %s16, 1
    %p39 = por %p37, %p38
    %p41 = scmp.ne.s32.totalorder %s24, %s40
    %p42 = scmp.eq.s32.totalorder %s16, 0
    %p43 = por %p41, %p42
    %s45 = sadd.s32 %s44, 1
    %p48 = scmp.eq.s32.totalorder %s10, 1
    %p49 = scmp.ne.s32.totalorder %s44, %s46
    %p50 = scmp.eq.s32.totalorder %s10, 0
    %p51 = por %p49, %p50
    %p52 = scmp.ne.s32.totalorder %s44, %s46
    %p53 = scmp.eq.s32.totalorder %s15, 1
    %p54 = por %p52, %p53
    %p55 = scmp.ne.s32.totalorder %s46, %s47
    %p56 = scmp.eq.s32.totalorder %s15, 0
    %p57 = por %p55, %p56
    %p58 = scmp.ne.s32.totalorder %s46, %s47
    %p59 = scmp.eq.s32.totalorder %s16, 1
    %p60 = por %p58, %p59
    %p62 = scmp.ne.s32.totalorder %s47, %s61
    %p63 = scmp.eq.s32.totalorder %s16, 0
    %p64 = por %p62, %p63
    %s65 = ssub.s32 %s10, %s17
    %p66 = scmp.eq.s32.totalorder %s65, 0
    %s68 = sadd.s32 %s67, 1
    %s69 = scalar_select %p66, %s67, %s68
    %p72 = pneg %p66
    %p73 = scmp.eq.s32.totalorder %s10, 1
    %p74 = por %p72, %p73
    %p75 = scmp.ne.s32.totalorder %s67, %s70
    %p76 = scmp.eq.s32.totalorder %s10, 0
    %p77 = por %p75, %p76
    %p78 = scmp.ne.s32.totalorder %s67, %s70
    %p79 = scmp.eq.s32.totalorder %s15, 1
    %p80 = por %p78, %p79
    %p81 = scmp.ne.s32.totalorder %s70, %s71
    %p82 = scmp.eq.s32.totalorder %s15, 0
    %p83 = por %p81, %p82
    %p84 = scmp.ne.s32.totalorder %s70, %s71
    %p85 = scmp.eq.s32.totalorder %s16, 1
    %p86 = por %p84, %p85
    %p88 = scmp.ne.s32.totalorder %s71, %s87
    %p89 = scmp.eq.s32.totalorder %s16, 0
    %p90 = por %p88, %p89
    %s91 = ssub.s32 %s10, %s17
    %p92 = scmp.eq.s32.totalorder %s91, 0
    %s94 = sadd.s32 %s93, 1
    %s95 = scalar_select %p92, %s93, %s94
    %p98 = pneg %p92
    %p99 = scmp.eq.s32.totalorder %s10, 1
    %p100 = por %p98, %p99
    %p101 = scmp.ne.s32.totalorder %s93, %s96
    %p102 = scmp.eq.s32.totalorder %s10, 0
    %p103 = por %p101, %p102
    %p104 = scmp.ne.s32.totalorder %s93, %s96
    %p105 = scmp.eq.s32.totalorder %s15, 1
    %p106 = por %p104, %p105
    %p107 = scmp.ne.s32.totalorder %s96, %s97
    %p108 = scmp.eq.s32.totalorder %s15, 0
    %p109 = por %p107, %p108
    %p110 = scmp.ne.s32.totalorder %s96, %s97
    %p111 = scmp.eq.s32.totalorder %s16, 1
    %p112 = por %p110, %p111
    %p114 = scmp.ne.s32.totalorder %s97, %s113
    %p115 = scmp.eq.s32.totalorder %s16, 0
    %p116 = por %p114, %p115
    %p117 = scmp.le.s32.totalorder 1, %s10
    %p118 = scmp.lt.s32.totalorder %s10, 3
    %p119 = pnand %p117, %p118
    %p120 = pneg %p119
    // Predicated region
    $region9: #{basic_block_forward.6} parent=5 // pred_check
      _
    $region10: #{basic_block_forward.6} parent=5 // pred_check_branch
      %122 = sbr.rel (%p119) target = $region12
    $region11: #{basic_block_forward.6} parent=5 // pred_region
      %s123 = ssub.s32 %s10, 1
      // Predicated region
      $region13: #{basic_block_forward.6} parent=11 // pred_check
        %p124 = pneg %p57
      $region14: #{basic_block_forward.6} parent=11 // pred_check_branch
        %126 = sbr.rel (%p124) target = $region16
      $region15: #{basic_block_forward.6} parent=11 // pred_region
        _
      $region16: #{basic_block_forward.6} parent=11 // pred_fallthru
        _
    $region12: #{basic_block_forward.6} parent=5 // pred_fallthru
      _
    %p127 = scmp.lt.s32.totalorder %s10, 2
    // Predicated region
    $region17: #{basic_block_forward.6} parent=5 // pred_check
      %p128 = pneg %p127
    $region18: #{basic_block_forward.6} parent=5 // pred_check_branch
      %130 = sbr.rel (%p128) target = $region20
    $region19: #{basic_block_forward.6} parent=5 // pred_region
      // Predicated region
      $region21: #{basic_block_forward.6} parent=19 // pred_check
        %p131 = pneg %p30
      $region22: #{basic_block_forward.6} parent=19 // pred_check_branch
        %133 = sbr.rel (%p131) target = $region24
      $region23: #{basic_block_forward.6} parent=19 // pred_region
        %p134 = scmp.lt.s32.totalorder %s10, 1
        %s135 = scalar_select %p134, %s10, 1
        %s136 = smul.addr %s135, 20
        %s137 = smul.addr %s136, 4
        %s138 = scalar_lea.vmem %s0, %s137
      $region24: #{basic_block_forward.6} parent=19 // pred_fallthru
        _
    $region20: #{basic_block_forward.6} parent=5 // pred_fallthru
      _
    %p139 = scmp.le.s32.totalorder 1, %s10
    %p140 = scmp.lt.s32.totalorder %s10, 3
    %p141 = pnand %p139, %p140
    %p142 = pneg %p141
    // Predicated region
    $region25: #{basic_block_forward.6} parent=5 // pred_check
      _
    $region26: #{basic_block_forward.6} parent=5 // pred_check_branch
      %144 = sbr.rel (%p141) target = $region28
    $region27: #{basic_block_forward.6} parent=5 // pred_region
      %s145 = ssub.s32 %s10, 1
      %p146 = scmp.lt.s32.totalorder %s15, 1
      %s147 = scalar_select %p146, %s15, 1
      %s148 = smul.addr %s147, 20
      %s149 = smul.addr %s148, 4
      %s150 = scalar_lea.vmem %s0, %s149
      %p151 = pneg %p36
      %p152 = pneg %p33
      %p153 = pneg %p57
      %p154 = pneg %p54
      %p155 = pneg %p83
      %p156 = pneg %p80
      %p157 = scmp.lt.s32.totalorder %s15, 1
      %s158 = scalar_select %p157, %s15, 1
      %s159 = smul.addr %s158, 8
      %s160 = smul.addr %s159, 4
      %s161 = scalar_lea.vmem %s2, %s160
      %p162 = pneg %p109
      %p163 = pneg %p106
      %p164 = scmp.lt.s32.totalorder %s15, 1
      %s165 = scalar_select %p164, %s15, 1
      %s166 = smul.addr %s165, 2
      %s167 = scalar_lea.vmem %s3, %s166
      %p168 = scmp.lt.s32.totalorder %s15, 1
      %s169 = scalar_select %p168, %s15, 1
      %s170 = smul.addr %s169, 20
      %s171 = smul.addr %s170, 4
      %s172 = scalar_lea.vmem %s0, %s171
      %p173 = scmp.lt.s32.totalorder %s15, 1
      %s174 = scalar_select %p173, %s15, 1
      %s175 = smul.addr %s174, 8
      %s176 = smul.addr %s175, 4
      %s177 = scalar_lea.vmem %s2, %s176
      %p178 = scmp.lt.s32.totalorder %s15, 1
      %s179 = scalar_select %p178, %s15, 1
      %s180 = smul.addr %s179, 2
      %s181 = scalar_lea.vmem %s3, %s180
      %v183 = vld [vmem:[%s172] sm:$0xf]
      %v184 = vld [vmem:[%s172 + $0x8] sm:$0xf]
      %v185 = vld [vmem:[%s172 + $0x10] sm:$0xf]
      %v186 = vld [vmem:[%s172 + $0x18] sm:$0xf]
      %v187 = vld [vmem:[%s172 + $0x20] sm:$0xf]
      %v188 = vld [vmem:[%s172 + $0x28] sm:$0xf]
      %v189 = vld [vmem:[%s172 + $0x30] sm:$0xf]
      %v190 = vld [vmem:[%s172 + $0x38] sm:$0xf]
      %v191 = vld [vmem:[%s1] sm:$0xf]
      %v192 = vld [vmem:[%s172 + $0x4] sm:$0x1]
      %v193 = vld [vmem:[%s172 + $0xc] sm:$0x1]
      %v194 = vld [vmem:[%s172 + $0x14] sm:$0x1]
      %v195 = vld [vmem:[%s172 + $0x1c] sm:$0x1]
      %v196 = vld [vmem:[%s172 + $0x24] sm:$0x1]
      %v197 = vld [vmem:[%s172 + $0x2c] sm:$0x1]
      %v198 = vld [vmem:[%s172 + $0x34] sm:$0x1]
      %v199 = vld [vmem:[%s172 + $0x3c] sm:$0x1]
      %vm200 = vsmask.f32 3328
      %vm201 = vsmask.f32 7440
      %vm202 = vmor %vm200, %vm201
      %v204 = vshrl.u32 %v183, 16
      %v206 = vrot.slane %v204, 4
      %v207 = vshll.u32 %v183, 16
      %v209 = vrot.slane %v207, 5
      %v210 = vor.u32 %v206, %v209
      %v211 = vrot.slane %v210, 4
      %v213 = vshll.u32 %v192, 16
      %v215 = vrot.slane %v213, 5
      %v216 = vsel %vm202, %v211, %v215
      %v218 = vshrl.u32 %v184, 16
      %v220 = vrot.slane %v218, 4
      %v221 = vshll.u32 %v184, 16
      %v223 = vrot.slane %v221, 5
      %v224 = vor.u32 %v220, %v223
      %v225 = vrot.slane %v224, 4
      %v227 = vshll.u32 %v193, 16
      %v229 = vrot.slane %v227, 5
      %v230 = vsel %vm202, %v225, %v229
      %v232 = vshrl.u32 %v185, 16
      %v234 = vrot.slane %v232, 4
      %v235 = vshll.u32 %v185, 16
      %v237 = vrot.slane %v235, 5
      %v238 = vor.u32 %v234, %v237
      %v239 = vrot.slane %v238, 4
      %v241 = vshll.u32 %v194, 16
      %v243 = vrot.slane %v241, 5
      %v244 = vsel %vm202, %v239, %v243
      %v246 = vshrl.u32 %v186, 16
      %v248 = vrot.slane %v246, 4
      %v249 = vshll.u32 %v186, 16
      %v251 = vrot.slane %v249, 5
      %v252 = vor.u32 %v248, %v251
      %v253 = vrot.slane %v252, 4
      %v255 = vshll.u32 %v195, 16
      %v257 = vrot.slane %v255, 5
      %v258 = vsel %vm202, %v253, %v257
      %v260 = vshrl.u32 %v187, 16
      %v262 = vrot.slane %v260, 4
      %v263 = vshll.u32 %v187, 16
      %v265 = vrot.slane %v263, 5
      %v266 = vor.u32 %v262, %v265
      %v267 = vrot.slane %v266, 4
      %v269 = vshll.u32 %v196, 16
      %v271 = vrot.slane %v269, 5
      %v272 = vsel %vm202, %v267, %v271
      %v274 = vshrl.u32 %v188, 16
      %v276 = vrot.slane %v274, 4
      %v277 = vshll.u32 %v188, 16
      %v279 = vrot.slane %v277, 5
      %v280 = vor.u32 %v276, %v279
      %v281 = vrot.slane %v280, 4
      %v283 = vshll.u32 %v197, 16
      %v285 = vrot.slane %v283, 5
      %v286 = vsel %vm202, %v281, %v285
      %v288 = vshrl.u32 %v189, 16
      %v290 = vrot.slane %v288, 4
      %v291 = vshll.u32 %v189, 16
      %v293 = vrot.slane %v291, 5
      %v294 = vor.u32 %v290, %v293
      %v295 = vrot.slane %v294, 4
      %v297 = vshll.u32 %v198, 16
      %v299 = vrot.slane %v297, 5
      %v300 = vsel %vm202, %v295, %v299
      %v302 = vshrl.u32 %v190, 16
      %v304 = vrot.slane %v302, 4
      %v305 = vshll.u32 %v190, 16
      %v307 = vrot.slane %v305, 5
      %v308 = vor.u32 %v304, %v307
      %v309 = vrot.slane %v308, 4
      %v311 = vshll.u32 %v199, 16
      %v313 = vrot.slane %v311, 5
      %v314 = vsel %vm202, %v309, %v313
      %s315 = scalar_lea.vmem %s1, 4
      %v316 = vld [vmem:[%s315] sm:$0xf]
      %v317 = vunpack.c.l.b16 %v216
      %v318 = vunpack.c.l.b16 %v230
      %v319 = vunpack.c.l.b16 %v244
      %v320 = vunpack.c.l.b16 %v258
      %v321 = vunpack.c.l.b16 %v272
      %v322 = vunpack.c.l.b16 %v286
      %v323 = vunpack.c.l.b16 %v300
      %v324 = vunpack.c.l.b16 %v314
      %v325 = vpack.c.b16 %v318, %v317
      %v326 = vpack.c.b16 %v320, %v319
      %v327 = vpack.c.b16 %v322, %v321
      %v328 = vpack.c.b16 %v324, %v323
      %vm329 = vcmask 64512
      %v331 = vsel %vm329, %v325, 0
      %v334 = vsel %vm329, %v326, 0
      %v337 = vsel %vm329, %v327, 0
      %v340 = vsel %vm329, %v328, 0
      %vm342 = vcmask 1043456
      %v344 = vsel %vm342, %v316, 0
      %346 = vmatpush.bf16.msra.mxu0 0
      %347 = vmatpush.bf16.msra.mxu0 0
      %348 = vmatpush.bf16.msra.mxu0 0
      %349 = vmatpush.bf16.msra.mxu0 0
      %350 = vmatpush.bf16.msra.mxu0 0
      %351 = vmatpush.bf16.msra.mxu0 0
      %352 = vmatpush.bf16.msra.mxu0 0
      %353 = vmatpush.bf16.msra.mxu0 %v344
      %354 = vmatmul.bf16.gmra.mxu0 %v331
      %v355 = vpop.f32.mrf.mxu0
      %v356 = vadd.f32 0.0, %v355
      %v357 = vpop.f32.mrf.mxu0
      %v358 = vadd.f32 0.0, %v357
      %359 = vmatmul.bf16.gmra.mxu0 %v334
      %v360 = vpop.f32.mrf.mxu0
      %v361 = vadd.f32 0.0, %v360
      %v362 = vpop.f32.mrf.mxu0
      %v363 = vadd.f32 0.0, %v362
      %364 = vmatmul.bf16.gmra.mxu0 %v337
      %v365 = vpop.f32.mrf.mxu0
      %v366 = vadd.f32 0.0, %v365
      %v367 = vpop.f32.mrf.mxu0
      %v368 = vadd.f32 0.0, %v367
      %369 = vmatmul.bf16.gmra.mxu0 %v340
      %v370 = vpop.f32.mrf.mxu0
      %v371 = vadd.f32 0.0, %v370
      %v372 = vpop.f32.mrf.mxu0
      %v373 = vadd.f32 0.0, %v372
      %374 = vdwg.mxu0
      %v383 = vunpack.c.l.b16 %v183
      %v384 = vunpack.c.l.b16 %v184
      %v385 = vunpack.c.l.b16 %v185
      %v386 = vunpack.c.l.b16 %v186
      %v387 = vunpack.c.l.b16 %v187
      %v388 = vunpack.c.l.b16 %v188
      %v389 = vunpack.c.l.b16 %v189
      %v390 = vunpack.c.l.b16 %v190
      %v391 = vpack.c.b16 %v384, %v383
      %v392 = vpack.c.b16 %v386, %v385
      %v393 = vpack.c.b16 %v388, %v387
      %v394 = vpack.c.b16 %v390, %v389
      %v396 = vsel %vm329, %v391, 0
      %v399 = vsel %vm329, %v392, 0
      %v402 = vsel %vm329, %v393, 0
      %v405 = vsel %vm329, %v394, 0
      %v408 = vsel %vm342, %v191, 0
      %410 = vmatpush.bf16.msra.mxu0 0
      %411 = vmatpush.bf16.msra.mxu0 0
      %412 = vmatpush.bf16.msra.mxu0 0
      %413 = vmatpush.bf16.msra.mxu0 0
      %414 = vmatpush.bf16.msra.mxu0 0
      %415 = vmatpush.bf16.msra.mxu0 0
      %416 = vmatpush.bf16.msra.mxu0 0
      %417 = vmatpush.bf16.msra.mxu0 %v408
      %418 = vmatmul.bf16.gmra.mxu0 %v396
      %v419 = vpop.f32.mrf.mxu0
      %v420 = vadd.f32 %v356, %v419
      %v421 = vpop.f32.mrf.mxu0
      %v422 = vadd.f32 %v358, %v421
      %423 = vmatmul.bf16.gmra.mxu0 %v399
      %v424 = vpop.f32.mrf.mxu0
      %v425 = vadd.f32 %v361, %v424
      %v426 = vpop.f32.mrf.mxu0
      %v427 = vadd.f32 %v363, %v426
      %428 = vmatmul.bf16.gmra.mxu0 %v402
      %v429 = vpop.f32.mrf.mxu0
      %v430 = vadd.f32 %v366, %v429
      %v431 = vpop.f32.mrf.mxu0
      %v432 = vadd.f32 %v368, %v431
      %433 = vmatmul.bf16.gmra.mxu0 %v405
      %v434 = vpop.f32.mrf.mxu0
      %v435 = vadd.f32 %v371, %v434
      %v436 = vpop.f32.mrf.mxu0
      %v437 = vadd.f32 %v373, %v436
      %438 = vdwg.mxu0
      %v439 = vld [vmem:[%s172] sm:$0xe]
      %v440 = vld [vmem:[%s172 + $0x8] sm:$0xe]
      %v441 = vld [vmem:[%s172 + $0x10] sm:$0xe]
      %v442 = vld [vmem:[%s172 + $0x18] sm:$0xe]
      %v443 = vld [vmem:[%s172 + $0x20] sm:$0xe]
      %v444 = vld [vmem:[%s172 + $0x28] sm:$0xe]
      %v445 = vld [vmem:[%s172 + $0x30] sm:$0xe]
      %v446 = vld [vmem:[%s172 + $0x38] sm:$0xe]
      %vm463 = vcmask 1042432
      %vm464 = vcmask 1046532
      %vm465 = vmor %vm463, %vm464
      %v466 = vrot.slane %v439, 5
      %v467 = vrot.slane %v466, 4
      %v468 = vrot.slane %v192, 5
      %v469 = vsel %vm465, %v467, %v468
      %v470 = vrot.slane %v440, 5
      %v471 = vrot.slane %v470, 4
      %v472 = vrot.slane %v193, 5
      %v473 = vsel %vm465, %v471, %v472
      %v474 = vrot.slane %v441, 5
      %v475 = vrot.slane %v474, 4
      %v476 = vrot.slane %v194, 5
      %v477 = vsel %vm465, %v475, %v476
      %v478 = vrot.slane %v442, 5
      %v479 = vrot.slane %v478, 4
      %v480 = vrot.slane %v195, 5
      %v481 = vsel %vm465, %v479, %v480
      %v482 = vrot.slane %v443, 5
      %v483 = vrot.slane %v482, 4
      %v484 = vrot.slane %v196, 5
      %v485 = vsel %vm465, %v483, %v484
      %v486 = vrot.slane %v444, 5
      %v487 = vrot.slane %v486, 4
      %v488 = vrot.slane %v197, 5
      %v489 = vsel %vm465, %v487, %v488
      %v490 = vrot.slane %v445, 5
      %v491 = vrot.slane %v490, 4
      %v492 = vrot.slane %v198, 5
      %v493 = vsel %vm465, %v491, %v492
      %v494 = vrot.slane %v446, 5
      %v495 = vrot.slane %v494, 4
      %v496 = vrot.slane %v199, 5
      %v497 = vsel %vm465, %v495, %v496
      %s498 = scalar_lea.vmem %s1, 8
      %v499 = vld [vmem:[%s498] sm:$0xf]
      %v500 = vunpack.c.l.b16 %v469
      %v501 = vunpack.c.l.b16 %v473
      %v502 = vunpack.c.l.b16 %v477
      %v503 = vunpack.c.l.b16 %v481
      %v504 = vunpack.c.l.b16 %v485
      %v505 = vunpack.c.l.b16 %v489
      %v506 = vunpack.c.l.b16 %v493
      %v507 = vunpack.c.l.b16 %v497
      %v508 = vpack.c.b16 %v501, %v500
      %v509 = vpack.c.b16 %v503, %v502
      %v510 = vpack.c.b16 %v505, %v504
      %v511 = vpack.c.b16 %v507, %v506
      %v513 = vsel %vm329, %v508, 0
      %v516 = vsel %vm329, %v509, 0
      %v519 = vsel %vm329, %v510, 0
      %v522 = vsel %vm329, %v511, 0
      %v525 = vsel %vm342, %v499, 0
      %527 = vmatpush.bf16.msra.mxu0 0
      %528 = vmatpush.bf16.msra.mxu0 0
      %529 = vmatpush.bf16.msra.mxu0 0
      %530 = vmatpush.bf16.msra.mxu0 0
      %531 = vmatpush.bf16.msra.mxu0 0
      %532 = vmatpush.bf16.msra.mxu0 0
      %533 = vmatpush.bf16.msra.mxu0 0
      %534 = vmatpush.bf16.msra.mxu0 %v525
      %535 = vmatmul.bf16.gmra.mxu0 %v513
      %v536 = vpop.f32.mrf.mxu0
      %v537 = vadd.f32 0.0, %v536
      %v538 = vpop.f32.mrf.mxu0
      %v539 = vadd.f32 0.0, %v538
      %540 = vmatmul.bf16.gmra.mxu0 %v516
      %v541 = vpop.f32.mrf.mxu0
      %v542 = vadd.f32 0.0, %v541
      %v543 = vpop.f32.mrf.mxu0
      %v544 = vadd.f32 0.0, %v543
      %545 = vmatmul.bf16.gmra.mxu0 %v519
      %v546 = vpop.f32.mrf.mxu0
      %v547 = vadd.f32 0.0, %v546
      %v548 = vpop.f32.mrf.mxu0
      %v549 = vadd.f32 0.0, %v548
      %550 = vmatmul.bf16.gmra.mxu0 %v522
      %v551 = vpop.f32.mrf.mxu0
      %v552 = vadd.f32 0.0, %v551
      %v553 = vpop.f32.mrf.mxu0
      %v554 = vadd.f32 0.0, %v553
      %555 = vdwg.mxu0
      %v556 = vadd.f32 %v420, %v537
      %v557 = vadd.f32 %v422, %v539
      %v558 = vadd.f32 %v425, %v542
      %v559 = vadd.f32 %v427, %v544
      %v560 = vadd.f32 %v430, %v547
      %v561 = vadd.f32 %v432, %v549
      %v562 = vadd.f32 %v435, %v552
      %v563 = vadd.f32 %v437, %v554
      %s564 = scalar_lea.vmem %s172, 8
      %v565 = vld [vmem:[%s564] sm:$0xf]
      %v566 = vld [vmem:[%s564 + $0x8] sm:$0xf]
      %v567 = vld [vmem:[%s564 + $0x10] sm:$0xf]
      %v568 = vld [vmem:[%s564 + $0x18] sm:$0xf]
      %v569 = vld [vmem:[%s564 + $0x20] sm:$0xf]
      %v570 = vld [vmem:[%s564 + $0x28] sm:$0xf]
      %v571 = vld [vmem:[%s564 + $0x30] sm:$0xf]
      %v572 = vld [vmem:[%s564 + $0x38] sm:$0xf]
      %s573 = scalar_lea.vmem %s1, 12
      %v574 = vld [vmem:[%s573] sm:$0xf]
      %v583 = vunpack.c.l.b16 %v565
      %v584 = vunpack.c.l.b16 %v566
      %v585 = vunpack.c.l.b16 %v567
      %v586 = vunpack.c.l.b16 %v568
      %v587 = vunpack.c.l.b16 %v569
      %v588 = vunpack.c.l.b16 %v570
      %v589 = vunpack.c.l.b16 %v571
      %v590 = vunpack.c.l.b16 %v572
      %v591 = vpack.c.b16 %v584, %v583
      %v592 = vpack.c.b16 %v586, %v585
      %v593 = vpack.c.b16 %v588, %v587
      %v594 = vpack.c.b16 %v590, %v589
      %v596 = vsel %vm329, %v591, 0
      %v599 = vsel %vm329, %v592, 0
      %v602 = vsel %vm329, %v593, 0
      %v605 = vsel %vm329, %v594, 0
      %v608 = vsel %vm342, %v574, 0
      %610 = vmatpush.bf16.msra.mxu0 0
      %611 = vmatpush.bf16.msra.mxu0 0
      %612 = vmatpush.bf16.msra.mxu0 0
      %613 = vmatpush.bf16.msra.mxu0 0
      %614 = vmatpush.bf16.msra.mxu0 0
      %615 = vmatpush.bf16.msra.mxu0 0
      %616 = vmatpush.bf16.msra.mxu0 0
      %617 = vmatpush.bf16.msra.mxu0 %v608
      %618 = vmatmul.bf16.gmra.mxu0 %v596
      %v619 = vpop.f32.mrf.mxu0
      %v620 = vadd.f32 0.0, %v619
      %v621 = vpop.f32.mrf.mxu0
      %v622 = vadd.f32 0.0, %v621
      %623 = vmatmul.bf16.gmra.mxu0 %v599
      %v624 = vpop.f32.mrf.mxu0
      %v625 = vadd.f32 0.0, %v624
      %v626 = vpop.f32.mrf.mxu0
      %v627 = vadd.f32 0.0, %v626
      %628 = vmatmul.bf16.gmra.mxu0 %v602
      %v629 = vpop.f32.mrf.mxu0
      %v630 = vadd.f32 0.0, %v629
      %v631 = vpop.f32.mrf.mxu0
      %v632 = vadd.f32 0.0, %v631
      %633 = vmatmul.bf16.gmra.mxu0 %v605
      %v634 = vpop.f32.mrf.mxu0
      %v635 = vadd.f32 0.0, %v634
      %v636 = vpop.f32.mrf.mxu0
      %v637 = vadd.f32 0.0, %v636
      %638 = vdwg.mxu0
      %v639 = vadd.f32 %v556, %v620
      %v640 = vadd.f32 %v557, %v622
      %v641 = vadd.f32 %v558, %v625
      %v642 = vadd.f32 %v559, %v627
      %v643 = vadd.f32 %v560, %v630
      %v644 = vadd.f32 %v561, %v632
      %v645 = vadd.f32 %v562, %v635
      %v646 = vadd.f32 %v563, %v637
      %v647 = vld [vmem:[%s564] sm:$0xf]
      %v648 = vld [vmem:[%s564 + $0x4] sm:$0x1]
      %v649 = vld [vmem:[%s564 + $0x8] sm:$0xf]
      %v650 = vld [vmem:[%s564 + $0xc] sm:$0x1]
      %v651 = vld [vmem:[%s564 + $0x10] sm:$0xf]
      %v652 = vld [vmem:[%s564 + $0x14] sm:$0x1]
      %v653 = vld [vmem:[%s564 + $0x18] sm:$0xf]
      %v654 = vld [vmem:[%s564 + $0x1c] sm:$0x1]
      %v655 = vld [vmem:[%s564 + $0x20] sm:$0xf]
      %v656 = vld [vmem:[%s564 + $0x24] sm:$0x1]
      %v657 = vld [vmem:[%s564 + $0x28] sm:$0xf]
      %v658 = vld [vmem:[%s564 + $0x2c] sm:$0x1]
      %v659 = vld [vmem:[%s564 + $0x30] sm:$0xf]
      %v660 = vld [vmem:[%s564 + $0x34] sm:$0x1]
      %v661 = vld [vmem:[%s564 + $0x38] sm:$0xf]
      %v662 = vld [vmem:[%s564 + $0x3c] sm:$0x1]
      %v664 = vshrl.u32 %v647, 16
      %v666 = vrot.slane %v664, 4
      %v667 = vshll.u32 %v647, 16
      %v669 = vrot.slane %v667, 5
      %v670 = vor.u32 %v666, %v669
      %v671 = vrot.slane %v670, 4
      %v673 = vshll.u32 %v648, 16
      %v675 = vrot.slane %v673, 5
      %v676 = vsel %vm202, %v671, %v675
      %v678 = vshrl.u32 %v649, 16
      %v680 = vrot.slane %v678, 4
      %v681 = vshll.u32 %v649, 16
      %v683 = vrot.slane %v681, 5
      %v684 = vor.u32 %v680, %v683
      %v685 = vrot.slane %v684, 4
      %v687 = vshll.u32 %v650, 16
      %v689 = vrot.slane %v687, 5
      %v690 = vsel %vm202, %v685, %v689
      %v692 = vshrl.u32 %v651, 16
      %v694 = vrot.slane %v692, 4
      %v695 = vshll.u32 %v651, 16
      %v697 = vrot.slane %v695, 5
      %v698 = vor.u32 %v694, %v697
      %v699 = vrot.slane %v698, 4
      %v701 = vshll.u32 %v652, 16
      %v703 = vrot.slane %v701, 5
      %v704 = vsel %vm202, %v699, %v703
      %v706 = vshrl.u32 %v653, 16
      %v708 = vrot.slane %v706, 4
      %v709 = vshll.u32 %v653, 16
      %v711 = vrot.slane %v709, 5
      %v712 = vor.u32 %v708, %v711
      %v713 = vrot.slane %v712, 4
      %v715 = vshll.u32 %v654, 16
      %v717 = vrot.slane %v715, 5
      %v718 = vsel %vm202, %v713, %v717
      %v720 = vshrl.u32 %v655, 16
      %v722 = vrot.slane %v720, 4
      %v723 = vshll.u32 %v655, 16
      %v725 = vrot.slane %v723, 5
      %v726 = vor.u32 %v722, %v725
      %v727 = vrot.slane %v726, 4
      %v729 = vshll.u32 %v656, 16
      %v731 = vrot.slane %v729, 5
      %v732 = vsel %vm202, %v727, %v731
      %v734 = vshrl.u32 %v657, 16
      %v736 = vrot.slane %v734, 4
      %v737 = vshll.u32 %v657, 16
      %v739 = vrot.slane %v737, 5
      %v740 = vor.u32 %v736, %v739
      %v741 = vrot.slane %v740, 4
      %v743 = vshll.u32 %v658, 16
      %v745 = vrot.slane %v743, 5
      %v746 = vsel %vm202, %v741, %v745
      %v748 = vshrl.u32 %v659, 16
      %v750 = vrot.slane %v748, 4
      %v751 = vshll.u32 %v659, 16
      %v753 = vrot.slane %v751, 5
      %v754 = vor.u32 %v750, %v753
      %v755 = vrot.slane %v754, 4
      %v757 = vshll.u32 %v660, 16
      %v759 = vrot.slane %v757, 5
      %v760 = vsel %vm202, %v755, %v759
      %v762 = vshrl.u32 %v661, 16
      %v764 = vrot.slane %v762, 4
      %v765 = vshll.u32 %v661, 16
      %v767 = vrot.slane %v765, 5
      %v768 = vor.u32 %v764, %v767
      %v769 = vrot.slane %v768, 4
      %v771 = vshll.u32 %v662, 16
      %v773 = vrot.slane %v771, 5
      %v774 = vsel %vm202, %v769, %v773
      %s775 = scalar_lea.vmem %s1, 16
      %v776 = vld [vmem:[%s775] sm:$0xf]
      %v777 = vunpack.c.l.b16 %v676
      %v778 = vunpack.c.l.b16 %v690
      %v779 = vunpack.c.l.b16 %v704
      %v780 = vunpack.c.l.b16 %v718
      %v781 = vunpack.c.l.b16 %v732
      %v782 = vunpack.c.l.b16 %v746
      %v783 = vunpack.c.l.b16 %v760
      %v784 = vunpack.c.l.b16 %v774
      %v785 = vpack.c.b16 %v778, %v777
      %v786 = vpack.c.b16 %v780, %v779
      %v787 = vpack.c.b16 %v782, %v781
      %v788 = vpack.c.b16 %v784, %v783
      %v790 = vsel %vm329, %v785, 0
      %v793 = vsel %vm329, %v786, 0
      %v796 = vsel %vm329, %v787, 0
      %v799 = vsel %vm329, %v788, 0
      %v802 = vsel %vm342, %v776, 0
      %804 = vmatpush.bf16.msra.mxu0 0
      %805 = vmatpush.bf16.msra.mxu0 0
      %806 = vmatpush.bf16.msra.mxu0 0
      %807 = vmatpush.bf16.msra.mxu0 0
      %808 = vmatpush.bf16.msra.mxu0 0
      %809 = vmatpush.bf16.msra.mxu0 0
      %810 = vmatpush.bf16.msra.mxu0 0
      %811 = vmatpush.bf16.msra.mxu0 %v802
      %812 = vmatmul.bf16.gmra.mxu0 %v790
      %v813 = vpop.f32.mrf.mxu0
      %v814 = vadd.f32 0.0, %v813
      %v815 = vpop.f32.mrf.mxu0
      %v816 = vadd.f32 0.0, %v815
      %817 = vmatmul.bf16.gmra.mxu0 %v793
      %v818 = vpop.f32.mrf.mxu0
      %v819 = vadd.f32 0.0, %v818
      %v820 = vpop.f32.mrf.mxu0
      %v821 = vadd.f32 0.0, %v820
      %822 = vmatmul.bf16.gmra.mxu0 %v796
      %v823 = vpop.f32.mrf.mxu0
      %v824 = vadd.f32 0.0, %v823
      %v825 = vpop.f32.mrf.mxu0
      %v826 = vadd.f32 0.0, %v825
      %827 = vmatmul.bf16.gmra.mxu0 %v799
      %v828 = vpop.f32.mrf.mxu0
      %v829 = vadd.f32 0.0, %v828
      %v830 = vpop.f32.mrf.mxu0
      %v831 = vadd.f32 0.0, %v830
      %832 = vdwg.mxu0
      %v833 = vadd.f32 %v639, %v814
      %v834 = vadd.f32 %v640, %v816
      %v835 = vadd.f32 %v641, %v819
      %v836 = vadd.f32 %v642, %v821
      %v837 = vadd.f32 %v643, %v824
      %v838 = vadd.f32 %v644, %v826
      %v839 = vadd.f32 %v645, %v829
      %v840 = vadd.f32 %v646, %v831
      %v841 = vld [vmem:[%s564] sm:$0xe]
      %v842 = vld [vmem:[%s564 + $0x8] sm:$0xe]
      %v843 = vld [vmem:[%s564 + $0x10] sm:$0xe]
      %v844 = vld [vmem:[%s564 + $0x18] sm:$0xe]
      %v845 = vld [vmem:[%s564 + $0x20] sm:$0xe]
      %v846 = vld [vmem:[%s564 + $0x28] sm:$0xe]
      %v847 = vld [vmem:[%s564 + $0x30] sm:$0xe]
      %v848 = vld [vmem:[%s564 + $0x38] sm:$0xe]
      %v865 = vrot.slane %v841, 5
      %v866 = vrot.slane %v865, 4
      %v867 = vrot.slane %v648, 5
      %v868 = vsel %vm465, %v866, %v867
      %v869 = vrot.slane %v842, 5
      %v870 = vrot.slane %v869, 4
      %v871 = vrot.slane %v650, 5
      %v872 = vsel %vm465, %v870, %v871
      %v873 = vrot.slane %v843, 5
      %v874 = vrot.slane %v873, 4
      %v875 = vrot.slane %v652, 5
      %v876 = vsel %vm465, %v874, %v875
      %v877 = vrot.slane %v844, 5
      %v878 = vrot.slane %v877, 4
      %v879 = vrot.slane %v654, 5
      %v880 = vsel %vm465, %v878, %v879
      %v881 = vrot.slane %v845, 5
      %v882 = vrot.slane %v881, 4
      %v883 = vrot.slane %v656, 5
      %v884 = vsel %vm465, %v882, %v883
      %v885 = vrot.slane %v846, 5
      %v886 = vrot.slane %v885, 4
      %v887 = vrot.slane %v658, 5
      %v888 = vsel %vm465, %v886, %v887
      %v889 = vrot.slane %v847, 5
      %v890 = vrot.slane %v889, 4
      %v891 = vrot.slane %v660, 5
      %v892 = vsel %vm465, %v890, %v891
      %v893 = vrot.slane %v848, 5
      %v894 = vrot.slane %v893, 4
      %v895 = vrot.slane %v662, 5
      %v896 = vsel %vm465, %v894, %v895
      %s897 = scalar_lea.vmem %s1, 20
      %v898 = vld [vmem:[%s897] sm:$0xf]
      %v899 = vunpack.c.l.b16 %v868
      %v900 = vunpack.c.l.b16 %v872
      %v901 = vunpack.c.l.b16 %v876
      %v902 = vunpack.c.l.b16 %v880
      %v903 = vunpack.c.l.b16 %v884
      %v904 = vunpack.c.l.b16 %v888
      %v905 = vunpack.c.l.b16 %v892
      %v906 = vunpack.c.l.b16 %v896
      %v907 = vpack.c.b16 %v900, %v899
      %v908 = vpack.c.b16 %v902, %v901
      %v909 = vpack.c.b16 %v904, %v903
      %v910 = vpack.c.b16 %v906, %v905
      %v912 = vsel %vm329, %v907, 0
      %v915 = vsel %vm329, %v908, 0
      %v918 = vsel %vm329, %v909, 0
      %v921 = vsel %vm329, %v910, 0
      %v924 = vsel %vm342, %v898, 0
      %926 = vmatpush.bf16.msra.mxu0 0
      %927 = vmatpush.bf16.msra.mxu0 0
      %928 = vmatpush.bf16.msra.mxu0 0
      %929 = vmatpush.bf16.msra.mxu0 0
      %930 = vmatpush.bf16.msra.mxu0 0
      %931 = vmatpush.bf16.msra.mxu0 0
      %932 = vmatpush.bf16.msra.mxu0 0
      %933 = vmatpush.bf16.msra.mxu0 %v924
      %934 = vmatmul.bf16.gmra.mxu0 %v912
      %v935 = vpop.f32.mrf.mxu0
      %v936 = vadd.f32 0.0, %v935
      %v937 = vpop.f32.mrf.mxu0
      %v938 = vadd.f32 0.0, %v937
      %939 = vmatmul.bf16.gmra.mxu0 %v915
      %v940 = vpop.f32.mrf.mxu0
      %v941 = vadd.f32 0.0, %v940
      %v942 = vpop.f32.mrf.mxu0
      %v943 = vadd.f32 0.0, %v942
      %944 = vmatmul.bf16.gmra.mxu0 %v918
      %v945 = vpop.f32.mrf.mxu0
      %v946 = vadd.f32 0.0, %v945
      %v947 = vpop.f32.mrf.mxu0
      %v948 = vadd.f32 0.0, %v947
      %949 = vmatmul.bf16.gmra.mxu0 %v921
      %v950 = vpop.f32.mrf.mxu0
      %v951 = vadd.f32 0.0, %v950
      %v952 = vpop.f32.mrf.mxu0
      %v953 = vadd.f32 0.0, %v952
      %954 = vdwg.mxu0
      %v955 = vadd.f32 %v833, %v936
      %v956 = vadd.f32 %v834, %v938
      %v957 = vadd.f32 %v835, %v941
      %v958 = vadd.f32 %v836, %v943
      %v959 = vadd.f32 %v837, %v946
      %v960 = vadd.f32 %v838, %v948
      %v961 = vadd.f32 %v839, %v951
      %v962 = vadd.f32 %v840, %v953
      %s963 = scalar_lea.vmem %s172, 16
      %v964 = vld [vmem:[%s963] sm:$0xf]
      %v965 = vld [vmem:[%s963 + $0x8] sm:$0xf]
      %v966 = vld [vmem:[%s963 + $0x10] sm:$0xf]
      %v967 = vld [vmem:[%s963 + $0x18] sm:$0xf]
      %v968 = vld [vmem:[%s963 + $0x20] sm:$0xf]
      %v969 = vld [vmem:[%s963 + $0x28] sm:$0xf]
      %v970 = vld [vmem:[%s963 + $0x30] sm:$0xf]
      %v971 = vld [vmem:[%s963 + $0x38] sm:$0xf]
      %s972 = scalar_lea.vmem %s1, 24
      %v973 = vld [vmem:[%s972] sm:$0xf]
      %v982 = vunpack.c.l.b16 %v964
      %v983 = vunpack.c.l.b16 %v965
      %v984 = vunpack.c.l.b16 %v966
      %v985 = vunpack.c.l.b16 %v967
      %v986 = vunpack.c.l.b16 %v968
      %v987 = vunpack.c.l.b16 %v969
      %v988 = vunpack.c.l.b16 %v970
      %v989 = vunpack.c.l.b16 %v971
      %v990 = vpack.c.b16 %v983, %v982
      %v991 = vpack.c.b16 %v985, %v984
      %v992 = vpack.c.b16 %v987, %v986
      %v993 = vpack.c.b16 %v989, %v988
      %v995 = vsel %vm329, %v990, 0
      %v998 = vsel %vm329, %v991, 0
      %v1001 = vsel %vm329, %v992, 0
      %v1004 = vsel %vm329, %v993, 0
      %v1007 = vsel %vm342, %v973, 0
      %1009 = vmatpush.bf16.msra.mxu0 0
      %1010 = vmatpush.bf16.msra.mxu0 0
      %1011 = vmatpush.bf16.msra.mxu0 0
      %1012 = vmatpush.bf16.msra.mxu0 0
      %1013 = vmatpush.bf16.msra.mxu0 0
      %1014 = vmatpush.bf16.msra.mxu0 0
      %1015 = vmatpush.bf16.msra.mxu0 0
      %1016 = vmatpush.bf16.msra.mxu0 %v1007
      %1017 = vmatmul.bf16.gmra.mxu0 %v995
      %v1018 = vpop.f32.mrf.mxu0
      %v1019 = vadd.f32 0.0, %v1018
      %v1020 = vpop.f32.mrf.mxu0
      %v1021 = vadd.f32 0.0, %v1020
      %1022 = vmatmul.bf16.gmra.mxu0 %v998
      %v1023 = vpop.f32.mrf.mxu0
      %v1024 = vadd.f32 0.0, %v1023
      %v1025 = vpop.f32.mrf.mxu0
      %v1026 = vadd.f32 0.0, %v1025
      %1027 = vmatmul.bf16.gmra.mxu0 %v1001
      %v1028 = vpop.f32.mrf.mxu0
      %v1029 = vadd.f32 0.0, %v1028
      %v1030 = vpop.f32.mrf.mxu0
      %v1031 = vadd.f32 0.0, %v1030
      %1032 = vmatmul.bf16.gmra.mxu0 %v1004
      %v1033 = vpop.f32.mrf.mxu0
      %v1034 = vadd.f32 0.0, %v1033
      %v1035 = vpop.f32.mrf.mxu0
      %v1036 = vadd.f32 0.0, %v1035
      %1037 = vdwg.mxu0
      %v1038 = vadd.f32 %v955, %v1019
      %v1039 = vadd.f32 %v956, %v1021
      %v1040 = vadd.f32 %v957, %v1024
      %v1041 = vadd.f32 %v958, %v1026
      %v1042 = vadd.f32 %v959, %v1029
      %v1043 = vadd.f32 %v960, %v1031
      %v1044 = vadd.f32 %v961, %v1034
      %v1045 = vadd.f32 %v962, %v1036
      %v1046 = vld [vmem:[%s963] sm:$0xf]
      %v1047 = vld [vmem:[%s963 + $0x4] sm:$0x1]
      %v1048 = vld [vmem:[%s963 + $0x8] sm:$0xf]
      %v1049 = vld [vmem:[%s963 + $0xc] sm:$0x1]
      %v1050 = vld [vmem:[%s963 + $0x10] sm:$0xf]
      %v1051 = vld [vmem:[%s963 + $0x14] sm:$0x1]
      %v1052 = vld [vmem:[%s963 + $0x18] sm:$0xf]
      %v1053 = vld [vmem:[%s963 + $0x1c] sm:$0x1]
      %v1054 = vld [vmem:[%s963 + $0x20] sm:$0xf]
      %v1055 = vld [vmem:[%s963 + $0x24] sm:$0x1]
      %v1056 = vld [vmem:[%s963 + $0x28] sm:$0xf]
      %v1057 = vld [vmem:[%s963 + $0x2c] sm:$0x1]
      %v1058 = vld [vmem:[%s963 + $0x30] sm:$0xf]
      %v1059 = vld [vmem:[%s963 + $0x34] sm:$0x1]
      %v1060 = vld [vmem:[%s963 + $0x38] sm:$0xf]
      %v1061 = vld [vmem:[%s963 + $0x3c] sm:$0x1]
      %v1063 = vshrl.u32 %v1046, 16
      %v1065 = vrot.slane %v1063, 4
      %v1066 = vshll.u32 %v1046, 16
      %v1068 = vrot.slane %v1066, 5
      %v1069 = vor.u32 %v1065, %v1068
      %v1070 = vrot.slane %v1069, 4
      %v1072 = vshll.u32 %v1047, 16
      %v1074 = vrot.slane %v1072, 5
      %v1075 = vsel %vm202, %v1070, %v1074
      %v1077 = vshrl.u32 %v1048, 16
      %v1079 = vrot.slane %v1077, 4
      %v1080 = vshll.u32 %v1048, 16
      %v1082 = vrot.slane %v1080, 5
      %v1083 = vor.u32 %v1079, %v1082
      %v1084 = vrot.slane %v1083, 4
      %v1086 = vshll.u32 %v1049, 16
      %v1088 = vrot.slane %v1086, 5
      %v1089 = vsel %vm202, %v1084, %v1088
      %v1091 = vshrl.u32 %v1050, 16
      %v1093 = vrot.slane %v1091, 4
      %v1094 = vshll.u32 %v1050, 16
      %v1096 = vrot.slane %v1094, 5
      %v1097 = vor.u32 %v1093, %v1096
      %v1098 = vrot.slane %v1097, 4
      %v1100 = vshll.u32 %v1051, 16
      %v1102 = vrot.slane %v1100, 5
      %v1103 = vsel %vm202, %v1098, %v1102
      %v1105 = vshrl.u32 %v1052, 16
      %v1107 = vrot.slane %v1105, 4
      %v1108 = vshll.u32 %v1052, 16
      %v1110 = vrot.slane %v1108, 5
      %v1111 = vor.u32 %v1107, %v1110
      %v1112 = vrot.slane %v1111, 4
      %v1114 = vshll.u32 %v1053, 16
      %v1116 = vrot.slane %v1114, 5
      %v1117 = vsel %vm202, %v1112, %v1116
      %v1119 = vshrl.u32 %v1054, 16
      %v1121 = vrot.slane %v1119, 4
      %v1122 = vshll.u32 %v1054, 16
      %v1124 = vrot.slane %v1122, 5
      %v1125 = vor.u32 %v1121, %v1124
      %v1126 = vrot.slane %v1125, 4
      %v1128 = vshll.u32 %v1055, 16
      %v1130 = vrot.slane %v1128, 5
      %v1131 = vsel %vm202, %v1126, %v1130
      %v1133 = vshrl.u32 %v1056, 16
      %v1135 = vrot.slane %v1133, 4
      %v1136 = vshll.u32 %v1056, 16
      %v1138 = vrot.slane %v1136, 5
      %v1139 = vor.u32 %v1135, %v1138
      %v1140 = vrot.slane %v1139, 4
      %v1142 = vshll.u32 %v1057, 16
      %v1144 = vrot.slane %v1142, 5
      %v1145 = vsel %vm202, %v1140, %v1144
      %v1147 = vshrl.u32 %v1058, 16
      %v1149 = vrot.slane %v1147, 4
      %v1150 = vshll.u32 %v1058, 16
      %v1152 = vrot.slane %v1150, 5
      %v1153 = vor.u32 %v1149, %v1152
      %v1154 = vrot.slane %v1153, 4
      %v1156 = vshll.u32 %v1059, 16
      %v1158 = vrot.slane %v1156, 5
      %v1159 = vsel %vm202, %v1154, %v1158
      %v1161 = vshrl.u32 %v1060, 16
      %v1163 = vrot.slane %v1161, 4
      %v1164 = vshll.u32 %v1060, 16
      %v1166 = vrot.slane %v1164, 5
      %v1167 = vor.u32 %v1163, %v1166
      %v1168 = vrot.slane %v1167, 4
      %v1170 = vshll.u32 %v1061, 16
      %v1172 = vrot.slane %v1170, 5
      %v1173 = vsel %vm202, %v1168, %v1172
      %s1174 = scalar_lea.vmem %s1, 28
      %v1175 = vld [vmem:[%s1174] sm:$0xf]
      %v1176 = vunpack.c.l.b16 %v1075
      %v1177 = vunpack.c.l.b16 %v1089
      %v1178 = vunpack.c.l.b16 %v1103
      %v1179 = vunpack.c.l.b16 %v1117
      %v1180 = vunpack.c.l.b16 %v1131
      %v1181 = vunpack.c.l.b16 %v1145
      %v1182 = vunpack.c.l.b16 %v1159
      %v1183 = vunpack.c.l.b16 %v1173
      %v1184 = vpack.c.b16 %v1177, %v1176
      %v1185 = vpack.c.b16 %v1179, %v1178
      %v1186 = vpack.c.b16 %v1181, %v1180
      %v1187 = vpack.c.b16 %v1183, %v1182
      %v1189 = vsel %vm329, %v1184, 0
      %v1192 = vsel %vm329, %v1185, 0
      %v1195 = vsel %vm329, %v1186, 0
      %v1198 = vsel %vm329, %v1187, 0
      %v1201 = vsel %vm342, %v1175, 0
      %1203 = vmatpush.bf16.msra.mxu0 0
      %1204 = vmatpush.bf16.msra.mxu0 0
      %1205 = vmatpush.bf16.msra.mxu0 0
      %1206 = vmatpush.bf16.msra.mxu0 0
      %1207 = vmatpush.bf16.msra.mxu0 0
      %1208 = vmatpush.bf16.msra.mxu0 0
      %1209 = vmatpush.bf16.msra.mxu0 0
      %1210 = vmatpush.bf16.msra.mxu0 %v1201
      %1211 = vmatmul.bf16.gmra.mxu0 %v1189
      %v1212 = vpop.f32.mrf.mxu0
      %v1213 = vadd.f32 0.0, %v1212
      %v1214 = vpop.f32.mrf.mxu0
      %v1215 = vadd.f32 0.0, %v1214
      %1216 = vmatmul.bf16.gmra.mxu0 %v1192
      %v1217 = vpop.f32.mrf.mxu0
      %v1218 = vadd.f32 0.0, %v1217
      %v1219 = vpop.f32.mrf.mxu0
      %v1220 = vadd.f32 0.0, %v1219
      %1221 = vmatmul.bf16.gmra.mxu0 %v1195
      %v1222 = vpop.f32.mrf.mxu0
      %v1223 = vadd.f32 0.0, %v1222
      %v1224 = vpop.f32.mrf.mxu0
      %v1225 = vadd.f32 0.0, %v1224
      %1226 = vmatmul.bf16.gmra.mxu0 %v1198
      %v1227 = vpop.f32.mrf.mxu0
      %v1228 = vadd.f32 0.0, %v1227
      %v1229 = vpop.f32.mrf.mxu0
      %v1230 = vadd.f32 0.0, %v1229
      %1231 = vdwg.mxu0
      %v1232 = vadd.f32 %v1038, %v1213
      %v1233 = vadd.f32 %v1039, %v1215
      %v1234 = vadd.f32 %v1040, %v1218
      %v1235 = vadd.f32 %v1041, %v1220
      %v1236 = vadd.f32 %v1042, %v1223
      %v1237 = vadd.f32 %v1043, %v1225
      %v1238 = vadd.f32 %v1044, %v1228
      %v1239 = vadd.f32 %v1045, %v1230
      %v1240 = vld [vmem:[%s963] sm:$0xe]
      %v1241 = vld [vmem:[%s963 + $0x8] sm:$0xe]
      %v1242 = vld [vmem:[%s963 + $0x10] sm:$0xe]
      %v1243 = vld [vmem:[%s963 + $0x18] sm:$0xe]
      %v1244 = vld [vmem:[%s963 + $0x20] sm:$0xe]
      %v1245 = vld [vmem:[%s963 + $0x28] sm:$0xe]
      %v1246 = vld [vmem:[%s963 + $0x30] sm:$0xe]
      %v1247 = vld [vmem:[%s963 + $0x38] sm:$0xe]
      %v1264 = vrot.slane %v1240, 5
      %v1265 = vrot.slane %v1264, 4
      %v1266 = vrot.slane %v1047, 5
      %v1267 = vsel %vm465, %v1265, %v1266
      %v1268 = vrot.slane %v1241, 5
      %v1269 = vrot.slane %v1268, 4
      %v1270 = vrot.slane %v1049, 5
      %v1271 = vsel %vm465, %v1269, %v1270
      %v1272 = vrot.slane %v1242, 5
      %v1273 = vrot.slane %v1272, 4
      %v1274 = vrot.slane %v1051, 5
      %v1275 = vsel %vm465, %v1273, %v1274
      %v1276 = vrot.slane %v1243, 5
      %v1277 = vrot.slane %v1276, 4
      %v1278 = vrot.slane %v1053, 5
      %v1279 = vsel %vm465, %v1277, %v1278
      %v1280 = vrot.slane %v1244, 5
      %v1281 = vrot.slane %v1280, 4
      %v1282 = vrot.slane %v1055, 5
      %v1283 = vsel %vm465, %v1281, %v1282
      %v1284 = vrot.slane %v1245, 5
      %v1285 = vrot.slane %v1284, 4
      %v1286 = vrot.slane %v1057, 5
      %v1287 = vsel %vm465, %v1285, %v1286
      %v1288 = vrot.slane %v1246, 5
      %v1289 = vrot.slane %v1288, 4
      %v1290 = vrot.slane %v1059, 5
      %v1291 = vsel %vm465, %v1289, %v1290
      %v1292 = vrot.slane %v1247, 5
      %v1293 = vrot.slane %v1292, 4
      %v1294 = vrot.slane %v1061, 5
      %v1295 = vsel %vm465, %v1293, %v1294
      %s1296 = scalar_lea.vmem %s1, 32
      %v1297 = vld [vmem:[%s1296] sm:$0xf]
      %v1298 = vunpack.c.l.b16 %v1267
      %v1299 = vunpack.c.l.b16 %v1271
      %v1300 = vunpack.c.l.b16 %v1275
      %v1301 = vunpack.c.l.b16 %v1279
      %v1302 = vunpack.c.l.b16 %v1283
      %v1303 = vunpack.c.l.b16 %v1287
      %v1304 = vunpack.c.l.b16 %v1291
      %v1305 = vunpack.c.l.b16 %v1295
      %v1306 = vpack.c.b16 %v1299, %v1298
      %v1307 = vpack.c.b16 %v1301, %v1300
      %v1308 = vpack.c.b16 %v1303, %v1302
      %v1309 = vpack.c.b16 %v1305, %v1304
      %v1311 = vsel %vm329, %v1306, 0
      %v1314 = vsel %vm329, %v1307, 0
      %v1317 = vsel %vm329, %v1308, 0
      %v1320 = vsel %vm329, %v1309, 0
      %v1323 = vsel %vm342, %v1297, 0
      %1325 = vmatpush.bf16.msra.mxu0 0
      %1326 = vmatpush.bf16.msra.mxu0 0
      %1327 = vmatpush.bf16.msra.mxu0 0
      %1328 = vmatpush.bf16.msra.mxu0 0
      %1329 = vmatpush.bf16.msra.mxu0 0
      %1330 = vmatpush.bf16.msra.mxu0 0
      %1331 = vmatpush.bf16.msra.mxu0 0
      %1332 = vmatpush.bf16.msra.mxu0 %v1323
      %1333 = vmatmul.bf16.gmra.mxu0 %v1311
      %v1334 = vpop.f32.mrf.mxu0
      %v1335 = vadd.f32 0.0, %v1334
      %v1336 = vpop.f32.mrf.mxu0
      %v1337 = vadd.f32 0.0, %v1336
      %1338 = vmatmul.bf16.gmra.mxu0 %v1314
      %v1339 = vpop.f32.mrf.mxu0
      %v1340 = vadd.f32 0.0, %v1339
      %v1341 = vpop.f32.mrf.mxu0
      %v1342 = vadd.f32 0.0, %v1341
      %1343 = vmatmul.bf16.gmra.mxu0 %v1317
      %v1344 = vpop.f32.mrf.mxu0
      %v1345 = vadd.f32 0.0, %v1344
      %v1346 = vpop.f32.mrf.mxu0
      %v1347 = vadd.f32 0.0, %v1346
      %1348 = vmatmul.bf16.gmra.mxu0 %v1320
      %v1349 = vpop.f32.mrf.mxu0
      %v1350 = vadd.f32 0.0, %v1349
      %v1351 = vpop.f32.mrf.mxu0
      %v1352 = vadd.f32 0.0, %v1351
      %1353 = vdwg.mxu0
      %v1354 = vadd.f32 %v1232, %v1335
      %v1355 = vadd.f32 %v1233, %v1337
      %v1356 = vadd.f32 %v1234, %v1340
      %v1357 = vadd.f32 %v1235, %v1342
      %v1358 = vadd.f32 %v1236, %v1345
      %v1359 = vadd.f32 %v1237, %v1347
      %v1360 = vadd.f32 %v1238, %v1350
      %v1361 = vadd.f32 %v1239, %v1352
      %v1362 = vpack.c.bf16 %v1354, %v1354
      %v1363 = vpack.c.bf16 %v1355, %v1355
      %v1364 = vpack.c.bf16 %v1356, %v1356
      %v1365 = vpack.c.bf16 %v1357, %v1357
      %v1366 = vpack.c.bf16 %v1358, %v1358
      %v1367 = vpack.c.bf16 %v1359, %v1359
      %v1368 = vpack.c.bf16 %v1360, %v1360
      %v1369 = vpack.c.bf16 %v1361, %v1361
      %vm1370 = vcmask 60416
      %1371 = vst.msk [vmem:[%s177] sm:$0xf] %vm1370, %v1362
      %1372 = vst.msk [vmem:[%s177 + $0x4] sm:$0xf] %vm1370, %v1363
      %1373 = vst.msk [vmem:[%s177 + $0x8] sm:$0xf] %vm1370, %v1364
      %1374 = vst.msk [vmem:[%s177 + $0xc] sm:$0xf] %vm1370, %v1365
      %1375 = vst.msk [vmem:[%s177 + $0x10] sm:$0xf] %vm1370, %v1366
      %1376 = vst.msk [vmem:[%s177 + $0x14] sm:$0xf] %vm1370, %v1367
      %1377 = vst.msk [vmem:[%s177 + $0x18] sm:$0xf] %vm1370, %v1368
      %1378 = vst.msk [vmem:[%s177 + $0x1c] sm:$0xf] %vm1370, %v1369
      %v1379 = vsel %vm329, %v1354, 0.0
      %v1380 = vsel %vm329, %v1355, 0.0
      %v1381 = vadd.f32 %v1379, %v1380
      %v1382 = vsel %vm329, %v1356, 0.0
      %v1383 = vadd.f32 %v1381, %v1382
      %v1384 = vsel %vm329, %v1357, 0.0
      %v1385 = vadd.f32 %v1383, %v1384
      %v1386 = vsel %vm329, %v1358, 0.0
      %v1387 = vadd.f32 %v1385, %v1386
      %v1388 = vsel %vm329, %v1359, 0.0
      %v1389 = vadd.f32 %v1387, %v1388
      %v1390 = vsel %vm329, %v1360, 0.0
      %v1391 = vadd.f32 %v1389, %v1390
      %v1392 = vsel %vm329, %v1361, 0.0
      %v1393 = vadd.f32 %v1391, %v1392
      %v1394 = vrot.slane %v1393, 4
      %v1395 = vadd.f32 %v1393, %v1394
      %v1396 = vrot.slane %v1395, 2
      %v1397 = vadd.f32 %v1395, %v1396
      %v1398 = vrot.slane %v1397, 1
      %v1399 = vadd.f32 %v1397, %v1398
      %vm1400 = vcmask 57344
      %1401 = vst.msk [vmem:[%s181] sm:$0x1] %vm1400, %v1399
      %v1402 = vmul.f32 %v1354, %v1354
      %v1403 = vmul.f32 %v1355, %v1355
      %v1404 = vmul.f32 %v1356, %v1356
      %v1405 = vmul.f32 %v1357, %v1357
      %v1406 = vmul.f32 %v1358, %v1358
      %v1407 = vmul.f32 %v1359, %v1359
      %v1408 = vmul.f32 %v1360, %v1360
      %v1409 = vmul.f32 %v1361, %v1361
      %v1410 = vsel %vm329, %v1402, 0.0
      %v1411 = vsel %vm329, %v1403, 0.0
      %v1412 = vadd.f32 %v1410, %v1411
      %v1413 = vsel %vm329, %v1404, 0.0
      %v1414 = vadd.f32 %v1412, %v1413
      %v1415 = vsel %vm329, %v1405, 0.0
      %v1416 = vadd.f32 %v1414, %v1415
      %v1417 = vsel %vm329, %v1406, 0.0
      %v1418 = vadd.f32 %v1416, %v1417
      %v1419 = vsel %vm329, %v1407, 0.0
      %v1420 = vadd.f32 %v1418, %v1419
      %v1421 = vsel %vm329, %v1408, 0.0
      %v1422 = vadd.f32 %v1420, %v1421
      %v1423 = vsel %vm329, %v1409, 0.0
      %v1424 = vadd.f32 %v1422, %v1423
      %v1425 = vrot.slane %v1424, 4
      %v1426 = vadd.f32 %v1424, %v1425
      %v1427 = vrot.slane %v1426, 2
      %v1428 = vadd.f32 %v1426, %v1427
      %v1429 = vrot.slane %v1428, 1
      %v1430 = vadd.f32 %v1428, %v1429
      %1431 = vst.msk [vmem:[%s181 + $0x1] sm:$0x1] %vm1400, %v1430
      %p1432 = scmp.lt.s32.totalorder %s15, 1
      %s1433 = scalar_select %p1432, %s15, 1
      %s1434 = smul.addr %s1433, 8
      %s1435 = smul.addr %s1434, 4
      %s1436 = scalar_lea.vmem %s2, %s1435
      %p1437 = scmp.lt.s32.totalorder %s15, 1
      %s1438 = scalar_select %p1437, %s15, 1
      %s1439 = smul.addr %s1438, 2
      %s1440 = scalar_lea.vmem %s3, %s1439
      // Predicated region
      $region29: #{basic_block_forward.6} parent=27 // pred_check
        %p1441 = pneg %p80
      $region30: #{basic_block_forward.6} parent=27 // pred_check_branch
        %1443 = sbr.rel (%p1441) target = $region32
      $region31: #{basic_block_forward.6} parent=27 // pred_region
        _
      $region32: #{basic_block_forward.6} parent=27 // pred_fallthru
        _
      // Predicated region
      $region33: #{basic_block_forward.6} parent=27 // pred_check
        %p1444 = pneg %p106
      $region34: #{basic_block_forward.6} parent=27 // pred_check_branch
        %1446 = sbr.rel (%p1444) target = $region36
      $region35: #{basic_block_forward.6} parent=27 // pred_region
        _
      $region36: #{basic_block_forward.6} parent=27 // pred_fallthru
        _
    $region28: #{basic_block_forward.6} parent=5 // pred_fallthru
      _
    %p1447 = scmp.le.s32.totalorder 2, %s10
    // Predicated region
    $region37: #{basic_block_forward.6} parent=5 // pred_check
      %p1448 = pneg %p1447
    $region38: #{basic_block_forward.6} parent=5 // pred_check_branch
      %1450 = sbr.rel (%p1448) target = $region40
    $region39: #{basic_block_forward.6} parent=5 // pred_region
      %s1451 = ssub.s32 %s10, 2
      // Predicated region
      $region41: #{basic_block_forward.6} parent=39 // pred_check
        %p1452 = pneg %p86
      $region42: #{basic_block_forward.6} parent=39 // pred_check_branch
        %1454 = sbr.rel (%p1452) target = $region44
      $region43: #{basic_block_forward.6} parent=39 // pred_region
        %p1455 = scmp.lt.s32.totalorder %s16, 1
        %s1456 = scalar_select %p1455, %s16, 1
        %s1457 = smul.addr %s1456, 8
        %s1458 = smul.addr %s1457, 4
        %s1459 = scalar_lea.vmem %s2, %s1458
      $region44: #{basic_block_forward.6} parent=39 // pred_fallthru
        _
      // Predicated region
      $region45: #{basic_block_forward.6} parent=39 // pred_check
        %p1460 = pneg %p112
      $region46: #{basic_block_forward.6} parent=39 // pred_check_branch
        %1462 = sbr.rel (%p1460) target = $region48
      $region47: #{basic_block_forward.6} parent=39 // pred_region
        %p1463 = scmp.lt.s32.totalorder %s16, 1
        %s1464 = scalar_select %p1463, %s16, 1
        %s1465 = smul.addr %s1464, 2
        %s1466 = scalar_lea.vmem %s3, %s1465
      $region48: #{basic_block_forward.6} parent=39 // pred_fallthru
        _
    $region40: #{basic_block_forward.6} parent=5 // pred_fallthru
      _
  $region6: #{basic_block_forward.6} parent=0 // loop_footer
    %s14 = sadd.s32 1, %s10
  $region7: #{basic_block_forward.6} parent=0 // loop_footer_branch
    %9 = sbr.rel target = $region3
  $region8: #{basic_block_forward.6} parent=0 // loop_exit
    _

</llo_original>
